<compile_context>
chip_gen: v7x
topology: tpu7x:2x2x1
jax: 0.10.0
libtpu: 0.0.40
codegen_flags: <defaults>
</compile_context>

<pallas_src>
import functools

import jax
import jax.numpy as jnp
from jax.experimental import pallas as pl
from jax.experimental.pallas import tpu as pltpu

NUM_GROUPS = 32
EPS = 1e-6


# ---------------------------------------------------------------------------
# Kernel helpers (traced inside the Pallas kernel body)
# ---------------------------------------------------------------------------
def _group_norm_silu(h2, gamma, beta, avg_mat):
    """GroupNorm(eps=1e-6, affine) + SiLU.  h2: (HW, C) f32, avg_mat: (C, C) f32.

    avg_mat[c, c'] = 1/(HW*Cg) if group(c) == group(c') else 0, so
    (per-channel column sums) @ avg_mat broadcasts the per-group mean back to
    per-channel.  Two-pass mean/variance; all statistics stay in f32; the HW
    reduction and group aggregation run on the MXU instead of XLU relayouts.
    """
    HW = h2.shape[0]
    ones = jnp.ones((8, HW), jnp.float32)        # 8 rows: MXU/sublane-friendly M
    mean_c = jnp.dot(jnp.dot(ones, h2, preferred_element_type=jnp.float32),
                     avg_mat, preferred_element_type=jnp.float32)[0:1]   # (1, C)
    d = h2 - mean_c
    var_c = jnp.dot(jnp.dot(ones, d * d, preferred_element_type=jnp.float32),
                    avg_mat, preferred_element_type=jnp.float32)[0:1]    # (1, C)
    y = d * (jax.lax.rsqrt(var_c + EPS) * gamma) + beta
    return y * jax.nn.sigmoid(y)                 # nonlinearity(x) = x * sigmoid(x)


def _conv3x3_im2col(y3, w_slab, bias, H, W):
    """3x3 same-conv (zero pad) as a single im2col matmul.

    y3: (H, W, Cin) bf16, w_slab: (9*Cin, Cout) bf16, bias: (1, Cout) f32.
    Returns (H*W, Cout) f32 (f32 accumulation on the MXU).
    """
    Cin = y3.shape[-1]
    padded = jnp.pad(y3, ((1, 1), (1, 1), (0, 0)))
    taps = [padded[dh:dh + H, dw:dw + W, :].reshape(H * W, Cin)
            for dh in range(3) for dw in range(3)]
    patches = jnp.concatenate(taps, axis=1)                      # (HW, 9*Cin) bf16
    acc = jnp.dot(patches, w_slab, preferred_element_type=jnp.float32)
    return acc + bias


# ---------------------------------------------------------------------------
# Pallas kernel: one full ResnetBlock per batch element
# ---------------------------------------------------------------------------
def resnet_block_kernel(x_ref, g1_ref, b1_ref, a1_ref, w1_ref, cb1_ref,
                        g2_ref, b2_ref, a2_ref, w2_ref, cb2_ref,
                        *rest, use_shortcut):
    if use_shortcut:
        ws_ref, bs_ref, out_ref = rest
    else:
        (out_ref,) = rest

    _, H, W, Cin = x_ref.shape
    Cout = out_ref.shape[-1]
    HW = H * W

    x2 = x_ref[0].reshape(HW, Cin)                               # (HW, Cin) f32

    # GroupNorm1 + SiLU (f32 statistics)
    h = _group_norm_silu(x2, g1_ref[...], b1_ref[...], a1_ref[...])

    # Shortcut path written straight into the output block (residual add in f32);
    # the output block lives in VMEM, so this lets x2 die before the conv
    # intermediates are live instead of keeping another (HW, Cout) f32 around.
    if use_shortcut:
        sc = jnp.dot(x2.astype(jnp.bfloat16), ws_ref[...],
                     preferred_element_type=jnp.float32) + bs_ref[...]
    else:
        sc = x2
    out_ref[0] = sc.reshape(H, W, Cout)

    # conv1 -> GN2 + SiLU -> conv2   (bf16 MXU operands, f32 accumulation)
    h = _conv3x3_im2col(h.astype(jnp.bfloat16).reshape(H, W, Cin),
                        w1_ref[...], cb1_ref[...], H, W)
    h = _group_norm_silu(h, g2_ref[...], b2_ref[...], a2_ref[...])
    h = _conv3x3_im2col(h.astype(jnp.bfloat16).reshape(H, W, Cout),
                        w2_ref[...], cb2_ref[...], H, W)

    out_ref[0] = out_ref[0] + h.reshape(H, W, Cout)              # x + h


# ---------------------------------------------------------------------------
# Wrapper (NCHW in / NCHW out, same as the PyTorch module)
# ---------------------------------------------------------------------------
def resnet_block(x_nchw, params):
    N, Cin, H, W = x_nchw.shape
    Cout = params["conv1_w"].shape[0]
    if Cin % NUM_GROUPS != 0 or Cout % NUM_GROUPS != 0:
        raise ValueError("channel counts must be multiples of NUM_GROUPS=32")
    use_shortcut = Cin != Cout
    HW = H * W

    x = jnp.transpose(x_nchw, (0, 2, 3, 1)).astype(jnp.float32)  # NHWC f32

    # torch (Cout, Cin, 3, 3) -> (kh, kw, Cin, Cout) -> (9*Cin, Cout) bf16 slab
    def conv_w(w):
        co, ci = w.shape[0], w.shape[1]
        return jnp.transpose(w, (2, 3, 1, 0)).reshape(9 * ci, co).astype(jnp.bfloat16)

    # within-group averaging matrix (includes the 1/(HW*Cg) normalization)
    def group_avg(C):
        g = jnp.arange(C, dtype=jnp.int32) // (C // NUM_GROUPS)
        m = (g[:, None] == g[None, :]).astype(jnp.float32)
        return m / float(HW * (C // NUM_GROUPS))

    args = [
        x,
        params["norm1_w"].reshape(1, Cin).astype(jnp.float32),
        params["norm1_b"].reshape(1, Cin).astype(jnp.float32),
        group_avg(Cin),
        conv_w(params["conv1_w"]),
        params["conv1_b"].reshape(1, Cout).astype(jnp.float32),
        params["norm2_w"].reshape(1, Cout).astype(jnp.float32),
        params["norm2_b"].reshape(1, Cout).astype(jnp.float32),
        group_avg(Cout),
        conv_w(params["conv2_w"]),
        params["conv2_b"].reshape(1, Cout).astype(jnp.float32),
    ]
    const2 = lambda n: (0, 0)
    in_specs = [
        pl.BlockSpec((1, H, W, Cin), lambda n: (n, 0, 0, 0)),
        pl.BlockSpec((1, Cin), const2),
        pl.BlockSpec((1, Cin), const2),
        pl.BlockSpec((Cin, Cin), const2),
        pl.BlockSpec((9 * Cin, Cout), const2),
        pl.BlockSpec((1, Cout), const2),
        pl.BlockSpec((1, Cout), const2),
        pl.BlockSpec((1, Cout), const2),
        pl.BlockSpec((Cout, Cout), const2),
        pl.BlockSpec((9 * Cout, Cout), const2),
        pl.BlockSpec((1, Cout), const2),
    ]
    if use_shortcut:   # only ship the 1x1-shortcut params when they exist
        args += [
            params["nin_w"][:, :, 0, 0].T.astype(jnp.bfloat16),   # (Cin, Cout)
            params["nin_b"].reshape(1, Cout).astype(jnp.float32),
        ]
        in_specs += [
            pl.BlockSpec((Cin, Cout), const2),
            pl.BlockSpec((1, Cout), const2),
        ]

    out_nhwc = pl.pallas_call(
        functools.partial(resnet_block_kernel, use_shortcut=use_shortcut),
        out_shape=jax.ShapeDtypeStruct((N, H, W, Cout), jnp.float32),
        grid_spec=pltpu.PrefetchScalarGridSpec(
            num_scalar_prefetch=0,
            grid=(N,),
            in_specs=in_specs,
            out_specs=pl.BlockSpec((1, H, W, Cout), lambda n: (n, 0, 0, 0)),
        ),
        compiler_params=pltpu.CompilerParams(
            dimension_semantics=("parallel",),
            vmem_limit_bytes=64 * 1024 * 1024),
    )(*args)

    return jnp.transpose(out_nhwc, (0, 3, 1, 2))                 # back to NCHW


# ---------------------------------------------------------------------------
# Pure-JAX f32 reference (for correctness check)
# ---------------------------------------------------------------------------
def _ref_group_norm(x, gamma, beta):
    N, H, W, C = x.shape
    G = NUM_GROUPS
    xg = x.reshape(N, H, W, G, C // G)
    mean = xg.mean(axis=(1, 2, 4), keepdims=True)
    var = xg.var(axis=(1, 2, 4), keepdims=True)
    xn = ((xg - mean) / jnp.sqrt(var + EPS)).reshape(N, H, W, C)
    return xn * gamma.reshape(1, 1, 1, C) + beta.reshape(1, 1, 1, C)


def _ref_conv3x3(x, w, b):
    wk = jnp.transpose(w, (2, 3, 1, 0))             # HWIO
    y = jax.lax.conv_general_dilated(
        x, wk, window_strides=(1, 1), padding="SAME",
        dimension_numbers=("NHWC", "HWIO", "NHWC"))
    return y + b.reshape(1, 1, 1, -1)


def resnet_block_ref(x_nchw, params):
    x = jnp.transpose(x_nchw, (0, 2, 3, 1)).astype(jnp.float32)
    Cin = x.shape[-1]
    Cout = params["conv1_w"].shape[0]
    h = _ref_group_norm(x, params["norm1_w"], params["norm1_b"])
    h = h * jax.nn.sigmoid(h)
    h = _ref_conv3x3(h, params["conv1_w"], params["conv1_b"])
    h = _ref_group_norm(h, params["norm2_w"], params["norm2_b"])
    h = h * jax.nn.sigmoid(h)
    h = _ref_conv3x3(h, params["conv2_w"], params["conv2_b"])
    if Cin != Cout:
        sc = jnp.einsum("nhwc,co->nhwo", x, params["nin_w"][:, :, 0, 0].T)
        sc = sc + params["nin_b"].reshape(1, 1, 1, -1)
    else:
        sc = x
    return jnp.transpose(sc + h, (0, 3, 1, 2))


# ---------------------------------------------------------------------------
def init_params(key, in_channels, out_channels):
    ks = jax.random.split(key, 8)
    p = {
        "norm1_w": 1.0 + 0.1 * jax.random.normal(ks[0], (in_channels,), jnp.float32),
        "norm1_b": 0.1 * jax.random.normal(ks[1], (in_channels,), jnp.float32),
        "conv1_w": 0.05 * jax.random.normal(ks[2], (out_channels, in_channels, 3, 3), jnp.float32),
        "conv1_b": 0.05 * jax.random.normal(ks[3], (out_channels,), jnp.float32),
        "norm2_w": 1.0 + 0.1 * jax.random.normal(ks[4], (out_channels,), jnp.float32),
        "norm2_b": 0.1 * jax.random.normal(ks[5], (out_channels,), jnp.float32),
        "conv2_w": 0.05 * jax.random.normal(ks[6], (out_channels, out_channels, 3, 3), jnp.float32),
        "conv2_b": 0.05 * jax.random.normal(ks[7], (out_channels,), jnp.float32),
    }
    if in_channels != out_channels:
        k1, k2 = jax.random.split(jax.random.fold_in(key, 123))
        p["nin_w"] = 0.05 * jax.random.normal(k1, (out_channels, in_channels, 1, 1), jnp.float32)
        p["nin_b"] = 0.05 * jax.random.normal(k2, (out_channels,), jnp.float32)
    return p


if __name__ == "__main__":
    # GroupNorm uses num_groups=32, so channels must be multiples of 32.
    N, Cin, Cout, H, W = 2, 32, 64, 8, 8
    key = jax.random.PRNGKey(0)
    kx, kp = jax.random.split(key)
    x = jax.random.normal(kx, (N, Cin, H, W), jnp.float32)   # NCHW like PyTorch
    params = init_params(kp, Cin, Cout)

    fwd = jax.jit(resnet_block)     # fuse the layout transposes / weight packing with the call
    out = jax.block_until_ready(fwd(x, params))
    ref = jax.block_until_ready(resnet_block_ref(x, params))

    assert out.shape == (N, Cout, H, W)
    max_err = float(jnp.max(jnp.abs(out - ref)))
    # tolerance accounts for bf16 MXU operands (f32 accumulation) vs. the f32 reference
    assert jnp.allclose(out, ref, atol=5e-2, rtol=5e-2), max_err

    print("KERNEL_OK")
</pallas_src>

<mosaic_0001>
module attributes {stable_mosaic.version = 11 : i64} {
  func.func @resnet_block_kernel(%arg0: i32, %arg1: memref<1x8x8x32xf32, #tpu.memory_space<vmem>>, %arg2: memref<1x32xf32, #tpu.memory_space<vmem>>, %arg3: memref<1x32xf32, #tpu.memory_space<vmem>>, %arg4: memref<32x32xf32, #tpu.memory_space<vmem>>, %arg5: memref<288x64xbf16, #tpu.memory_space<vmem>>, %arg6: memref<1x64xf32, #tpu.memory_space<vmem>>, %arg7: memref<1x64xf32, #tpu.memory_space<vmem>>, %arg8: memref<1x64xf32, #tpu.memory_space<vmem>>, %arg9: memref<64x64xf32, #tpu.memory_space<vmem>>, %arg10: memref<576x64xbf16, #tpu.memory_space<vmem>>, %arg11: memref<1x64xf32, #tpu.memory_space<vmem>>, %arg12: memref<32x64xbf16, #tpu.memory_space<vmem>>, %arg13: memref<1x64xf32, #tpu.memory_space<vmem>>, %arg14: memref<1x8x8x64xf32, #tpu.memory_space<vmem>>) attributes {dimension_semantics = [#tpu.dimension_semantics<parallel>], iteration_bounds = array<i64: 2>, scalar_prefetch = 0 : i64, scratch_operands = 0 : i64, tpu.core_type = #tpu.core_type<tc>, window_params = [{transform_indices = @transform_0, window_bounds = array<i64: 1, 8, 8, 32>}, {pipeline_mode = #tpu.pipeline_mode<synchronous>, transform_indices = @transform_1, window_bounds = array<i64: 1, 32>}, {pipeline_mode = #tpu.pipeline_mode<synchronous>, transform_indices = @transform_2, window_bounds = array<i64: 1, 32>}, {pipeline_mode = #tpu.pipeline_mode<synchronous>, transform_indices = @transform_3, window_bounds = array<i64: 32, 32>}, {pipeline_mode = #tpu.pipeline_mode<synchronous>, transform_indices = @transform_4, window_bounds = array<i64: 288, 64>}, {pipeline_mode = #tpu.pipeline_mode<synchronous>, transform_indices = @transform_5, window_bounds = array<i64: 1, 64>}, {pipeline_mode = #tpu.pipeline_mode<synchronous>, transform_indices = @transform_6, window_bounds = array<i64: 1, 64>}, {pipeline_mode = #tpu.pipeline_mode<synchronous>, transform_indices = @transform_7, window_bounds = array<i64: 1, 64>}, {pipeline_mode = #tpu.pipeline_mode<synchronous>, transform_indices = @transform_8, window_bounds = array<i64: 64, 64>}, {pipeline_mode = #tpu.pipeline_mode<synchronous>, transform_indices = @transform_9, window_bounds = array<i64: 576, 64>}, {pipeline_mode = #tpu.pipeline_mode<synchronous>, transform_indices = @transform_10, window_bounds = array<i64: 1, 64>}, {pipeline_mode = #tpu.pipeline_mode<synchronous>, transform_indices = @transform_11, window_bounds = array<i64: 32, 64>}, {pipeline_mode = #tpu.pipeline_mode<synchronous>, transform_indices = @transform_12, window_bounds = array<i64: 1, 64>}, {transform_indices = @transform_13, window_bounds = array<i64: 1, 8, 8, 64>}]} {
    %c0 = arith.constant 0 : index
    %c0_0 = arith.constant 0 : index
    %c0_1 = arith.constant 0 : index
    %c0_2 = arith.constant 0 : index
    %0 = vector.load %arg1[%c0, %c0_0, %c0_1, %c0_2] : memref<1x8x8x32xf32, #tpu.memory_space<vmem>>, vector<1x8x8x32xf32>
    %1 = vector.shape_cast %0 : vector<1x8x8x32xf32> to vector<8x8x32xf32>
    %2 = vector.shape_cast %1 : vector<8x8x32xf32> to vector<64x32xf32>
    %c0_3 = arith.constant 0 : index
    %c0_4 = arith.constant 0 : index
    %3 = vector.load %arg2[%c0_3, %c0_4] : memref<1x32xf32, #tpu.memory_space<vmem>>, vector<1x32xf32>
    %c0_5 = arith.constant 0 : index
    %c0_6 = arith.constant 0 : index
    %4 = vector.load %arg3[%c0_5, %c0_6] : memref<1x32xf32, #tpu.memory_space<vmem>>, vector<1x32xf32>
    %c0_7 = arith.constant 0 : index
    %c0_8 = arith.constant 0 : index
    %5 = vector.load %arg4[%c0_7, %c0_8] : memref<32x32xf32, #tpu.memory_space<vmem>>, vector<32x32xf32>
    %cst = arith.constant 1.000000e+00 : f32
    %6 = vector.broadcast %cst : f32 to vector<8x64xf32>
    %cst_9 = arith.constant dense<0.000000e+00> : vector<8x32xf32>
    %7 = tpu.matmul %6, %2, %cst_9 {dimension_numbers = #tpu.dot_dimension_numbers<[1], [0], [0], [1], [0, 0, 1, 1], [], []>} : vector<8x64xf32>, vector<64x32xf32>, vector<8x32xf32> -> vector<8x32xf32>
    %cst_10 = arith.constant dense<0.000000e+00> : vector<8x32xf32>
    %8 = tpu.matmul %7, %5, %cst_10 {dimension_numbers = #tpu.dot_dimension_numbers<[1], [0], [0], [1], [0, 0, 1, 1], [], []>} : vector<8x32xf32>, vector<32x32xf32>, vector<8x32xf32> -> vector<8x32xf32>
    %9 = vector.extract_strided_slice %8 {offsets = [0, 0], sizes = [1, 32], strides = [1, 1]} : vector<8x32xf32> to vector<1x32xf32>
    %10 = vector.broadcast %9 : vector<1x32xf32> to vector<64x32xf32>
    %11 = arith.subf %2, %10 : vector<64x32xf32>
    %12 = arith.mulf %11, %11 : vector<64x32xf32>
    %cst_11 = arith.constant dense<0.000000e+00> : vector<8x32xf32>
    %13 = tpu.matmul %6, %12, %cst_11 {dimension_numbers = #tpu.dot_dimension_numbers<[1], [0], [0], [1], [0, 0, 1, 1], [], []>} : vector<8x64xf32>, vector<64x32xf32>, vector<8x32xf32> -> vector<8x32xf32>
    %cst_12 = arith.constant dense<0.000000e+00> : vector<8x32xf32>
    %14 = tpu.matmul %13, %5, %cst_12 {dimension_numbers = #tpu.dot_dimension_numbers<[1], [0], [0], [1], [0, 0, 1, 1], [], []>} : vector<8x32xf32>, vector<32x32xf32>, vector<8x32xf32> -> vector<8x32xf32>
    %15 = vector.extract_strided_slice %14 {offsets = [0, 0], sizes = [1, 32], strides = [1, 1]} : vector<8x32xf32> to vector<1x32xf32>
    %cst_13 = arith.constant 9.99999997E-7 : f32
    %16 = vector.broadcast %cst_13 : f32 to vector<1x32xf32>
    %17 = arith.addf %15, %16 : vector<1x32xf32>
    %18 = math.rsqrt %17 : vector<1x32xf32>
    %19 = arith.mulf %18, %3 : vector<1x32xf32>
    %20 = vector.broadcast %19 : vector<1x32xf32> to vector<64x32xf32>
    %21 = arith.mulf %11, %20 : vector<64x32xf32>
    %22 = vector.broadcast %4 : vector<1x32xf32> to vector<64x32xf32>
    %23 = arith.addf %21, %22 : vector<64x32xf32>
    %24 = arith.negf %23 : vector<64x32xf32>
    %25 = math.exp %24 : vector<64x32xf32>
    %cst_14 = arith.constant 1.000000e+00 : f32
    %26 = vector.broadcast %cst_14 : f32 to vector<64x32xf32>
    %27 = arith.addf %26, %25 : vector<64x32xf32>
    %28 = arith.divf %26, %27 : vector<64x32xf32>
    %29 = arith.mulf %23, %28 : vector<64x32xf32>
    %30 = arith.truncf %2 : vector<64x32xf32> to vector<64x32xbf16>
    %c0_15 = arith.constant 0 : index
    %c0_16 = arith.constant 0 : index
    %31 = vector.load %arg12[%c0_15, %c0_16] : memref<32x64xbf16, #tpu.memory_space<vmem>>, vector<32x64xbf16>
    %cst_17 = arith.constant dense<0.000000e+00> : vector<64x64xf32>
    %32 = tpu.matmul %30, %31, %cst_17 {dimension_numbers = #tpu.dot_dimension_numbers<[1], [0], [0], [1], [0, 0, 1, 1], [], []>} : vector<64x32xbf16>, vector<32x64xbf16>, vector<64x64xf32> -> vector<64x64xf32>
    %c0_18 = arith.constant 0 : index
    %c0_19 = arith.constant 0 : index
    %33 = vector.load %arg13[%c0_18, %c0_19] : memref<1x64xf32, #tpu.memory_space<vmem>>, vector<1x64xf32>
    %34 = vector.broadcast %33 : vector<1x64xf32> to vector<64x64xf32>
    %35 = arith.addf %32, %34 : vector<64x64xf32>
    %36 = vector.shape_cast %35 : vector<64x64xf32> to vector<8x8x64xf32>
    %c0_20 = arith.constant 0 : index
    %c0_21 = arith.constant 0 : index
    %c0_22 = arith.constant 0 : index
    %c0_23 = arith.constant 0 : index
    %37 = vector.load %arg14[%c0_20, %c0_21, %c0_22, %c0_23] : memref<1x8x8x64xf32, #tpu.memory_space<vmem>>, vector<1x8x8x64xf32>
    %38 = vector.shape_cast %37 : vector<1x8x8x64xf32> to vector<8x8x64xf32>
    %39 = vector.shape_cast %36 : vector<8x8x64xf32> to vector<1x8x8x64xf32>
    tpu.vector_store %arg14[%c0_20, %c0_21, %c0_22, %c0_23], %39 {strides = array<i32>} : memref<1x8x8x64xf32, #tpu.memory_space<vmem>>, vector<1x8x8x64xf32>,
    %40 = arith.truncf %29 : vector<64x32xf32> to vector<64x32xbf16>
    %41 = vector.shape_cast %40 : vector<64x32xbf16> to vector<8x8x32xbf16>
    %c0_24 = arith.constant 0 : index
    %c0_25 = arith.constant 0 : index
    %42 = vector.load %arg5[%c0_24, %c0_25] : memref<288x64xbf16, #tpu.memory_space<vmem>>, vector<288x64xbf16>
    %c0_26 = arith.constant 0 : index
    %c0_27 = arith.constant 0 : index
    %43 = vector.load %arg6[%c0_26, %c0_27] : memref<1x64xf32, #tpu.memory_space<vmem>>, vector<1x64xf32>
    %c0_i32 = arith.constant 0 : i32
    %44 = arith.sitofp %c0_i32 : i32 to bf16
    %45 = vector.broadcast %44 : bf16 to vector<1x8x32xbf16>
    %46 = tpu.concatenate %45, %41 in 0 : vector<1x8x32xbf16>, vector<8x8x32xbf16> -> vector<9x8x32xbf16>
    %47 = vector.broadcast %44 : bf16 to vector<1x8x32xbf16>
    %48 = tpu.concatenate %46, %47 in 0 : vector<9x8x32xbf16>, vector<1x8x32xbf16> -> vector<10x8x32xbf16>
    %49 = vector.broadcast %44 : bf16 to vector<10x1x32xbf16>
    %50 = tpu.concatenate %49, %48 in 1 : vector<10x1x32xbf16>, vector<10x8x32xbf16> -> vector<10x9x32xbf16>
    %51 = vector.broadcast %44 : bf16 to vector<10x1x32xbf16>
    %52 = tpu.concatenate %50, %51 in 1 : vector<10x9x32xbf16>, vector<10x1x32xbf16> -> vector<10x10x32xbf16>
    %53 = vector.extract_strided_slice %52 {offsets = [0, 0, 0], sizes = [8, 8, 32], strides = [1, 1, 1]} : vector<10x10x32xbf16> to vector<8x8x32xbf16>
    %54 = vector.shape_cast %53 : vector<8x8x32xbf16> to vector<64x32xbf16>
    %55 = vector.extract_strided_slice %52 {offsets = [0, 1, 0], sizes = [8, 8, 32], strides = [1, 1, 1]} : vector<10x10x32xbf16> to vector<8x8x32xbf16>
    %56 = vector.shape_cast %55 : vector<8x8x32xbf16> to vector<64x32xbf16>
    %57 = vector.extract_strided_slice %52 {offsets = [0, 2, 0], sizes = [8, 8, 32], strides = [1, 1, 1]} : vector<10x10x32xbf16> to vector<8x8x32xbf16>
    %58 = vector.shape_cast %57 : vector<8x8x32xbf16> to vector<64x32xbf16>
    %59 = vector.extract_strided_slice %52 {offsets = [1, 0, 0], sizes = [8, 8, 32], strides = [1, 1, 1]} : vector<10x10x32xbf16> to vector<8x8x32xbf16>
    %60 = vector.shape_cast %59 : vector<8x8x32xbf16> to vector<64x32xbf16>
    %61 = vector.extract_strided_slice %52 {offsets = [1, 1, 0], sizes = [8, 8, 32], strides = [1, 1, 1]} : vector<10x10x32xbf16> to vector<8x8x32xbf16>
    %62 = vector.shape_cast %61 : vector<8x8x32xbf16> to vector<64x32xbf16>
    %63 = vector.extract_strided_slice %52 {offsets = [1, 2, 0], sizes = [8, 8, 32], strides = [1, 1, 1]} : vector<10x10x32xbf16> to vector<8x8x32xbf16>
    %64 = vector.shape_cast %63 : vector<8x8x32xbf16> to vector<64x32xbf16>
    %65 = vector.extract_strided_slice %52 {offsets = [2, 0, 0], sizes = [8, 8, 32], strides = [1, 1, 1]} : vector<10x10x32xbf16> to vector<8x8x32xbf16>
    %66 = vector.shape_cast %65 : vector<8x8x32xbf16> to vector<64x32xbf16>
    %67 = vector.extract_strided_slice %52 {offsets = [2, 1, 0], sizes = [8, 8, 32], strides = [1, 1, 1]} : vector<10x10x32xbf16> to vector<8x8x32xbf16>
    %68 = vector.shape_cast %67 : vector<8x8x32xbf16> to vector<64x32xbf16>
    %69 = vector.extract_strided_slice %52 {offsets = [2, 2, 0], sizes = [8, 8, 32], strides = [1, 1, 1]} : vector<10x10x32xbf16> to vector<8x8x32xbf16>
    %70 = vector.shape_cast %69 : vector<8x8x32xbf16> to vector<64x32xbf16>
    %71 = tpu.concatenate %54, %56, %58, %60, %62, %64, %66, %68, %70 in 1 : vector<64x32xbf16>, vector<64x32xbf16>, vector<64x32xbf16>, vector<64x32xbf16>, vector<64x32xbf16>, vector<64x32xbf16>, vector<64x32xbf16>, vector<64x32xbf16>, vector<64x32xbf16> -> vector<64x288xbf16>
    %cst_28 = arith.constant dense<0.000000e+00> : vector<64x64xf32>
    %72 = tpu.matmul %71, %42, %cst_28 {dimension_numbers = #tpu.dot_dimension_numbers<[1], [0], [0], [1], [0, 0, 1, 1], [], []>} : vector<64x288xbf16>, vector<288x64xbf16>, vector<64x64xf32> -> vector<64x64xf32>
    %73 = vector.broadcast %43 : vector<1x64xf32> to vector<64x64xf32>
    %74 = arith.addf %72, %73 : vector<64x64xf32>
    %c0_29 = arith.constant 0 : index
    %c0_30 = arith.constant 0 : index
    %75 = vector.load %arg7[%c0_29, %c0_30] : memref<1x64xf32, #tpu.memory_space<vmem>>, vector<1x64xf32>
    %c0_31 = arith.constant 0 : index
    %c0_32 = arith.constant 0 : index
    %76 = vector.load %arg8[%c0_31, %c0_32] : memref<1x64xf32, #tpu.memory_space<vmem>>, vector<1x64xf32>
    %c0_33 = arith.constant 0 : index
    %c0_34 = arith.constant 0 : index
    %77 = vector.load %arg9[%c0_33, %c0_34] : memref<64x64xf32, #tpu.memory_space<vmem>>, vector<64x64xf32>
    %cst_35 = arith.constant 1.000000e+00 : f32
    %78 = vector.broadcast %cst_35 : f32 to vector<8x64xf32>
    %cst_36 = arith.constant dense<0.000000e+00> : vector<8x64xf32>
    %79 = tpu.matmul %78, %74, %cst_36 {dimension_numbers = #tpu.dot_dimension_numbers<[1], [0], [0], [1], [0, 0, 1, 1], [], []>} : vector<8x64xf32>, vector<64x64xf32>, vector<8x64xf32> -> vector<8x64xf32>
    %cst_37 = arith.constant dense<0.000000e+00> : vector<8x64xf32>
    %80 = tpu.matmul %79, %77, %cst_37 {dimension_numbers = #tpu.dot_dimension_numbers<[1], [0], [0], [1], [0, 0, 1, 1], [], []>} : vector<8x64xf32>, vector<64x64xf32>, vector<8x64xf32> -> vector<8x64xf32>
    %81 = vector.extract_strided_slice %80 {offsets = [0, 0], sizes = [1, 64], strides = [1, 1]} : vector<8x64xf32> to vector<1x64xf32>
    %82 = vector.broadcast %81 : vector<1x64xf32> to vector<64x64xf32>
    %83 = arith.subf %74, %82 : vector<64x64xf32>
    %84 = arith.mulf %83, %83 : vector<64x64xf32>
    %cst_38 = arith.constant dense<0.000000e+00> : vector<8x64xf32>
    %85 = tpu.matmul %78, %84, %cst_38 {dimension_numbers = #tpu.dot_dimension_numbers<[1], [0], [0], [1], [0, 0, 1, 1], [], []>} : vector<8x64xf32>, vector<64x64xf32>, vector<8x64xf32> -> vector<8x64xf32>
    %cst_39 = arith.constant dense<0.000000e+00> : vector<8x64xf32>
    %86 = tpu.matmul %85, %77, %cst_39 {dimension_numbers = #tpu.dot_dimension_numbers<[1], [0], [0], [1], [0, 0, 1, 1], [], []>} : vector<8x64xf32>, vector<64x64xf32>, vector<8x64xf32> -> vector<8x64xf32>
    %87 = vector.extract_strided_slice %86 {offsets = [0, 0], sizes = [1, 64], strides = [1, 1]} : vector<8x64xf32> to vector<1x64xf32>
    %cst_40 = arith.constant 9.99999997E-7 : f32
    %88 = vector.broadcast %cst_40 : f32 to vector<1x64xf32>
    %89 = arith.addf %87, %88 : vector<1x64xf32>
    %90 = math.rsqrt %89 : vector<1x64xf32>
    %91 = arith.mulf %90, %75 : vector<1x64xf32>
    %92 = vector.broadcast %91 : vector<1x64xf32> to vector<64x64xf32>
    %93 = arith.mulf %83, %92 : vector<64x64xf32>
    %94 = vector.broadcast %76 : vector<1x64xf32> to vector<64x64xf32>
    %95 = arith.addf %93, %94 : vector<64x64xf32>
    %96 = arith.negf %95 : vector<64x64xf32>
    %97 = math.exp %96 : vector<64x64xf32>
    %cst_41 = arith.constant 1.000000e+00 : f32
    %98 = vector.broadcast %cst_41 : f32 to vector<64x64xf32>
    %99 = arith.addf %98, %97 : vector<64x64xf32>
    %100 = arith.divf %98, %99 : vector<64x64xf32>
    %101 = arith.mulf %95, %100 : vector<64x64xf32>
    %102 = arith.truncf %101 : vector<64x64xf32> to vector<64x64xbf16>
    %103 = vector.shape_cast %102 : vector<64x64xbf16> to vector<8x8x64xbf16>
    %c0_42 = arith.constant 0 : index
    %c0_43 = arith.constant 0 : index
    %104 = vector.load %arg10[%c0_42, %c0_43] : memref<576x64xbf16, #tpu.memory_space<vmem>>, vector<576x64xbf16>
    %c0_44 = arith.constant 0 : index
    %c0_45 = arith.constant 0 : index
    %105 = vector.load %arg11[%c0_44, %c0_45] : memref<1x64xf32, #tpu.memory_space<vmem>>, vector<1x64xf32>
    %c0_i32_46 = arith.constant 0 : i32
    %106 = arith.sitofp %c0_i32_46 : i32 to bf16
    %107 = vector.broadcast %106 : bf16 to vector<1x8x64xbf16>
    %108 = tpu.concatenate %107, %103 in 0 : vector<1x8x64xbf16>, vector<8x8x64xbf16> -> vector<9x8x64xbf16>
    %109 = vector.broadcast %106 : bf16 to vector<1x8x64xbf16>
    %110 = tpu.concatenate %108, %109 in 0 : vector<9x8x64xbf16>, vector<1x8x64xbf16> -> vector<10x8x64xbf16>
    %111 = vector.broadcast %106 : bf16 to vector<10x1x64xbf16>
    %112 = tpu.concatenate %111, %110 in 1 : vector<10x1x64xbf16>, vector<10x8x64xbf16> -> vector<10x9x64xbf16>
    %113 = vector.broadcast %106 : bf16 to vector<10x1x64xbf16>
    %114 = tpu.concatenate %112, %113 in 1 : vector<10x9x64xbf16>, vector<10x1x64xbf16> -> vector<10x10x64xbf16>
    %115 = vector.extract_strided_slice %114 {offsets = [0, 0, 0], sizes = [8, 8, 64], strides = [1, 1, 1]} : vector<10x10x64xbf16> to vector<8x8x64xbf16>
    %116 = vector.shape_cast %115 : vector<8x8x64xbf16> to vector<64x64xbf16>
    %117 = vector.extract_strided_slice %114 {offsets = [0, 1, 0], sizes = [8, 8, 64], strides = [1, 1, 1]} : vector<10x10x64xbf16> to vector<8x8x64xbf16>
    %118 = vector.shape_cast %117 : vector<8x8x64xbf16> to vector<64x64xbf16>
    %119 = vector.extract_strided_slice %114 {offsets = [0, 2, 0], sizes = [8, 8, 64], strides = [1, 1, 1]} : vector<10x10x64xbf16> to vector<8x8x64xbf16>
    %120 = vector.shape_cast %119 : vector<8x8x64xbf16> to vector<64x64xbf16>
    %121 = vector.extract_strided_slice %114 {offsets = [1, 0, 0], sizes = [8, 8, 64], strides = [1, 1, 1]} : vector<10x10x64xbf16> to vector<8x8x64xbf16>
    %122 = vector.shape_cast %121 : vector<8x8x64xbf16> to vector<64x64xbf16>
    %123 = vector.extract_strided_slice %114 {offsets = [1, 1, 0], sizes = [8, 8, 64], strides = [1, 1, 1]} : vector<10x10x64xbf16> to vector<8x8x64xbf16>
    %124 = vector.shape_cast %123 : vector<8x8x64xbf16> to vector<64x64xbf16>
    %125 = vector.extract_strided_slice %114 {offsets = [1, 2, 0], sizes = [8, 8, 64], strides = [1, 1, 1]} : vector<10x10x64xbf16> to vector<8x8x64xbf16>
    %126 = vector.shape_cast %125 : vector<8x8x64xbf16> to vector<64x64xbf16>
    %127 = vector.extract_strided_slice %114 {offsets = [2, 0, 0], sizes = [8, 8, 64], strides = [1, 1, 1]} : vector<10x10x64xbf16> to vector<8x8x64xbf16>
    %128 = vector.shape_cast %127 : vector<8x8x64xbf16> to vector<64x64xbf16>
    %129 = vector.extract_strided_slice %114 {offsets = [2, 1, 0], sizes = [8, 8, 64], strides = [1, 1, 1]} : vector<10x10x64xbf16> to vector<8x8x64xbf16>
    %130 = vector.shape_cast %129 : vector<8x8x64xbf16> to vector<64x64xbf16>
    %131 = vector.extract_strided_slice %114 {offsets = [2, 2, 0], sizes = [8, 8, 64], strides = [1, 1, 1]} : vector<10x10x64xbf16> to vector<8x8x64xbf16>
    %132 = vector.shape_cast %131 : vector<8x8x64xbf16> to vector<64x64xbf16>
    %133 = tpu.concatenate %116, %118, %120, %122, %124, %126, %128, %130, %132 in 1 : vector<64x64xbf16>, vector<64x64xbf16>, vector<64x64xbf16>, vector<64x64xbf16>, vector<64x64xbf16>, vector<64x64xbf16>, vector<64x64xbf16>, vector<64x64xbf16>, vector<64x64xbf16> -> vector<64x576xbf16>
    %cst_47 = arith.constant dense<0.000000e+00> : vector<64x64xf32>
    %134 = tpu.matmul %133, %104, %cst_47 {dimension_numbers = #tpu.dot_dimension_numbers<[1], [0], [0], [1], [0, 0, 1, 1], [], []>} : vector<64x576xbf16>, vector<576x64xbf16>, vector<64x64xf32> -> vector<64x64xf32>
    %135 = vector.broadcast %105 : vector<1x64xf32> to vector<64x64xf32>
    %136 = arith.addf %134, %135 : vector<64x64xf32>
    %c0_48 = arith.constant 0 : index
    %c0_49 = arith.constant 0 : index
    %c0_50 = arith.constant 0 : index
    %c0_51 = arith.constant 0 : index
    %137 = vector.load %arg14[%c0_48, %c0_49, %c0_50, %c0_51] : memref<1x8x8x64xf32, #tpu.memory_space<vmem>>, vector<1x8x8x64xf32>
    %138 = vector.shape_cast %137 : vector<1x8x8x64xf32> to vector<8x8x64xf32>
    %139 = vector.shape_cast %136 : vector<64x64xf32> to vector<8x8x64xf32>
    %140 = arith.addf %138, %139 : vector<8x8x64xf32>
    %c0_52 = arith.constant 0 : index
    %c0_53 = arith.constant 0 : index
    %c0_54 = arith.constant 0 : index
    %c0_55 = arith.constant 0 : index
    %141 = vector.load %arg14[%c0_52, %c0_53, %c0_54, %c0_55] : memref<1x8x8x64xf32, #tpu.memory_space<vmem>>, vector<1x8x8x64xf32>
    %142 = vector.shape_cast %141 : vector<1x8x8x64xf32> to vector<8x8x64xf32>
    %143 = vector.shape_cast %140 : vector<8x8x64xf32> to vector<1x8x8x64xf32>
    tpu.vector_store %arg14[%c0_52, %c0_53, %c0_54, %c0_55], %143 {strides = array<i32>} : memref<1x8x8x64xf32, #tpu.memory_space<vmem>>, vector<1x8x8x64xf32>,
    return
  }
  func.func @transform_0(%arg0: i32) -> (i32, i32, i32, i32) {
    %c0_i32 = arith.constant 0 : i32
    %c0_i32_0 = arith.constant 0 : i32
    %c0_i32_1 = arith.constant 0 : i32
    %c0_i32_2 = arith.constant 0 : i32
    return %arg0, %c0_i32, %c0_i32_0, %c0_i32_1 : i32, i32, i32, i32
  }
  func.func @transform_1(%arg0: i32) -> (i32, i32) {
    %c0_i32 = arith.constant 0 : i32
    %c0_i32_0 = arith.constant 0 : i32
    %c0_i32_1 = arith.constant 0 : i32
    return %c0_i32, %c0_i32_0 : i32, i32
  }
  func.func @transform_2(%arg0: i32) -> (i32, i32) {
    %c0_i32 = arith.constant 0 : i32
    %c0_i32_0 = arith.constant 0 : i32
    %c0_i32_1 = arith.constant 0 : i32
    return %c0_i32, %c0_i32_0 : i32, i32
  }
  func.func @transform_3(%arg0: i32) -> (i32, i32) {
    %c0_i32 = arith.constant 0 : i32
    %c0_i32_0 = arith.constant 0 : i32
    %c0_i32_1 = arith.constant 0 : i32
    return %c0_i32, %c0_i32_0 : i32, i32
  }
  func.func @transform_4(%arg0: i32) -> (i32, i32) {
    %c0_i32 = arith.constant 0 : i32
    %c0_i32_0 = arith.constant 0 : i32
    %c0_i32_1 = arith.constant 0 : i32
    return %c0_i32, %c0_i32_0 : i32, i32
  }
  func.func @transform_5(%arg0: i32) -> (i32, i32) {
    %c0_i32 = arith.constant 0 : i32
    %c0_i32_0 = arith.constant 0 : i32
    %c0_i32_1 = arith.constant 0 : i32
    return %c0_i32, %c0_i32_0 : i32, i32
  }
  func.func @transform_6(%arg0: i32) -> (i32, i32) {
    %c0_i32 = arith.constant 0 : i32
    %c0_i32_0 = arith.constant 0 : i32
    %c0_i32_1 = arith.constant 0 : i32
    return %c0_i32, %c0_i32_0 : i32, i32
  }
  func.func @transform_7(%arg0: i32) -> (i32, i32) {
    %c0_i32 = arith.constant 0 : i32
    %c0_i32_0 = arith.constant 0 : i32
    %c0_i32_1 = arith.constant 0 : i32
    return %c0_i32, %c0_i32_0 : i32, i32
  }
  func.func @transform_8(%arg0: i32) -> (i32, i32) {
    %c0_i32 = arith.constant 0 : i32
    %c0_i32_0 = arith.constant 0 : i32
    %c0_i32_1 = arith.constant 0 : i32
    return %c0_i32, %c0_i32_0 : i32, i32
  }
  func.func @transform_9(%arg0: i32) -> (i32, i32) {
    %c0_i32 = arith.constant 0 : i32
    %c0_i32_0 = arith.constant 0 : i32
    %c0_i32_1 = arith.constant 0 : i32
    return %c0_i32, %c0_i32_0 : i32, i32
  }
  func.func @transform_10(%arg0: i32) -> (i32, i32) {
    %c0_i32 = arith.constant 0 : i32
    %c0_i32_0 = arith.constant 0 : i32
    %c0_i32_1 = arith.constant 0 : i32
    return %c0_i32, %c0_i32_0 : i32, i32
  }
  func.func @transform_11(%arg0: i32) -> (i32, i32) {
    %c0_i32 = arith.constant 0 : i32
    %c0_i32_0 = arith.constant 0 : i32
    %c0_i32_1 = arith.constant 0 : i32
    return %c0_i32, %c0_i32_0 : i32, i32
  }
  func.func @transform_12(%arg0: i32) -> (i32, i32) {
    %c0_i32 = arith.constant 0 : i32
    %c0_i32_0 = arith.constant 0 : i32
    %c0_i32_1 = arith.constant 0 : i32
    return %c0_i32, %c0_i32_0 : i32, i32
  }
  func.func @transform_13(%arg0: i32) -> (i32, i32, i32, i32) {
    %c0_i32 = arith.constant 0 : i32
    %c0_i32_0 = arith.constant 0 : i32
    %c0_i32_1 = arith.constant 0 : i32
    %c0_i32_2 = arith.constant 0 : i32
    return %arg0, %c0_i32, %c0_i32_0, %c0_i32_1 : i32, i32, i32, i32
  }
}

</mosaic_0001>

<llo_original>
// kernel: resnet_block.1
$region0: #{resnet_block.1}
  #allocation0 [shape = 'u32[]', space=smem, size = 0x4, offset = 0x4, fixed_abs, tag = 'smem constant byte address 0x4 - core index']
  #allocation1 [shape = 'u32[144,128]{1,0:T(1,128)}', space=vmem, size = 0x12000, scoped, tag = 'internal scratch']
  %s0 = inlined_call_operand.hbm [shape: f32[2,8,8,32], index: 0, kind: input, shape index: {}]
  %s1 = inlined_call_operand.hbm [shape: f32[1,32], index: 1, kind: input, shape index: {}]
  %s2 = inlined_call_operand.hbm [shape: f32[1,32], index: 2, kind: input, shape index: {}]
  %s3 = inlined_call_operand.hbm [shape: f32[32,32], index: 3, kind: input, shape index: {}]
  %s4 = inlined_call_operand.hbm [shape: bf16[288,64], index: 4, kind: input, shape index: {}]
  %s5 = inlined_call_operand.hbm [shape: f32[1,64], index: 5, kind: input, shape index: {}]
  %s6 = inlined_call_operand.hbm [shape: f32[1,64], index: 6, kind: input, shape index: {}]
  %s7 = inlined_call_operand.hbm [shape: f32[1,64], index: 7, kind: input, shape index: {}]
  %s8 = inlined_call_operand.hbm [shape: f32[64,64], index: 8, kind: input, shape index: {}]
  %s9 = inlined_call_operand.hbm [shape: bf16[576,64], index: 9, kind: input, shape index: {}]
  %s10 = inlined_call_operand.hbm [shape: f32[1,64], index: 10, kind: input, shape index: {}]
  %s11 = inlined_call_operand.hbm [shape: bf16[32,64], index: 11, kind: input, shape index: {}]
  %s12 = inlined_call_operand.hbm [shape: f32[1,64], index: 12, kind: input, shape index: {}]
  %s13 = inlined_call_operand.hbm [shape: f32[2,8,8,64], index: 13, kind: output, shape index: {}]
  %s14 = sld [smem:[#allocation0]]
  $region137: #{resnet_block.1} parent=0
    _
  %s16 = ssub.s32 1, %s14
  %s17 = scalar_select 0, %s16, %s14
  $region1: #{resnet_block.1} parent=0
    #allocation2 [shape = 'u8[65536]{0}', space=vmem, size = 0x10000, scoped, tag = 'input window, operand 0']
    #allocation3 [shape = 's32[2]{0}', space=sflag, size = 0x8, scoped, tag = 'scoped memory for resnet_block.1']
    #allocation4 [shape = 's32[2]{0}', space=sflag, size = 0x8, scoped, tag = 'scoped memory for resnet_block.1']
    #allocation5 [shape = 'u8[512]{0}', space=vmem, size = 0x400, scoped, tag = 'input window, operand 1, single buffered']
    #allocation6 [shape = 's32[1]{0}', space=sflag, size = 0x4, scoped, tag = 'scoped memory for resnet_block.1']
    #allocation7 [shape = 'u8[512]{0}', space=vmem, size = 0x400, scoped, tag = 'input window, operand 2, single buffered']
    #allocation8 [shape = 'u8[16384]{0}', space=vmem, size = 0x4000, scoped, tag = 'input window, operand 3, single buffered']
    #allocation9 [shape = 's32[1]{0}', space=sflag, size = 0x4, scoped, tag = 'scoped memory for resnet_block.1']
    #allocation10 [shape = 'u8[73728]{0}', space=vmem, size = 0x12000, scoped, tag = 'input window, operand 4, single buffered']
    #allocation11 [shape = 'u8[512]{0}', space=vmem, size = 0x400, scoped, tag = 'input window, operand 5, single buffered']
    #allocation12 [shape = 's32[1]{0}', space=sflag, size = 0x4, scoped, tag = 'scoped memory for resnet_block.1']
    #allocation13 [shape = 'u8[512]{0}', space=vmem, size = 0x400, scoped, tag = 'input window, operand 6, single buffered']
    #allocation14 [shape = 'u8[512]{0}', space=vmem, size = 0x400, scoped, tag = 'input window, operand 7, single buffered']
    #allocation15 [shape = 's32[1]{0}', space=sflag, size = 0x4, scoped, tag = 'scoped memory for resnet_block.1']
    #allocation16 [shape = 'u8[32768]{0}', space=vmem, size = 0x8000, scoped, tag = 'input window, operand 8, single buffered']
    #allocation17 [shape = 'u8[147456]{0}', space=vmem, size = 0x24000, scoped, tag = 'input window, operand 9, single buffered']
    #allocation18 [shape = 's32[1]{0}', space=sflag, size = 0x4, scoped, tag = 'scoped memory for resnet_block.1']
    #allocation19 [shape = 'u8[512]{0}', space=vmem, size = 0x400, scoped, tag = 'input window, operand 10, single buffered']
    #allocation20 [shape = 'u8[8192]{0}', space=vmem, size = 0x2000, scoped, tag = 'input window, operand 11, single buffered']
    #allocation21 [shape = 's32[1]{0}', space=sflag, size = 0x4, scoped, tag = 'scoped memory for resnet_block.1']
    #allocation22 [shape = 'u8[512]{0}', space=vmem, size = 0x400, scoped, tag = 'input window, operand 12, single buffered']
    #allocation23 [shape = 'u8[65536]{0}', space=vmem, size = 0x10000, scoped, tag = 'output window, operand 0']
    %18 = vsyncpa [#allocation3], 0
    %s19 = scalar_lea.sflag [#allocation3], 1
    %20 = vsyncpa %s19, 0
    %21 = vsyncpa [#allocation6], 0
    %22 = vsyncpa [#allocation9], 0
    %23 = vsyncpa [#allocation12], 0
    %24 = vsyncpa [#allocation15], 0
    %25 = vsyncpa [#allocation18], 0
    %26 = vsyncpa [#allocation21], 0
    %27 = vsyncpa [#allocation4], 0
    %s28 = scalar_lea.sflag [#allocation4], 1
    %29 = vsyncpa %s28, 0
    loop: start=0, step=1, limit=4
    $region2: #{resnet_block.1} parent=1 // loop_pre_header
      _
    $region3: #{resnet_block.1} parent=1 // loop_header
      %s31 = sphi 0, %s35
      %p32 = scmp.ge.s32.totalorder %s31, 4
      %s41 = sphi 0, %s43
      %s44 = sphi 0, %s41
      %s45 = sphi 0, %s44
      %s61 = sphi 0, %s45
      %s65 = sphi 0, %s65
      %s67 = sphi 0, %s65
      %s68 = sphi 0, %s67
      %s82 = sphi 0, %s68
      %s86 = sphi 0, %s86
      %s88 = sphi 0, %s86
      %s89 = sphi 0, %s88
      %s103 = sphi 0, %s89
      %s107 = sphi 0, %s107
      %s109 = sphi 0, %s107
      %s110 = sphi 0, %s109
      %s124 = sphi 0, %s110
      %s128 = sphi 0, %s128
      %s130 = sphi 0, %s128
      %s131 = sphi 0, %s130
      %s145 = sphi 0, %s131
      %s149 = sphi 0, %s149
      %s151 = sphi 0, %s149
      %s152 = sphi 0, %s151
      %s166 = sphi 0, %s152
      %s170 = sphi 0, %s170
      %s172 = sphi 0, %s170
      %s173 = sphi 0, %s172
      %s187 = sphi 0, %s173
      %s191 = sphi 0, %s191
      %s193 = sphi 0, %s191
      %s194 = sphi 0, %s193
      %s208 = sphi 0, %s194
      %s212 = sphi 0, %s212
      %s214 = sphi 0, %s212
      %s215 = sphi 0, %s214
      %s229 = sphi 0, %s215
      %s233 = sphi 0, %s233
      %s235 = sphi 0, %s233
      %s236 = sphi 0, %s235
      %s250 = sphi 0, %s236
      %s254 = sphi 0, %s254
      %s256 = sphi 0, %s254
      %s257 = sphi 0, %s256
      %s271 = sphi 0, %s257
      %s275 = sphi 0, %s275
      %s277 = sphi 0, %s275
      %s278 = sphi 0, %s277
      %s292 = sphi 0, %s278
      %s296 = sphi 0, %s296
      %s298 = sphi 0, %s296
      %s299 = sphi 0, %s298
      %s313 = sphi 0, %s299
      %s319 = sphi 0, %s321
      %s322 = sphi 0, %s319
      %s323 = sphi 0, %s322
      %s339 = sphi 0, %s323
    $region4: #{resnet_block.1} parent=1 // loop_header_branch
      %34 = sbr.rel (%p32) target = $region8
    $region5: #{resnet_block.1} parent=1 // loop_body
      %s36 = ssub.s32 %s31, 1
      %s37 = ssub.s32 %s31, 2
      %s38 = sadd.s32 %s31, 1
      %s39 = ssub.s32 %s31, %s38
      %p40 = scmp.eq.s32.totalorder %s39, 0
      %s42 = sadd.s32 %s41, 1
      %s43 = scalar_select %p40, %s41, %s42
      %p46 = pneg %p40
      %p47 = scmp.eq.s32.totalorder %s31, 1
      %p48 = por %p46, %p47
      %p49 = scmp.ne.s32.totalorder %s41, %s44
      %p50 = scmp.eq.s32.totalorder %s31, 0
      %p51 = por %p49, %p50
      %p52 = scmp.ne.s32.totalorder %s41, %s44
      %p53 = scmp.eq.s32.totalorder %s36, 1
      %p54 = por %p52, %p53
      %p55 = scmp.ne.s32.totalorder %s44, %s45
      %p56 = scmp.eq.s32.totalorder %s36, 0
      %p57 = por %p55, %p56
      %p58 = scmp.ne.s32.totalorder %s44, %s45
      %p59 = scmp.eq.s32.totalorder %s37, 1
      %p60 = por %p58, %p59
      %p62 = scmp.ne.s32.totalorder %s45, %s61
      %p63 = scmp.eq.s32.totalorder %s37, 0
      %p64 = por %p62, %p63
      %s66 = sadd.s32 %s65, 1
      %p69 = scmp.eq.s32.totalorder %s31, 1
      %p70 = scmp.ne.s32.totalorder %s65, %s67
      %p71 = scmp.eq.s32.totalorder %s31, 0
      %p72 = por %p70, %p71
      %p73 = scmp.ne.s32.totalorder %s65, %s67
      %p74 = scmp.eq.s32.totalorder %s36, 1
      %p75 = por %p73, %p74
      %p76 = scmp.ne.s32.totalorder %s67, %s68
      %p77 = scmp.eq.s32.totalorder %s36, 0
      %p78 = por %p76, %p77
      %p79 = scmp.ne.s32.totalorder %s67, %s68
      %p80 = scmp.eq.s32.totalorder %s37, 1
      %p81 = por %p79, %p80
      %p83 = scmp.ne.s32.totalorder %s68, %s82
      %p84 = scmp.eq.s32.totalorder %s37, 0
      %p85 = por %p83, %p84
      %s87 = sadd.s32 %s86, 1
      %p90 = scmp.eq.s32.totalorder %s31, 1
      %p91 = scmp.ne.s32.totalorder %s86, %s88
      %p92 = scmp.eq.s32.totalorder %s31, 0
      %p93 = por %p91, %p92
      %p94 = scmp.ne.s32.totalorder %s86, %s88
      %p95 = scmp.eq.s32.totalorder %s36, 1
      %p96 = por %p94, %p95
      %p97 = scmp.ne.s32.totalorder %s88, %s89
      %p98 = scmp.eq.s32.totalorder %s36, 0
      %p99 = por %p97, %p98
      %p100 = scmp.ne.s32.totalorder %s88, %s89
      %p101 = scmp.eq.s32.totalorder %s37, 1
      %p102 = por %p100, %p101
      %p104 = scmp.ne.s32.totalorder %s89, %s103
      %p105 = scmp.eq.s32.totalorder %s37, 0
      %p106 = por %p104, %p105
      %s108 = sadd.s32 %s107, 1
      %p111 = scmp.eq.s32.totalorder %s31, 1
      %p112 = scmp.ne.s32.totalorder %s107, %s109
      %p113 = scmp.eq.s32.totalorder %s31, 0
      %p114 = por %p112, %p113
      %p115 = scmp.ne.s32.totalorder %s107, %s109
      %p116 = scmp.eq.s32.totalorder %s36, 1
      %p117 = por %p115, %p116
      %p118 = scmp.ne.s32.totalorder %s109, %s110
      %p119 = scmp.eq.s32.totalorder %s36, 0
      %p120 = por %p118, %p119
      %p121 = scmp.ne.s32.totalorder %s109, %s110
      %p122 = scmp.eq.s32.totalorder %s37, 1
      %p123 = por %p121, %p122
      %p125 = scmp.ne.s32.totalorder %s110, %s124
      %p126 = scmp.eq.s32.totalorder %s37, 0
      %p127 = por %p125, %p126
      %s129 = sadd.s32 %s128, 1
      %p132 = scmp.eq.s32.totalorder %s31, 1
      %p133 = scmp.ne.s32.totalorder %s128, %s130
      %p134 = scmp.eq.s32.totalorder %s31, 0
      %p135 = por %p133, %p134
      %p136 = scmp.ne.s32.totalorder %s128, %s130
      %p137 = scmp.eq.s32.totalorder %s36, 1
      %p138 = por %p136, %p137
      %p139 = scmp.ne.s32.totalorder %s130, %s131
      %p140 = scmp.eq.s32.totalorder %s36, 0
      %p141 = por %p139, %p140
      %p142 = scmp.ne.s32.totalorder %s130, %s131
      %p143 = scmp.eq.s32.totalorder %s37, 1
      %p144 = por %p142, %p143
      %p146 = scmp.ne.s32.totalorder %s131, %s145
      %p147 = scmp.eq.s32.totalorder %s37, 0
      %p148 = por %p146, %p147
      %s150 = sadd.s32 %s149, 1
      %p153 = scmp.eq.s32.totalorder %s31, 1
      %p154 = scmp.ne.s32.totalorder %s149, %s151
      %p155 = scmp.eq.s32.totalorder %s31, 0
      %p156 = por %p154, %p155
      %p157 = scmp.ne.s32.totalorder %s149, %s151
      %p158 = scmp.eq.s32.totalorder %s36, 1
      %p159 = por %p157, %p158
      %p160 = scmp.ne.s32.totalorder %s151, %s152
      %p161 = scmp.eq.s32.totalorder %s36, 0
      %p162 = por %p160, %p161
      %p163 = scmp.ne.s32.totalorder %s151, %s152
      %p164 = scmp.eq.s32.totalorder %s37, 1
      %p165 = por %p163, %p164
      %p167 = scmp.ne.s32.totalorder %s152, %s166
      %p168 = scmp.eq.s32.totalorder %s37, 0
      %p169 = por %p167, %p168
      %s171 = sadd.s32 %s170, 1
      %p174 = scmp.eq.s32.totalorder %s31, 1
      %p175 = scmp.ne.s32.totalorder %s170, %s172
      %p176 = scmp.eq.s32.totalorder %s31, 0
      %p177 = por %p175, %p176
      %p178 = scmp.ne.s32.totalorder %s170, %s172
      %p179 = scmp.eq.s32.totalorder %s36, 1
      %p180 = por %p178, %p179
      %p181 = scmp.ne.s32.totalorder %s172, %s173
      %p182 = scmp.eq.s32.totalorder %s36, 0
      %p183 = por %p181, %p182
      %p184 = scmp.ne.s32.totalorder %s172, %s173
      %p185 = scmp.eq.s32.totalorder %s37, 1
      %p186 = por %p184, %p185
      %p188 = scmp.ne.s32.totalorder %s173, %s187
      %p189 = scmp.eq.s32.totalorder %s37, 0
      %p190 = por %p188, %p189
      %s192 = sadd.s32 %s191, 1
      %p195 = scmp.eq.s32.totalorder %s31, 1
      %p196 = scmp.ne.s32.totalorder %s191, %s193
      %p197 = scmp.eq.s32.totalorder %s31, 0
      %p198 = por %p196, %p197
      %p199 = scmp.ne.s32.totalorder %s191, %s193
      %p200 = scmp.eq.s32.totalorder %s36, 1
      %p201 = por %p199, %p200
      %p202 = scmp.ne.s32.totalorder %s193, %s194
      %p203 = scmp.eq.s32.totalorder %s36, 0
      %p204 = por %p202, %p203
      %p205 = scmp.ne.s32.totalorder %s193, %s194
      %p206 = scmp.eq.s32.totalorder %s37, 1
      %p207 = por %p205, %p206
      %p209 = scmp.ne.s32.totalorder %s194, %s208
      %p210 = scmp.eq.s32.totalorder %s37, 0
      %p211 = por %p209, %p210
      %s213 = sadd.s32 %s212, 1
      %p216 = scmp.eq.s32.totalorder %s31, 1
      %p217 = scmp.ne.s32.totalorder %s212, %s214
      %p218 = scmp.eq.s32.totalorder %s31, 0
      %p219 = por %p217, %p218
      %p220 = scmp.ne.s32.totalorder %s212, %s214
      %p221 = scmp.eq.s32.totalorder %s36, 1
      %p222 = por %p220, %p221
      %p223 = scmp.ne.s32.totalorder %s214, %s215
      %p224 = scmp.eq.s32.totalorder %s36, 0
      %p225 = por %p223, %p224
      %p226 = scmp.ne.s32.totalorder %s214, %s215
      %p227 = scmp.eq.s32.totalorder %s37, 1
      %p228 = por %p226, %p227
      %p230 = scmp.ne.s32.totalorder %s215, %s229
      %p231 = scmp.eq.s32.totalorder %s37, 0
      %p232 = por %p230, %p231
      %s234 = sadd.s32 %s233, 1
      %p237 = scmp.eq.s32.totalorder %s31, 1
      %p238 = scmp.ne.s32.totalorder %s233, %s235
      %p239 = scmp.eq.s32.totalorder %s31, 0
      %p240 = por %p238, %p239
      %p241 = scmp.ne.s32.totalorder %s233, %s235
      %p242 = scmp.eq.s32.totalorder %s36, 1
      %p243 = por %p241, %p242
      %p244 = scmp.ne.s32.totalorder %s235, %s236
      %p245 = scmp.eq.s32.totalorder %s36, 0
      %p246 = por %p244, %p245
      %p247 = scmp.ne.s32.totalorder %s235, %s236
      %p248 = scmp.eq.s32.totalorder %s37, 1
      %p249 = por %p247, %p248
      %p251 = scmp.ne.s32.totalorder %s236, %s250
      %p252 = scmp.eq.s32.totalorder %s37, 0
      %p253 = por %p251, %p252
      %s255 = sadd.s32 %s254, 1
      %p258 = scmp.eq.s32.totalorder %s31, 1
      %p259 = scmp.ne.s32.totalorder %s254, %s256
      %p260 = scmp.eq.s32.totalorder %s31, 0
      %p261 = por %p259, %p260
      %p262 = scmp.ne.s32.totalorder %s254, %s256
      %p263 = scmp.eq.s32.totalorder %s36, 1
      %p264 = por %p262, %p263
      %p265 = scmp.ne.s32.totalorder %s256, %s257
      %p266 = scmp.eq.s32.totalorder %s36, 0
      %p267 = por %p265, %p266
      %p268 = scmp.ne.s32.totalorder %s256, %s257
      %p269 = scmp.eq.s32.totalorder %s37, 1
      %p270 = por %p268, %p269
      %p272 = scmp.ne.s32.totalorder %s257, %s271
      %p273 = scmp.eq.s32.totalorder %s37, 0
      %p274 = por %p272, %p273
      %s276 = sadd.s32 %s275, 1
      %p279 = scmp.eq.s32.totalorder %s31, 1
      %p280 = scmp.ne.s32.totalorder %s275, %s277
      %p281 = scmp.eq.s32.totalorder %s31, 0
      %p282 = por %p280, %p281
      %p283 = scmp.ne.s32.totalorder %s275, %s277
      %p284 = scmp.eq.s32.totalorder %s36, 1
      %p285 = por %p283, %p284
      %p286 = scmp.ne.s32.totalorder %s277, %s278
      %p287 = scmp.eq.s32.totalorder %s36, 0
      %p288 = por %p286, %p287
      %p289 = scmp.ne.s32.totalorder %s277, %s278
      %p290 = scmp.eq.s32.totalorder %s37, 1
      %p291 = por %p289, %p290
      %p293 = scmp.ne.s32.totalorder %s278, %s292
      %p294 = scmp.eq.s32.totalorder %s37, 0
      %p295 = por %p293, %p294
      %s297 = sadd.s32 %s296, 1
      %p300 = scmp.eq.s32.totalorder %s31, 1
      %p301 = scmp.ne.s32.totalorder %s296, %s298
      %p302 = scmp.eq.s32.totalorder %s31, 0
      %p303 = por %p301, %p302
      %p304 = scmp.ne.s32.totalorder %s296, %s298
      %p305 = scmp.eq.s32.totalorder %s36, 1
      %p306 = por %p304, %p305
      %p307 = scmp.ne.s32.totalorder %s298, %s299
      %p308 = scmp.eq.s32.totalorder %s36, 0
      %p309 = por %p307, %p308
      %p310 = scmp.ne.s32.totalorder %s298, %s299
      %p311 = scmp.eq.s32.totalorder %s37, 1
      %p312 = por %p310, %p311
      %p314 = scmp.ne.s32.totalorder %s299, %s313
      %p315 = scmp.eq.s32.totalorder %s37, 0
      %p316 = por %p314, %p315
      %s317 = ssub.s32 %s31, %s38
      %p318 = scmp.eq.s32.totalorder %s317, 0
      %s320 = sadd.s32 %s319, 1
      %s321 = scalar_select %p318, %s319, %s320
      %p324 = pneg %p318
      %p325 = scmp.eq.s32.totalorder %s31, 1
      %p326 = por %p324, %p325
      %p327 = scmp.ne.s32.totalorder %s319, %s322
      %p328 = scmp.eq.s32.totalorder %s31, 0
      %p329 = por %p327, %p328
      %p330 = scmp.ne.s32.totalorder %s319, %s322
      %p331 = scmp.eq.s32.totalorder %s36, 1
      %p332 = por %p330, %p331
      %p333 = scmp.ne.s32.totalorder %s322, %s323
      %p334 = scmp.eq.s32.totalorder %s36, 0
      %p335 = por %p333, %p334
      %p336 = scmp.ne.s32.totalorder %s322, %s323
      %p337 = scmp.eq.s32.totalorder %s37, 1
      %p338 = por %p336, %p337
      %p340 = scmp.ne.s32.totalorder %s323, %s339
      %p341 = scmp.eq.s32.totalorder %s37, 0
      %p342 = por %p340, %p341
      %p343 = scmp.le.s32.totalorder 1, %s31
      %p344 = scmp.lt.s32.totalorder %s31, 3
      %p345 = pnand %p343, %p344
      %p346 = pneg %p345
      // Predicated region
      $region9: #{resnet_block.1} parent=5 // pred_check
        _
      $region10: #{resnet_block.1} parent=5 // pred_check_branch
        %348 = sbr.rel (%p345) target = $region12
      $region11: #{resnet_block.1} parent=5 // pred_region
        %s349 = ssub.s32 %s31, 1
        // Predicated region
        $region13: #{resnet_block.1} parent=11 // pred_check
          %p350 = pneg %p78
        $region14: #{resnet_block.1} parent=11 // pred_check_branch
          %352 = sbr.rel (%p350) target = $region16
        $region15: #{resnet_block.1} parent=11 // pred_region
          %s354 = ssub.s32 16, 16
          %355 = vsyncadd [#allocation6], %s354
          %s357 = sshll.u32 [#allocation5], 4
          %s358 = int_to_ptr.vmem [resolvable:$true] %s357
          %360 = dma.hbm_to_vmem [thread:$0]  %s1, 16, %s358, [#allocation6]
        $region16: #{resnet_block.1} parent=11 // pred_fallthru
          _
        // Predicated region
        $region17: #{resnet_block.1} parent=11 // pred_check
          %p361 = pneg %p99
        $region18: #{resnet_block.1} parent=11 // pred_check_branch
          %363 = sbr.rel (%p361) target = $region20
        $region19: #{resnet_block.1} parent=11 // pred_region
          %s365 = ssub.s32 16, 16
          %366 = vsyncadd [#allocation6], %s365
          %s368 = sshll.u32 [#allocation7], 4
          %s369 = int_to_ptr.vmem [resolvable:$true] %s368
          %371 = dma.hbm_to_vmem [thread:$0]  %s2, 16, %s369, [#allocation6]
        $region20: #{resnet_block.1} parent=11 // pred_fallthru
          _
        // Predicated region
        $region21: #{resnet_block.1} parent=11 // pred_check
          %p372 = pneg %p120
        $region22: #{resnet_block.1} parent=11 // pred_check_branch
          %374 = sbr.rel (%p372) target = $region24
        $region23: #{resnet_block.1} parent=11 // pred_region
          %s376 = ssub.s32 512, 512
          %377 = vsyncadd [#allocation9], %s376
          %s378 = sshll.u32 [#allocation8], 4
          %s379 = int_to_ptr.vmem [resolvable:$true] %s378
          %384 = dma.hbm_to_vmem [thread:$0]  %s3, 512, %s379, [#allocation9], 128, 128, 8
        $region24: #{resnet_block.1} parent=11 // pred_fallthru
          _
        // Predicated region
        $region25: #{resnet_block.1} parent=11 // pred_check
          %p385 = pneg %p141
        $region26: #{resnet_block.1} parent=11 // pred_check_branch
          %387 = sbr.rel (%p385) target = $region28
        $region27: #{resnet_block.1} parent=11 // pred_region
          %s389 = ssub.s32 2304, 2304
          %390 = vsyncadd [#allocation9], %s389
          %s391 = sshll.u32 [#allocation10], 4
          %s392 = int_to_ptr.vmem [resolvable:$true] %s391
          %397 = dma.hbm_to_vmem [thread:$0]  %s4, 2304, %s392, [#allocation9], 64, 64, 4
        $region28: #{resnet_block.1} parent=11 // pred_fallthru
          _
        // Predicated region
        $region29: #{resnet_block.1} parent=11 // pred_check
          %p398 = pneg %p162
        $region30: #{resnet_block.1} parent=11 // pred_check_branch
          %400 = sbr.rel (%p398) target = $region32
        $region31: #{resnet_block.1} parent=11 // pred_region
          %s402 = ssub.s32 16, 16
          %403 = vsyncadd [#allocation12], %s402
          %s405 = sshll.u32 [#allocation11], 4
          %s406 = int_to_ptr.vmem [resolvable:$true] %s405
          %408 = dma.hbm_to_vmem [thread:$0]  %s5, 16, %s406, [#allocation12]
        $region32: #{resnet_block.1} parent=11 // pred_fallthru
          _
        // Predicated region
        $region33: #{resnet_block.1} parent=11 // pred_check
          %p409 = pneg %p183
        $region34: #{resnet_block.1} parent=11 // pred_check_branch
          %411 = sbr.rel (%p409) target = $region36
        $region35: #{resnet_block.1} parent=11 // pred_region
          %s413 = ssub.s32 16, 16
          %414 = vsyncadd [#allocation12], %s413
          %s416 = sshll.u32 [#allocation13], 4
          %s417 = int_to_ptr.vmem [resolvable:$true] %s416
          %419 = dma.hbm_to_vmem [thread:$0]  %s6, 16, %s417, [#allocation12]
        $region36: #{resnet_block.1} parent=11 // pred_fallthru
          _
        // Predicated region
        $region37: #{resnet_block.1} parent=11 // pred_check
          %p420 = pneg %p204
        $region38: #{resnet_block.1} parent=11 // pred_check_branch
          %422 = sbr.rel (%p420) target = $region40
        $region39: #{resnet_block.1} parent=11 // pred_region
          %s424 = ssub.s32 16, 16
          %425 = vsyncadd [#allocation15], %s424
          %s427 = sshll.u32 [#allocation14], 4
          %s428 = int_to_ptr.vmem [resolvable:$true] %s427
          %430 = dma.hbm_to_vmem [thread:$0]  %s7, 16, %s428, [#allocation15]
        $region40: #{resnet_block.1} parent=11 // pred_fallthru
          _
        // Predicated region
        $region41: #{resnet_block.1} parent=11 // pred_check
          %p431 = pneg %p225
        $region42: #{resnet_block.1} parent=11 // pred_check_branch
          %433 = sbr.rel (%p431) target = $region44
        $region43: #{resnet_block.1} parent=11 // pred_region
          %s435 = ssub.s32 1024, 1024
          %436 = vsyncadd [#allocation15], %s435
          %s437 = sshll.u32 [#allocation16], 4
          %s438 = int_to_ptr.vmem [resolvable:$true] %s437
          %443 = dma.hbm_to_vmem [thread:$0]  %s8, 1024, %s438, [#allocation15], 128, 128, 8
        $region44: #{resnet_block.1} parent=11 // pred_fallthru
          _
        // Predicated region
        $region45: #{resnet_block.1} parent=11 // pred_check
          %p444 = pneg %p246
        $region46: #{resnet_block.1} parent=11 // pred_check_branch
          %446 = sbr.rel (%p444) target = $region48
        $region47: #{resnet_block.1} parent=11 // pred_region
          %s448 = ssub.s32 4608, 4608
          %449 = vsyncadd [#allocation18], %s448
          %s450 = sshll.u32 [#allocation17], 4
          %s451 = int_to_ptr.vmem [resolvable:$true] %s450
          %456 = dma.hbm_to_vmem [thread:$0]  %s9, 4608, %s451, [#allocation18], 64, 64, 4
        $region48: #{resnet_block.1} parent=11 // pred_fallthru
          _
        // Predicated region
        $region49: #{resnet_block.1} parent=11 // pred_check
          %p457 = pneg %p267
        $region50: #{resnet_block.1} parent=11 // pred_check_branch
          %459 = sbr.rel (%p457) target = $region52
        $region51: #{resnet_block.1} parent=11 // pred_region
          %s461 = ssub.s32 16, 16
          %462 = vsyncadd [#allocation18], %s461
          %s464 = sshll.u32 [#allocation19], 4
          %s465 = int_to_ptr.vmem [resolvable:$true] %s464
          %467 = dma.hbm_to_vmem [thread:$0]  %s10, 16, %s465, [#allocation18]
        $region52: #{resnet_block.1} parent=11 // pred_fallthru
          _
        // Predicated region
        $region53: #{resnet_block.1} parent=11 // pred_check
          %p468 = pneg %p288
        $region54: #{resnet_block.1} parent=11 // pred_check_branch
          %470 = sbr.rel (%p468) target = $region56
        $region55: #{resnet_block.1} parent=11 // pred_region
          %s472 = ssub.s32 256, 256
          %473 = vsyncadd [#allocation21], %s472
          %s474 = sshll.u32 [#allocation20], 4
          %s475 = int_to_ptr.vmem [resolvable:$true] %s474
          %480 = dma.hbm_to_vmem [thread:$0]  %s11, 256, %s475, [#allocation21], 64, 64, 4
        $region56: #{resnet_block.1} parent=11 // pred_fallthru
          _
        // Predicated region
        $region57: #{resnet_block.1} parent=11 // pred_check
          %p481 = pneg %p309
        $region58: #{resnet_block.1} parent=11 // pred_check_branch
          %483 = sbr.rel (%p481) target = $region60
        $region59: #{resnet_block.1} parent=11 // pred_region
          %s485 = ssub.s32 16, 16
          %486 = vsyncadd [#allocation21], %s485
          %s488 = sshll.u32 [#allocation22], 4
          %s489 = int_to_ptr.vmem [resolvable:$true] %s488
          %491 = dma.hbm_to_vmem [thread:$0]  %s12, 16, %s489, [#allocation21]
        $region60: #{resnet_block.1} parent=11 // pred_fallthru
          _
      $region12: #{resnet_block.1} parent=5 // pred_fallthru
        _
      %p492 = scmp.lt.s32.totalorder %s31, 2
      // Predicated region
      $region61: #{resnet_block.1} parent=5 // pred_check
        %p493 = pneg %p492
      $region62: #{resnet_block.1} parent=5 // pred_check_branch
        %495 = sbr.rel (%p493) target = $region64
      $region63: #{resnet_block.1} parent=5 // pred_region
        // Predicated region
        $region65: #{resnet_block.1} parent=63 // pred_check
          %p496 = pneg %p51
        $region66: #{resnet_block.1} parent=63 // pred_check_branch
          %498 = sbr.rel (%p496) target = $region68
        $region67: #{resnet_block.1} parent=63 // pred_region
          %s499 = sand.u32 %s41, 1
          %s500 = scalar_lea.sflag [#allocation3], %s499
          %s501 = sand.u32 %s41, 1
          %s502 = smul.addr %s501, 64
          %s503 = scalar_lea.vmem [#allocation2], %s502
          %s505 = ssub.s32 1024, 1024
          %506 = vsyncadd %s500, %s505
          %s507 = smul.addr %s31, 8
          %s508 = smul.addr %s507, 128
          %s509 = scalar_lea.hbm %s0, %s508
          %s510 = sshll.u32 %s503, 4
          %s511 = int_to_ptr.vmem [resolvable:$true] %s510
          %516 = dma.hbm_to_vmem [thread:$0]  %s509, 1024, %s511, %s500, 128, 128, 8
        $region68: #{resnet_block.1} parent=63 // pred_fallthru
          _
      $region64: #{resnet_block.1} parent=5 // pred_fallthru
        _
      %p517 = scmp.le.s32.totalorder 1, %s31
      %p518 = scmp.lt.s32.totalorder %s31, 3
      %p519 = pnand %p517, %p518
      %p520 = pneg %p519
      // Predicated region
      $region69: #{resnet_block.1} parent=5 // pred_check
        _
      $region70: #{resnet_block.1} parent=5 // pred_check_branch
        %522 = sbr.rel (%p519) target = $region72
      $region71: #{resnet_block.1} parent=5 // pred_region
        %s523 = ssub.s32 %s31, 1
        %s524 = sand.u32 %s44, 1
        %s525 = scalar_lea.sflag [#allocation3], %s524
        %s526 = sand.u32 %s44, 1
        %s527 = smul.addr %s526, 64
        %s528 = scalar_lea.vmem [#allocation2], %s527
        // Predicated region
        $region73: #{resnet_block.1} parent=71 // pred_check
          %p529 = pneg %p57
        $region74: #{resnet_block.1} parent=71 // pred_check_branch
          %531 = sbr.rel (%p529) target = $region76
        $region75: #{resnet_block.1} parent=71 // pred_region
          %532 = dma.done %s525, 1024
        $region76: #{resnet_block.1} parent=71 // pred_fallthru
          _
        // Predicated region
        $region77: #{resnet_block.1} parent=71 // pred_check
          %p533 = pneg %p78
        $region78: #{resnet_block.1} parent=71 // pred_check_branch
          %535 = sbr.rel (%p533) target = $region80
        $region79: #{resnet_block.1} parent=71 // pred_region
          %536 = dma.done [#allocation6], 16
        $region80: #{resnet_block.1} parent=71 // pred_fallthru
          _
        // Predicated region
        $region81: #{resnet_block.1} parent=71 // pred_check
          %p537 = pneg %p99
        $region82: #{resnet_block.1} parent=71 // pred_check_branch
          %539 = sbr.rel (%p537) target = $region84
        $region83: #{resnet_block.1} parent=71 // pred_region
          %540 = dma.done [#allocation6], 16
        $region84: #{resnet_block.1} parent=71 // pred_fallthru
          _
        // Predicated region
        $region85: #{resnet_block.1} parent=71 // pred_check
          %p541 = pneg %p120
        $region86: #{resnet_block.1} parent=71 // pred_check_branch
          %543 = sbr.rel (%p541) target = $region88
        $region87: #{resnet_block.1} parent=71 // pred_region
          %544 = dma.done [#allocation9], 512
        $region88: #{resnet_block.1} parent=71 // pred_fallthru
          _
        // Predicated region
        $region89: #{resnet_block.1} parent=71 // pred_check
          %p545 = pneg %p141
        $region90: #{resnet_block.1} parent=71 // pred_check_branch
          %547 = sbr.rel (%p545) target = $region92
        $region91: #{resnet_block.1} parent=71 // pred_region
          %548 = dma.done [#allocation9], 2304
        $region92: #{resnet_block.1} parent=71 // pred_fallthru
          _
        // Predicated region
        $region93: #{resnet_block.1} parent=71 // pred_check
          %p549 = pneg %p162
        $region94: #{resnet_block.1} parent=71 // pred_check_branch
          %551 = sbr.rel (%p549) target = $region96
        $region95: #{resnet_block.1} parent=71 // pred_region
          %552 = dma.done [#allocation12], 16
        $region96: #{resnet_block.1} parent=71 // pred_fallthru
          _
        // Predicated region
        $region97: #{resnet_block.1} parent=71 // pred_check
          %p553 = pneg %p183
        $region98: #{resnet_block.1} parent=71 // pred_check_branch
          %555 = sbr.rel (%p553) target = $region100
        $region99: #{resnet_block.1} parent=71 // pred_region
          %556 = dma.done [#allocation12], 16
        $region100: #{resnet_block.1} parent=71 // pred_fallthru
          _
        // Predicated region
        $region101: #{resnet_block.1} parent=71 // pred_check
          %p557 = pneg %p204
        $region102: #{resnet_block.1} parent=71 // pred_check_branch
          %559 = sbr.rel (%p557) target = $region104
        $region103: #{resnet_block.1} parent=71 // pred_region
          %560 = dma.done [#allocation15], 16
        $region104: #{resnet_block.1} parent=71 // pred_fallthru
          _
        // Predicated region
        $region105: #{resnet_block.1} parent=71 // pred_check
          %p561 = pneg %p225
        $region106: #{resnet_block.1} parent=71 // pred_check_branch
          %563 = sbr.rel (%p561) target = $region108
        $region107: #{resnet_block.1} parent=71 // pred_region
          %564 = dma.done [#allocation15], 1024
        $region108: #{resnet_block.1} parent=71 // pred_fallthru
          _
        // Predicated region
        $region109: #{resnet_block.1} parent=71 // pred_check
          %p565 = pneg %p246
        $region110: #{resnet_block.1} parent=71 // pred_check_branch
          %567 = sbr.rel (%p565) target = $region112
        $region111: #{resnet_block.1} parent=71 // pred_region
          %568 = dma.done [#allocation18], 4608
        $region112: #{resnet_block.1} parent=71 // pred_fallthru
          _
        // Predicated region
        $region113: #{resnet_block.1} parent=71 // pred_check
          %p569 = pneg %p267
        $region114: #{resnet_block.1} parent=71 // pred_check_branch
          %571 = sbr.rel (%p569) target = $region116
        $region115: #{resnet_block.1} parent=71 // pred_region
          %572 = dma.done [#allocation18], 16
        $region116: #{resnet_block.1} parent=71 // pred_fallthru
          _
        // Predicated region
        $region117: #{resnet_block.1} parent=71 // pred_check
          %p573 = pneg %p288
        $region118: #{resnet_block.1} parent=71 // pred_check_branch
          %575 = sbr.rel (%p573) target = $region120
        $region119: #{resnet_block.1} parent=71 // pred_region
          %576 = dma.done [#allocation21], 256
        $region120: #{resnet_block.1} parent=71 // pred_fallthru
          _
        // Predicated region
        $region121: #{resnet_block.1} parent=71 // pred_check
          %p577 = pneg %p309
        $region122: #{resnet_block.1} parent=71 // pred_check_branch
          %579 = sbr.rel (%p577) target = $region124
        $region123: #{resnet_block.1} parent=71 // pred_region
          %580 = dma.done [#allocation21], 16
        $region124: #{resnet_block.1} parent=71 // pred_fallthru
          _
        %s581 = sand.u32 %s44, 1
        %s582 = scalar_lea.sflag [#allocation3], %s581
        %s583 = sand.u32 %s44, 1
        %s584 = smul.addr %s583, 64
        %s585 = scalar_lea.vmem [#allocation2], %s584
        %p586 = pneg %p57
        %p587 = pneg %p54
        %p588 = pneg %p78
        %p589 = pneg %p75
        %p590 = pneg %p99
        %p591 = pneg %p96
        %p592 = pneg %p120
        %p593 = pneg %p117
        %p594 = pneg %p141
        %p595 = pneg %p138
        %p596 = pneg %p162
        %p597 = pneg %p159
        %p598 = pneg %p183
        %p599 = pneg %p180
        %p600 = pneg %p204
        %p601 = pneg %p201
        %p602 = pneg %p225
        %p603 = pneg %p222
        %p604 = pneg %p246
        %p605 = pneg %p243
        %p606 = pneg %p267
        %p607 = pneg %p264
        %p608 = pneg %p288
        %p609 = pneg %p285
        %p610 = pneg %p309
        %p611 = pneg %p306
        %p612 = pneg %p335
        %p613 = pneg %p332
        %s614 = sand.u32 %s322, 1
        %s615 = scalar_lea.sflag [#allocation4], %s614
        %s616 = sand.u32 %s322, 1
        %s617 = smul.addr %s616, 64
        %s618 = scalar_lea.vmem [#allocation23], %s617
        %v620 = vld [vmem:[%s528] sm:$0xff]
        %v621 = vld [vmem:[%s528 + $0x8] sm:$0xff]
        %v622 = vld [vmem:[%s528 + $0x10] sm:$0xff]
        %v623 = vld [vmem:[%s528 + $0x18] sm:$0xff]
        %v624 = vld [vmem:[%s528 + $0x20] sm:$0xff]
        %v625 = vld [vmem:[%s528 + $0x28] sm:$0xff]
        %v626 = vld [vmem:[%s528 + $0x30] sm:$0xff]
        %v627 = vld [vmem:[%s528 + $0x38] sm:$0xff]
        %v628 = vld [vmem:[#allocation5] sm:$0x1]
        %v629 = vld [vmem:[#allocation7] sm:$0x1]
        %v630 = vld [vmem:[#allocation8] sm:$0xff]
        %v631 = vld [vmem:[#allocation8 + $0x8] sm:$0xff]
        %v632 = vld [vmem:[#allocation8 + $0x10] sm:$0xff]
        %v633 = vld [vmem:[#allocation8 + $0x18] sm:$0xff]
        %vm634 = vcmask 523264
        %v636 = vsel %vm634, 1.0, 0
        %638 = vmatprep.subr.mxu0 0.0
        %639 = vmatpush1.msra.mxu0 %v620
        %640 = vmatprep.subr.mxu0 0.0
        %641 = vmatpush1.msra.mxu0 %v621
        %642 = vmatprep.subr.mxu0 0.0
        %643 = vmatpush1.msra.mxu0 %v622
        %644 = vmatprep.subr.mxu0 0.0
        %645 = vmatpush1.msra.mxu0 %v623
        %646 = vmatprep.subr.mxu0 0.0
        %647 = vmatpush1.msra.mxu0 %v624
        %648 = vmatprep.subr.mxu0 0.0
        %649 = vmatpush1.msra.mxu0 %v625
        %650 = vmatprep.subr.mxu0 0.0
        %651 = vmatpush1.msra.mxu0 %v626
        %652 = vmatprep.subr.mxu0 0.0
        %653 = vmatpush1.msra.mxu0 %v627
        %654 = vmatprep.subr.mxu0 0.0
        %655 = vmatpush1.msra.mxu0 0.0
        %656 = vmatprep.subr.mxu0 0.0
        %657 = vmatpush1.msra.mxu0 0.0
        %658 = vmatprep.subr.mxu0 0.0
        %659 = vmatpush1.msra.mxu0 0.0
        %660 = vmatprep.subr.mxu0 0.0
        %661 = vmatpush1.msra.mxu0 0.0
        %662 = vmatprep.subr.mxu0 0.0
        %663 = vmatpush1.msra.mxu0 0.0
        %664 = vmatprep.subr.mxu0 0.0
        %665 = vmatpush1.msra.mxu0 0.0
        %666 = vmatprep.subr.mxu0 0.0
        %667 = vmatpush1.msra.mxu0 0.0
        %668 = vmatprep.subr.mxu0 0.0
        %669 = vmatpush1.msra.mxu0 0.0
        %670 = vmatprep.subr.mxu0 0.0
        %671 = vmatpush1.msra.mxu0 0.0
        %672 = vmatprep.subr.mxu0 0.0
        %673 = vmatpush1.msra.mxu0 0.0
        %674 = vmatprep.subr.mxu0 0.0
        %675 = vmatpush1.msra.mxu0 0.0
        %676 = vmatprep.subr.mxu0 0.0
        %677 = vmatpush1.msra.mxu0 0.0
        %678 = vmatprep.subr.mxu0 0.0
        %679 = vmatpush1.msra.mxu0 0.0
        %680 = vmatprep.subr.mxu0 0.0
        %681 = vmatpush1.msra.mxu0 0.0
        %682 = vmatprep.subr.mxu0 0.0
        %683 = vmatpush1.msra.mxu0 0.0
        %684 = vmatprep.subr.mxu0 0.0
        %685 = vmatpush1.msra.mxu0 0.0
        %686 = vmatprep.subr.mxu0 0.0
        %687 = vmatpush1.msra.mxu0 0.0
        %688 = vmatprep.subr.mxu0 0.0
        %689 = vmatpush1.msra.mxu0 0.0
        %690 = vmatprep.subr.mxu0 0.0
        %691 = vmatpush1.msra.mxu0 0.0
        %692 = vmatprep.subr.mxu0 0.0
        %693 = vmatpush1.msra.mxu0 0.0
        %694 = vmatprep.subr.mxu0 0.0
        %695 = vmatpush1.msra.mxu0 0.0
        %696 = vmatprep.subr.mxu0 0.0
        %697 = vmatpush1.msra.mxu0 0.0
        %698 = vmatprep.subr.mxu0 0.0
        %699 = vmatpush1.msra.mxu0 0.0
        %700 = vmatprep.subr.mxu0 0.0
        %701 = vmatpush1.msra.mxu0 0.0
        %702 = vmatprep.mubr.f32.mxu0 0.0
        %703 = vmatmul.mubr.f32.gmra.mrb[0].mxu0 %v636
        %v704 = vpop.f32.mrb[0].mxu0
        %v705 = vadd.f32 0.0, %v704
        %v706 = vpop.f32.mrb[0].mxu0
        %707 = vdwg.mxu0
        %vm708 = vcmask 261120
        %v710 = vsel %vm708, %v705, 0
        %712 = vmatprep.subr.mxu0 0.0
        %713 = vmatpush1.msra.mxu0 %v630
        %714 = vmatprep.subr.mxu0 0.0
        %715 = vmatpush1.msra.mxu0 %v631
        %716 = vmatprep.subr.mxu0 0.0
        %717 = vmatpush1.msra.mxu0 %v632
        %718 = vmatprep.subr.mxu0 0.0
        %719 = vmatpush1.msra.mxu0 %v633
        %720 = vmatprep.subr.mxu0 0.0
        %721 = vmatpush1.msra.mxu0 0.0
        %722 = vmatprep.subr.mxu0 0.0
        %723 = vmatpush1.msra.mxu0 0.0
        %724 = vmatprep.subr.mxu0 0.0
        %725 = vmatpush1.msra.mxu0 0.0
        %726 = vmatprep.subr.mxu0 0.0
        %727 = vmatpush1.msra.mxu0 0.0
        %728 = vmatprep.subr.mxu0 0.0
        %729 = vmatpush1.msra.mxu0 0.0
        %730 = vmatprep.subr.mxu0 0.0
        %731 = vmatpush1.msra.mxu0 0.0
        %732 = vmatprep.subr.mxu0 0.0
        %733 = vmatpush1.msra.mxu0 0.0
        %734 = vmatprep.subr.mxu0 0.0
        %735 = vmatpush1.msra.mxu0 0.0
        %736 = vmatprep.subr.mxu0 0.0
        %737 = vmatpush1.msra.mxu0 0.0
        %738 = vmatprep.subr.mxu0 0.0
        %739 = vmatpush1.msra.mxu0 0.0
        %740 = vmatprep.subr.mxu0 0.0
        %741 = vmatpush1.msra.mxu0 0.0
        %742 = vmatprep.subr.mxu0 0.0
        %743 = vmatpush1.msra.mxu0 0.0
        %744 = vmatprep.subr.mxu0 0.0
        %745 = vmatpush1.msra.mxu0 0.0
        %746 = vmatprep.subr.mxu0 0.0
        %747 = vmatpush1.msra.mxu0 0.0
        %748 = vmatprep.subr.mxu0 0.0
        %749 = vmatpush1.msra.mxu0 0.0
        %750 = vmatprep.subr.mxu0 0.0
        %751 = vmatpush1.msra.mxu0 0.0
        %752 = vmatprep.subr.mxu0 0.0
        %753 = vmatpush1.msra.mxu0 0.0
        %754 = vmatprep.subr.mxu0 0.0
        %755 = vmatpush1.msra.mxu0 0.0
        %756 = vmatprep.subr.mxu0 0.0
        %757 = vmatpush1.msra.mxu0 0.0
        %758 = vmatprep.subr.mxu0 0.0
        %759 = vmatpush1.msra.mxu0 0.0
        %760 = vmatprep.subr.mxu0 0.0
        %761 = vmatpush1.msra.mxu0 0.0
        %762 = vmatprep.subr.mxu0 0.0
        %763 = vmatpush1.msra.mxu0 0.0
        %764 = vmatprep.subr.mxu0 0.0
        %765 = vmatpush1.msra.mxu0 0.0
        %766 = vmatprep.subr.mxu0 0.0
        %767 = vmatpush1.msra.mxu0 0.0
        %768 = vmatprep.subr.mxu0 0.0
        %769 = vmatpush1.msra.mxu0 0.0
        %770 = vmatprep.subr.mxu0 0.0
        %771 = vmatpush1.msra.mxu0 0.0
        %772 = vmatprep.subr.mxu0 0.0
        %773 = vmatpush1.msra.mxu0 0.0
        %774 = vmatprep.subr.mxu0 0.0
        %775 = vmatpush1.msra.mxu0 0.0
        %776 = vmatprep.mubr.f32.mxu0 0.0
        %777 = vmatmul.mubr.f32.gmra.mrb[0].mxu0 %v710
        %v778 = vpop.f32.mrb[0].mxu0
        %v779 = vadd.f32 0.0, %v778
        %v780 = vpop.f32.mrb[0].mxu0
        %781 = vdwg.mxu0
        %v782 = vlaneseq
        %v783 = vshrl.u32 %v782, 7
        %v784 = vsub.s32 0, %v783
        %v785 = vrot.slane %v779, %v784
        %v786 = vsub.f32 %v620, %v785
        %v787 = vsub.f32 %v621, %v785
        %v788 = vsub.f32 %v622, %v785
        %v789 = vsub.f32 %v623, %v785
        %v790 = vsub.f32 %v624, %v785
        %v791 = vsub.f32 %v625, %v785
        %v792 = vsub.f32 %v626, %v785
        %v793 = vsub.f32 %v627, %v785
        %v794 = vmul.f32 %v786, %v786
        %v795 = vmul.f32 %v787, %v787
        %v796 = vmul.f32 %v788, %v788
        %v797 = vmul.f32 %v789, %v789
        %v798 = vmul.f32 %v790, %v790
        %v799 = vmul.f32 %v791, %v791
        %v800 = vmul.f32 %v792, %v792
        %v801 = vmul.f32 %v793, %v793
        %802 = vmatprep.subr.mxu0 0.0
        %803 = vmatpush1.msra.mxu0 %v794
        %804 = vmatprep.subr.mxu0 0.0
        %805 = vmatpush1.msra.mxu0 %v795
        %806 = vmatprep.subr.mxu0 0.0
        %807 = vmatpush1.msra.mxu0 %v796
        %808 = vmatprep.subr.mxu0 0.0
        %809 = vmatpush1.msra.mxu0 %v797
        %810 = vmatprep.subr.mxu0 0.0
        %811 = vmatpush1.msra.mxu0 %v798
        %812 = vmatprep.subr.mxu0 0.0
        %813 = vmatpush1.msra.mxu0 %v799
        %814 = vmatprep.subr.mxu0 0.0
        %815 = vmatpush1.msra.mxu0 %v800
        %816 = vmatprep.subr.mxu0 0.0
        %817 = vmatpush1.msra.mxu0 %v801
        %818 = vmatprep.subr.mxu0 0.0
        %819 = vmatpush1.msra.mxu0 0.0
        %820 = vmatprep.subr.mxu0 0.0
        %821 = vmatpush1.msra.mxu0 0.0
        %822 = vmatprep.subr.mxu0 0.0
        %823 = vmatpush1.msra.mxu0 0.0
        %824 = vmatprep.subr.mxu0 0.0
        %825 = vmatpush1.msra.mxu0 0.0
        %826 = vmatprep.subr.mxu0 0.0
        %827 = vmatpush1.msra.mxu0 0.0
        %828 = vmatprep.subr.mxu0 0.0
        %829 = vmatpush1.msra.mxu0 0.0
        %830 = vmatprep.subr.mxu0 0.0
        %831 = vmatpush1.msra.mxu0 0.0
        %832 = vmatprep.subr.mxu0 0.0
        %833 = vmatpush1.msra.mxu0 0.0
        %834 = vmatprep.subr.mxu0 0.0
        %835 = vmatpush1.msra.mxu0 0.0
        %836 = vmatprep.subr.mxu0 0.0
        %837 = vmatpush1.msra.mxu0 0.0
        %838 = vmatprep.subr.mxu0 0.0
        %839 = vmatpush1.msra.mxu0 0.0
        %840 = vmatprep.subr.mxu0 0.0
        %841 = vmatpush1.msra.mxu0 0.0
        %842 = vmatprep.subr.mxu0 0.0
        %843 = vmatpush1.msra.mxu0 0.0
        %844 = vmatprep.subr.mxu0 0.0
        %845 = vmatpush1.msra.mxu0 0.0
        %846 = vmatprep.subr.mxu0 0.0
        %847 = vmatpush1.msra.mxu0 0.0
        %848 = vmatprep.subr.mxu0 0.0
        %849 = vmatpush1.msra.mxu0 0.0
        %850 = vmatprep.subr.mxu0 0.0
        %851 = vmatpush1.msra.mxu0 0.0
        %852 = vmatprep.subr.mxu0 0.0
        %853 = vmatpush1.msra.mxu0 0.0
        %854 = vmatprep.subr.mxu0 0.0
        %855 = vmatpush1.msra.mxu0 0.0
        %856 = vmatprep.subr.mxu0 0.0
        %857 = vmatpush1.msra.mxu0 0.0
        %858 = vmatprep.subr.mxu0 0.0
        %859 = vmatpush1.msra.mxu0 0.0
        %860 = vmatprep.subr.mxu0 0.0
        %861 = vmatpush1.msra.mxu0 0.0
        %862 = vmatprep.subr.mxu0 0.0
        %863 = vmatpush1.msra.mxu0 0.0
        %864 = vmatprep.subr.mxu0 0.0
        %865 = vmatpush1.msra.mxu0 0.0
        %866 = vmatprep.mubr.f32.mxu0 0.0
        %867 = vmatmul.mubr.f32.gmra.mrb[0].mxu0 %v636
        %v868 = vpop.f32.mrb[0].mxu0
        %v869 = vadd.f32 0.0, %v868
        %v870 = vpop.f32.mrb[0].mxu0
        %871 = vdwg.mxu0
        %v873 = vsel %vm708, %v869, 0
        %875 = vmatprep.subr.mxu0 0.0
        %876 = vmatpush1.msra.mxu0 %v630
        %877 = vmatprep.subr.mxu0 0.0
        %878 = vmatpush1.msra.mxu0 %v631
        %879 = vmatprep.subr.mxu0 0.0
        %880 = vmatpush1.msra.mxu0 %v632
        %881 = vmatprep.subr.mxu0 0.0
        %882 = vmatpush1.msra.mxu0 %v633
        %883 = vmatprep.subr.mxu0 0.0
        %884 = vmatpush1.msra.mxu0 0.0
        %885 = vmatprep.subr.mxu0 0.0
        %886 = vmatpush1.msra.mxu0 0.0
        %887 = vmatprep.subr.mxu0 0.0
        %888 = vmatpush1.msra.mxu0 0.0
        %889 = vmatprep.subr.mxu0 0.0
        %890 = vmatpush1.msra.mxu0 0.0
        %891 = vmatprep.subr.mxu0 0.0
        %892 = vmatpush1.msra.mxu0 0.0
        %893 = vmatprep.subr.mxu0 0.0
        %894 = vmatpush1.msra.mxu0 0.0
        %895 = vmatprep.subr.mxu0 0.0
        %896 = vmatpush1.msra.mxu0 0.0
        %897 = vmatprep.subr.mxu0 0.0
        %898 = vmatpush1.msra.mxu0 0.0
        %899 = vmatprep.subr.mxu0 0.0
        %900 = vmatpush1.msra.mxu0 0.0
        %901 = vmatprep.subr.mxu0 0.0
        %902 = vmatpush1.msra.mxu0 0.0
        %903 = vmatprep.subr.mxu0 0.0
        %904 = vmatpush1.msra.mxu0 0.0
        %905 = vmatprep.subr.mxu0 0.0
        %906 = vmatpush1.msra.mxu0 0.0
        %907 = vmatprep.subr.mxu0 0.0
        %908 = vmatpush1.msra.mxu0 0.0
        %909 = vmatprep.subr.mxu0 0.0
        %910 = vmatpush1.msra.mxu0 0.0
        %911 = vmatprep.subr.mxu0 0.0
        %912 = vmatpush1.msra.mxu0 0.0
        %913 = vmatprep.subr.mxu0 0.0
        %914 = vmatpush1.msra.mxu0 0.0
        %915 = vmatprep.subr.mxu0 0.0
        %916 = vmatpush1.msra.mxu0 0.0
        %917 = vmatprep.subr.mxu0 0.0
        %918 = vmatpush1.msra.mxu0 0.0
        %919 = vmatprep.subr.mxu0 0.0
        %920 = vmatpush1.msra.mxu0 0.0
        %921 = vmatprep.subr.mxu0 0.0
        %922 = vmatpush1.msra.mxu0 0.0
        %923 = vmatprep.subr.mxu0 0.0
        %924 = vmatpush1.msra.mxu0 0.0
        %925 = vmatprep.subr.mxu0 0.0
        %926 = vmatpush1.msra.mxu0 0.0
        %927 = vmatprep.subr.mxu0 0.0
        %928 = vmatpush1.msra.mxu0 0.0
        %929 = vmatprep.subr.mxu0 0.0
        %930 = vmatpush1.msra.mxu0 0.0
        %931 = vmatprep.subr.mxu0 0.0
        %932 = vmatpush1.msra.mxu0 0.0
        %933 = vmatprep.subr.mxu0 0.0
        %934 = vmatpush1.msra.mxu0 0.0
        %935 = vmatprep.subr.mxu0 0.0
        %936 = vmatpush1.msra.mxu0 0.0
        %937 = vmatprep.subr.mxu0 0.0
        %938 = vmatpush1.msra.mxu0 0.0
        %939 = vmatprep.mubr.f32.mxu0 0.0
        %940 = vmatmul.mubr.f32.gmra.mrb[0].mxu0 %v873
        %v941 = vpop.f32.mrb[0].mxu0
        %v942 = vadd.f32 0.0, %v941
        %v943 = vpop.f32.mrb[0].mxu0
        %944 = vdwg.mxu0
        %v945 = vadd.f32 %v942, 1e-06
        %v946 = vrsqrt.pop %v945
        %v947 = vmul.f32 %v946, %v628
        %v948 = vlaneseq
        %v949 = vshrl.u32 %v948, 7
        %v950 = vsub.s32 0, %v949
        %v951 = vrot.slane %v947, %v950
        %v952 = vmul.f32 %v786, %v951
        %v953 = vmul.f32 %v787, %v951
        %v954 = vmul.f32 %v788, %v951
        %v955 = vmul.f32 %v789, %v951
        %v956 = vmul.f32 %v790, %v951
        %v957 = vmul.f32 %v791, %v951
        %v958 = vmul.f32 %v792, %v951
        %v959 = vmul.f32 %v793, %v951
        %v961 = vlaneseq
        %v962 = vshrl.u32 %v961, 7
        %v963 = vsub.s32 0, %v962
        %v964 = vrot.slane %v629, %v963
        %v966 = vadd.f32 %v952, %v964
        %v967 = vadd.f32 %v953, %v964
        %v968 = vadd.f32 %v954, %v964
        %v969 = vadd.f32 %v955, %v964
        %v970 = vadd.f32 %v956, %v964
        %v971 = vadd.f32 %v957, %v964
        %v972 = vadd.f32 %v958, %v964
        %v973 = vadd.f32 %v959, %v964
        %v974 = vxor.u32 %v966, 2147483648
        %v975 = vxor.u32 %v967, 2147483648
        %v976 = vxor.u32 %v968, 2147483648
        %v977 = vxor.u32 %v969, 2147483648
        %v978 = vxor.u32 %v970, 2147483648
        %v979 = vxor.u32 %v971, 2147483648
        %v980 = vxor.u32 %v972, 2147483648
        %v981 = vxor.u32 %v973, 2147483648
        %v982 = vmul.f32 %v974, 1.442695
        %v983 = vpow.pop %v982
        %v984 = vmul.f32 %v975, 1.442695
        %v985 = vpow.pop %v984
        %v986 = vmul.f32 %v976, 1.442695
        %v987 = vpow.pop %v986
        %v988 = vmul.f32 %v977, 1.442695
        %v989 = vpow.pop %v988
        %v990 = vmul.f32 %v978, 1.442695
        %v991 = vpow.pop %v990
        %v992 = vmul.f32 %v979, 1.442695
        %v993 = vpow.pop %v992
        %v994 = vmul.f32 %v980, 1.442695
        %v995 = vpow.pop %v994
        %v996 = vmul.f32 %v981, 1.442695
        %v997 = vpow.pop %v996
        %v998 = vadd.f32 %v983, 1.0
        %v999 = vadd.f32 %v985, 1.0
        %v1000 = vadd.f32 %v987, 1.0
        %v1001 = vadd.f32 %v989, 1.0
        %v1002 = vadd.f32 %v991, 1.0
        %v1003 = vadd.f32 %v993, 1.0
        %v1004 = vadd.f32 %v995, 1.0
        %v1005 = vadd.f32 %v997, 1.0
        %v1006 = vrcp.pop %v998
        %v1007 = vmul.f32 1.0, %v1006
        %v1008 = vrcp.pop %v999
        %v1009 = vmul.f32 1.0, %v1008
        %v1010 = vrcp.pop %v1000
        %v1011 = vmul.f32 1.0, %v1010
        %v1012 = vrcp.pop %v1001
        %v1013 = vmul.f32 1.0, %v1012
        %v1014 = vrcp.pop %v1002
        %v1015 = vmul.f32 1.0, %v1014
        %v1016 = vrcp.pop %v1003
        %v1017 = vmul.f32 1.0, %v1016
        %v1018 = vrcp.pop %v1004
        %v1019 = vmul.f32 1.0, %v1018
        %v1020 = vrcp.pop %v1005
        %v1021 = vmul.f32 1.0, %v1020
        %v1022 = vmul.f32 %v966, %v1007
        %v1023 = vmul.f32 %v967, %v1009
        %v1024 = vmul.f32 %v968, %v1011
        %v1025 = vmul.f32 %v969, %v1013
        %v1026 = vmul.f32 %v970, %v1015
        %v1027 = vmul.f32 %v971, %v1017
        %v1028 = vmul.f32 %v972, %v1019
        %v1029 = vmul.f32 %v973, %v1021
        %v1030 = vpack.c.bf16 %v621, %v620
        %v1031 = vpack.c.bf16 %v623, %v622
        %v1032 = vpack.c.bf16 %v625, %v624
        %v1033 = vpack.c.bf16 %v627, %v626
        %v1034 = vld [vmem:[#allocation20] sm:$0xf]
        %v1035 = vld [vmem:[#allocation20 + $0x4] sm:$0xf]
        %v1036 = vld [vmem:[#allocation20 + $0x8] sm:$0xf]
        %v1037 = vld [vmem:[#allocation20 + $0xc] sm:$0xf]
        %v1038 = vld [vmem:[#allocation22] sm:$0x1]
        %v1040 = vlaneseq
        %v1041 = vshrl.u32 %v1040, 7
        %v1042 = vsub.s32 0, %v1041
        %v1043 = vrot.slane %v1038, %v1042
        %v1049 = vunpack.c.l.b16 %v1034
        %v1050 = vunpack.c.l.b16 %v1035
        %v1051 = vunpack.c.l.b16 %v1036
        %v1052 = vunpack.c.l.b16 %v1037
        %v1053 = vpack.c.b16 %v1050, %v1049
        %v1054 = vpack.c.b16 %v1052, %v1051
        %v1058 = vsel %vm708, %v1030, 0
        %v1061 = vsel %vm708, %v1031, 0
        %v1064 = vsel %vm708, %v1032, 0
        %v1067 = vsel %vm708, %v1033, 0
        %1069 = vmatprep.subr.bf16.mxu0 0
        %1070 = vmatpush1.bf16.msra.mxu0 %v1053
        %1071 = vmatprep.subr.bf16.mxu0 0
        %1072 = vmatpush1.bf16.msra.mxu0 %v1054
        %1073 = vmatprep.subr.bf16.mxu0 0
        %1074 = vmatpush1.bf16.msra.mxu0 0
        %1075 = vmatprep.subr.bf16.mxu0 0
        %1076 = vmatpush1.bf16.msra.mxu0 0
        %1077 = vmatprep.subr.bf16.mxu0 0
        %1078 = vmatpush1.bf16.msra.mxu0 0
        %1079 = vmatprep.subr.bf16.mxu0 0
        %1080 = vmatpush1.bf16.msra.mxu0 0
        %1081 = vmatprep.subr.bf16.mxu0 0
        %1082 = vmatpush1.bf16.msra.mxu0 0
        %1083 = vmatprep.subr.bf16.mxu0 0
        %1084 = vmatpush1.bf16.msra.mxu0 0
        %1085 = vmatprep.subr.bf16.mxu0 0
        %1086 = vmatpush1.bf16.msra.mxu0 0
        %1087 = vmatprep.subr.bf16.mxu0 0
        %1088 = vmatpush1.bf16.msra.mxu0 0
        %1089 = vmatprep.subr.bf16.mxu0 0
        %1090 = vmatpush1.bf16.msra.mxu0 0
        %1091 = vmatprep.subr.bf16.mxu0 0
        %1092 = vmatpush1.bf16.msra.mxu0 0
        %1093 = vmatprep.subr.bf16.mxu0 0
        %1094 = vmatpush1.bf16.msra.mxu0 0
        %1095 = vmatprep.subr.bf16.mxu0 0
        %1096 = vmatpush1.bf16.msra.mxu0 0
        %1097 = vmatprep.subr.bf16.mxu0 0
        %1098 = vmatpush1.bf16.msra.mxu0 0
        %1099 = vmatprep.subr.bf16.mxu0 0
        %1100 = vmatpush1.bf16.msra.mxu0 0
        %1101 = vmatprep.mubr.bf16.mxu0 0
        %1102 = vmatmul.mubr.bf16.gmra.mrb[0].mxu0 %v1058
        %v1103 = vpop.f32.mrb[0].mxu0
        %v1104 = vadd.f32 %v1043, %v1103
        %v1105 = vpop.f32.mrb[0].mxu0
        %v1106 = vpop.f32.mrb[0].mxu0
        %v1107 = vadd.f32 %v1043, %v1106
        %v1108 = vpop.f32.mrb[0].mxu0
        %1109 = vmatprep.mubr.bf16.mxu0 0
        %1110 = vmatmul.mubr.bf16.gmra.mrb[0].mxu0 %v1061
        %v1111 = vpop.f32.mrb[0].mxu0
        %v1112 = vadd.f32 %v1043, %v1111
        %v1113 = vpop.f32.mrb[0].mxu0
        %v1114 = vpop.f32.mrb[0].mxu0
        %v1115 = vadd.f32 %v1043, %v1114
        %v1116 = vpop.f32.mrb[0].mxu0
        %1117 = vmatprep.mubr.bf16.mxu0 0
        %1118 = vmatmul.mubr.bf16.gmra.mrb[0].mxu0 %v1064
        %v1119 = vpop.f32.mrb[0].mxu0
        %v1120 = vadd.f32 %v1043, %v1119
        %v1121 = vpop.f32.mrb[0].mxu0
        %v1122 = vpop.f32.mrb[0].mxu0
        %v1123 = vadd.f32 %v1043, %v1122
        %v1124 = vpop.f32.mrb[0].mxu0
        %1125 = vmatprep.mubr.bf16.mxu0 0
        %1126 = vmatmul.mubr.bf16.gmra.mrb[0].mxu0 %v1067
        %v1127 = vpop.f32.mrb[0].mxu0
        %v1128 = vadd.f32 %v1043, %v1127
        %v1129 = vpop.f32.mrb[0].mxu0
        %v1130 = vpop.f32.mrb[0].mxu0
        %v1131 = vadd.f32 %v1043, %v1130
        %v1132 = vpop.f32.mrb[0].mxu0
        %1133 = vdwg.mxu0
        %1134 = vst.msk [vmem:[%s618] sm:$0xff] %vm634, %v1104
        %1135 = vst.msk [vmem:[%s618 + $0x8] sm:$0xff] %vm634, %v1107
        %1136 = vst.msk [vmem:[%s618 + $0x10] sm:$0xff] %vm634, %v1112
        %1137 = vst.msk [vmem:[%s618 + $0x18] sm:$0xff] %vm634, %v1115
        %1138 = vst.msk [vmem:[%s618 + $0x20] sm:$0xff] %vm634, %v1120
        %1139 = vst.msk [vmem:[%s618 + $0x28] sm:$0xff] %vm634, %v1123
        %1140 = vst.msk [vmem:[%s618 + $0x30] sm:$0xff] %vm634, %v1128
        %1141 = vst.msk [vmem:[%s618 + $0x38] sm:$0xff] %vm634, %v1131
        %v1142 = vpack.c.bf16 %v1023, %v1022
        %v1143 = vpack.c.bf16 %v1025, %v1024
        %v1144 = vpack.c.bf16 %v1027, %v1026
        %v1145 = vpack.c.bf16 %v1029, %v1028
        %v1150 = vunpack.c.l.b16 %v1142
        %v1151 = vunpack.c.h.b16 %v1142
        %v1152 = vunpack.c.l.b16 %v1143
        %v1153 = vunpack.c.h.b16 %v1143
        %v1154 = vunpack.c.l.b16 %v1144
        %v1155 = vunpack.c.h.b16 %v1144
        %v1156 = vunpack.c.l.b16 %v1145
        %v1157 = vunpack.c.h.b16 %v1145
        %v1158 = vpack.c.b16 %v1150, %v1150
        %v1159 = vpack.c.b16 %v1151, %v1151
        %v1160 = vpack.c.b16 %v1152, %v1152
        %v1161 = vpack.c.b16 %v1153, %v1153
        %v1162 = vpack.c.b16 %v1154, %v1154
        %v1163 = vpack.c.b16 %v1155, %v1155
        %v1164 = vpack.c.b16 %v1156, %v1156
        %v1165 = vpack.c.b16 %v1157, %v1157
        %v1166 = vld [vmem:[#allocation10] sm:$0xf]
        %v1167 = vld [vmem:[#allocation10 + $0x4] sm:$0xf]
        %v1168 = vld [vmem:[#allocation10 + $0x8] sm:$0xf]
        %v1169 = vld [vmem:[#allocation10 + $0xc] sm:$0xf]
        %v1170 = vld [vmem:[#allocation10 + $0x10] sm:$0xf]
        %v1171 = vld [vmem:[#allocation10 + $0x14] sm:$0xf]
        %v1172 = vld [vmem:[#allocation10 + $0x18] sm:$0xf]
        %v1173 = vld [vmem:[#allocation10 + $0x1c] sm:$0xf]
        %v1174 = vld [vmem:[#allocation10 + $0x20] sm:$0xf]
        %v1175 = vld [vmem:[#allocation10 + $0x24] sm:$0xf]
        %v1176 = vld [vmem:[#allocation10 + $0x28] sm:$0xf]
        %v1177 = vld [vmem:[#allocation10 + $0x2c] sm:$0xf]
        %v1178 = vld [vmem:[#allocation10 + $0x30] sm:$0xf]
        %v1179 = vld [vmem:[#allocation10 + $0x34] sm:$0xf]
        %v1180 = vld [vmem:[#allocation10 + $0x38] sm:$0xf]
        %v1181 = vld [vmem:[#allocation10 + $0x3c] sm:$0xf]
        %v1182 = vld [vmem:[#allocation10 + $0x40] sm:$0xf]
        %v1183 = vld [vmem:[#allocation10 + $0x44] sm:$0xf]
        %v1184 = vld [vmem:[#allocation10 + $0x48] sm:$0xf]
        %v1185 = vld [vmem:[#allocation10 + $0x4c] sm:$0xf]
        %v1186 = vld [vmem:[#allocation10 + $0x50] sm:$0xf]
        %v1187 = vld [vmem:[#allocation10 + $0x54] sm:$0xf]
        %v1188 = vld [vmem:[#allocation10 + $0x58] sm:$0xf]
        %v1189 = vld [vmem:[#allocation10 + $0x5c] sm:$0xf]
        %v1190 = vld [vmem:[#allocation10 + $0x60] sm:$0xf]
        %v1191 = vld [vmem:[#allocation10 + $0x64] sm:$0xf]
        %v1192 = vld [vmem:[#allocation10 + $0x68] sm:$0xf]
        %v1193 = vld [vmem:[#allocation10 + $0x6c] sm:$0xf]
        %v1194 = vld [vmem:[#allocation10 + $0x70] sm:$0xf]
        %v1195 = vld [vmem:[#allocation10 + $0x74] sm:$0xf]
        %v1196 = vld [vmem:[#allocation10 + $0x78] sm:$0xf]
        %v1197 = vld [vmem:[#allocation10 + $0x7c] sm:$0xf]
        %v1198 = vld [vmem:[#allocation10 + $0x80] sm:$0xf]
        %v1199 = vld [vmem:[#allocation10 + $0x84] sm:$0xf]
        %v1200 = vld [vmem:[#allocation10 + $0x88] sm:$0xf]
        %v1201 = vld [vmem:[#allocation10 + $0x8c] sm:$0xf]
        %v1202 = vld [vmem:[#allocation11] sm:$0x1]
        %v1204 = vshrl.u32 0, 16
        %v1206 = vrot.slane %v1204, 7
        %v1207 = vshll.u32 0, 16
        %v1209 = vor.u32 %v1206, %v1207
        %v1211 = vshrl.u32 %v1158, 16
        %v1213 = vrot.slane %v1211, 7
        %v1214 = vshll.u32 %v1158, 16
        %v1216 = vor.u32 %v1213, %v1214
        %v1218 = vshrl.u32 %v1159, 16
        %v1220 = vrot.slane %v1218, 7
        %v1221 = vshll.u32 %v1159, 16
        %v1223 = vor.u32 %v1220, %v1221
        %v1225 = vshrl.u32 %v1160, 16
        %v1227 = vrot.slane %v1225, 7
        %v1228 = vshll.u32 %v1160, 16
        %v1230 = vor.u32 %v1227, %v1228
        %v1232 = vshrl.u32 %v1161, 16
        %v1234 = vrot.slane %v1232, 7
        %v1235 = vshll.u32 %v1161, 16
        %v1237 = vor.u32 %v1234, %v1235
        %v1239 = vshrl.u32 %v1162, 16
        %v1241 = vrot.slane %v1239, 7
        %v1242 = vshll.u32 %v1162, 16
        %v1244 = vor.u32 %v1241, %v1242
        %v1246 = vshrl.u32 %v1163, 16
        %v1248 = vrot.slane %v1246, 7
        %v1249 = vshll.u32 %v1163, 16
        %v1251 = vor.u32 %v1248, %v1249
        %v1253 = vshrl.u32 %v1164, 16
        %v1255 = vrot.slane %v1253, 7
        %v1256 = vshll.u32 %v1164, 16
        %v1258 = vor.u32 %v1255, %v1256
        %v1260 = vshrl.u32 %v1165, 16
        %v1262 = vrot.slane %v1260, 7
        %v1263 = vshll.u32 %v1165, 16
        %v1265 = vor.u32 %v1262, %v1263
        %vm1275 = vcmask 1040384
        %vm1276 = vsmask.f32 256
        %vm1277 = vmand %vm1275, %vm1276
        %v1278 = vsel %vm1277, 0, %v1209
        %v1279 = vsel %vm1277, 0, %v1216
        %v1280 = vsel %vm1277, 0, %v1223
        %v1281 = vsel %vm1277, 0, %v1230
        %v1282 = vsel %vm1277, 0, %v1237
        %v1283 = vsel %vm1277, 0, %v1244
        %v1284 = vsel %vm1277, 0, %v1251
        %v1285 = vsel %vm1277, 0, %v1258
        %v1286 = vsel %vm1277, 0, %v1265
        %vm1287 = vcmask 1044480
        %vm1288 = vsmask.f32 4352
        %vm1289 = vmand %vm1287, %vm1288
        %v1290 = vsel %vm1289, %v1278, 0
        %v1291 = vsel %vm1289, %v1279, 0
        %v1292 = vsel %vm1289, %v1280, 0
        %v1293 = vsel %vm1289, %v1281, 0
        %v1294 = vsel %vm1289, %v1282, 0
        %v1295 = vsel %vm1289, %v1283, 0
        %v1296 = vsel %vm1289, %v1284, 0
        %v1297 = vsel %vm1289, %v1285, 0
        %v1298 = vsel %vm1289, %v1286, 0
        %v1307 = vunpack.c.l.b16 %v1290
        %v1308 = vunpack.c.h.b16 %v1290
        %v1309 = vunpack.c.l.b16 %v1291
        %v1310 = vunpack.c.h.b16 %v1291
        %v1311 = vunpack.c.l.b16 %v1292
        %v1312 = vunpack.c.h.b16 %v1292
        %v1313 = vunpack.c.l.b16 %v1293
        %v1314 = vunpack.c.h.b16 %v1293
        %v1315 = vunpack.c.l.b16 %v1294
        %v1316 = vunpack.c.h.b16 %v1294
        %v1317 = vunpack.c.l.b16 %v1295
        %v1318 = vunpack.c.h.b16 %v1295
        %v1319 = vunpack.c.l.b16 %v1296
        %v1320 = vunpack.c.h.b16 %v1296
        %v1321 = vunpack.c.l.b16 %v1297
        %v1322 = vunpack.c.h.b16 %v1297
        %v1323 = vpack.c.b16 %v1307, %v1307
        %v1324 = vpack.c.b16 %v1308, %v1308
        %v1325 = vpack.c.b16 %v1309, %v1309
        %v1326 = vpack.c.b16 %v1310, %v1310
        %v1327 = vpack.c.b16 %v1311, %v1311
        %v1328 = vpack.c.b16 %v1312, %v1312
        %v1329 = vpack.c.b16 %v1313, %v1313
        %v1330 = vpack.c.b16 %v1314, %v1314
        %v1331 = vpack.c.b16 %v1315, %v1315
        %v1332 = vpack.c.b16 %v1316, %v1316
        %v1333 = vpack.c.b16 %v1317, %v1317
        %v1334 = vpack.c.b16 %v1318, %v1318
        %v1335 = vpack.c.b16 %v1319, %v1319
        %v1336 = vpack.c.b16 %v1320, %v1320
        %v1337 = vpack.c.b16 %v1321, %v1321
        %v1338 = vpack.c.b16 %v1322, %v1322
        %vm1339 = vsmask.f32 3328
        %vm1340 = vsmask.f32 7440
        %vm1341 = vmor %vm1339, %vm1340
        %v1343 = vshrl.u32 %v1323, 16
        %v1345 = vrot.slane %v1343, 4
        %v1346 = vshll.u32 %v1323, 16
        %v1348 = vrot.slane %v1346, 5
        %v1349 = vor.u32 %v1345, %v1348
        %v1350 = vrot.slane %v1349, 4
        %v1352 = vshll.u32 %v1324, 16
        %v1354 = vrot.slane %v1352, 5
        %v1355 = vsel %vm1341, %v1350, %v1354
        %v1357 = vshrl.u32 %v1325, 16
        %v1359 = vrot.slane %v1357, 4
        %v1360 = vshll.u32 %v1325, 16
        %v1362 = vrot.slane %v1360, 5
        %v1363 = vor.u32 %v1359, %v1362
        %v1364 = vrot.slane %v1363, 4
        %v1366 = vshll.u32 %v1326, 16
        %v1368 = vrot.slane %v1366, 5
        %v1369 = vsel %vm1341, %v1364, %v1368
        %v1371 = vshrl.u32 %v1327, 16
        %v1373 = vrot.slane %v1371, 4
        %v1374 = vshll.u32 %v1327, 16
        %v1376 = vrot.slane %v1374, 5
        %v1377 = vor.u32 %v1373, %v1376
        %v1378 = vrot.slane %v1377, 4
        %v1380 = vshll.u32 %v1328, 16
        %v1382 = vrot.slane %v1380, 5
        %v1383 = vsel %vm1341, %v1378, %v1382
        %v1385 = vshrl.u32 %v1329, 16
        %v1387 = vrot.slane %v1385, 4
        %v1388 = vshll.u32 %v1329, 16
        %v1390 = vrot.slane %v1388, 5
        %v1391 = vor.u32 %v1387, %v1390
        %v1392 = vrot.slane %v1391, 4
        %v1394 = vshll.u32 %v1330, 16
        %v1396 = vrot.slane %v1394, 5
        %v1397 = vsel %vm1341, %v1392, %v1396
        %v1399 = vshrl.u32 %v1331, 16
        %v1401 = vrot.slane %v1399, 4
        %v1402 = vshll.u32 %v1331, 16
        %v1404 = vrot.slane %v1402, 5
        %v1405 = vor.u32 %v1401, %v1404
        %v1406 = vrot.slane %v1405, 4
        %v1408 = vshll.u32 %v1332, 16
        %v1410 = vrot.slane %v1408, 5
        %v1411 = vsel %vm1341, %v1406, %v1410
        %v1413 = vshrl.u32 %v1333, 16
        %v1415 = vrot.slane %v1413, 4
        %v1416 = vshll.u32 %v1333, 16
        %v1418 = vrot.slane %v1416, 5
        %v1419 = vor.u32 %v1415, %v1418
        %v1420 = vrot.slane %v1419, 4
        %v1422 = vshll.u32 %v1334, 16
        %v1424 = vrot.slane %v1422, 5
        %v1425 = vsel %vm1341, %v1420, %v1424
        %v1427 = vshrl.u32 %v1335, 16
        %v1429 = vrot.slane %v1427, 4
        %v1430 = vshll.u32 %v1335, 16
        %v1432 = vrot.slane %v1430, 5
        %v1433 = vor.u32 %v1429, %v1432
        %v1434 = vrot.slane %v1433, 4
        %v1436 = vshll.u32 %v1336, 16
        %v1438 = vrot.slane %v1436, 5
        %v1439 = vsel %vm1341, %v1434, %v1438
        %v1441 = vshrl.u32 %v1337, 16
        %v1443 = vrot.slane %v1441, 4
        %v1444 = vshll.u32 %v1337, 16
        %v1446 = vrot.slane %v1444, 5
        %v1447 = vor.u32 %v1443, %v1446
        %v1448 = vrot.slane %v1447, 4
        %v1450 = vshll.u32 %v1338, 16
        %v1452 = vrot.slane %v1450, 5
        %v1453 = vsel %vm1341, %v1448, %v1452
        %vm1454 = vcmask 1042432
        %vm1455 = vcmask 1046532
        %vm1456 = vmor %vm1454, %vm1455
        %v1457 = vrot.slane %v1323, 5
        %v1458 = vrot.slane %v1457, 4
        %v1459 = vrot.slane %v1324, 5
        %v1460 = vsel %vm1456, %v1458, %v1459
        %v1461 = vrot.slane %v1325, 5
        %v1462 = vrot.slane %v1461, 4
        %v1463 = vrot.slane %v1326, 5
        %v1464 = vsel %vm1456, %v1462, %v1463
        %v1465 = vrot.slane %v1327, 5
        %v1466 = vrot.slane %v1465, 4
        %v1467 = vrot.slane %v1328, 5
        %v1468 = vsel %vm1456, %v1466, %v1467
        %v1469 = vrot.slane %v1329, 5
        %v1470 = vrot.slane %v1469, 4
        %v1471 = vrot.slane %v1330, 5
        %v1472 = vsel %vm1456, %v1470, %v1471
        %v1473 = vrot.slane %v1331, 5
        %v1474 = vrot.slane %v1473, 4
        %v1475 = vrot.slane %v1332, 5
        %v1476 = vsel %vm1456, %v1474, %v1475
        %v1477 = vrot.slane %v1333, 5
        %v1478 = vrot.slane %v1477, 4
        %v1479 = vrot.slane %v1334, 5
        %v1480 = vsel %vm1456, %v1478, %v1479
        %v1481 = vrot.slane %v1335, 5
        %v1482 = vrot.slane %v1481, 4
        %v1483 = vrot.slane %v1336, 5
        %v1484 = vsel %vm1456, %v1482, %v1483
        %v1485 = vrot.slane %v1337, 5
        %v1486 = vrot.slane %v1485, 4
        %v1487 = vrot.slane %v1338, 5
        %v1488 = vsel %vm1456, %v1486, %v1487
        %v1490 = vunpack.c.l.b16 %v1298
        %v1491 = vunpack.c.h.b16 %v1298
        %v1492 = vpack.c.b16 %v1490, %v1490
        %v1493 = vpack.c.b16 %v1491, %v1491
        %v1495 = vshrl.u32 %v1492, 16
        %v1497 = vrot.slane %v1495, 4
        %v1498 = vshll.u32 %v1492, 16
        %v1500 = vrot.slane %v1498, 5
        %v1501 = vor.u32 %v1497, %v1500
        %v1502 = vrot.slane %v1501, 4
        %v1504 = vshll.u32 %v1493, 16
        %v1506 = vrot.slane %v1504, 5
        %v1507 = vsel %vm1341, %v1502, %v1506
        %v1508 = vrot.slane %v1492, 5
        %v1509 = vrot.slane %v1508, 4
        %v1510 = vrot.slane %v1493, 5
        %v1511 = vsel %vm1456, %v1509, %v1510
        %v1512 = vpack.c.b16 %v1309, %v1307
        %v1513 = vpack.c.b16 %v1313, %v1311
        %v1514 = vpack.c.b16 %v1317, %v1315
        %v1515 = vpack.c.b16 %v1321, %v1319
        %v1516 = vunpack.c.l.b16 %v1355
        %v1517 = vunpack.c.l.b16 %v1369
        %v1518 = vunpack.c.l.b16 %v1383
        %v1519 = vunpack.c.l.b16 %v1397
        %v1520 = vunpack.c.l.b16 %v1411
        %v1521 = vunpack.c.l.b16 %v1425
        %v1522 = vunpack.c.l.b16 %v1439
        %v1523 = vunpack.c.l.b16 %v1453
        %v1524 = vpack.c.b16 %v1517, %v1516
        %v1525 = vpack.c.b16 %v1519, %v1518
        %v1526 = vpack.c.b16 %v1521, %v1520
        %v1527 = vpack.c.b16 %v1523, %v1522
        %1528 = vrot.lane.b32.xlu0 %v1524, 32
        %v1529 = vpop.permute.xlu0 %1528
        %1530 = vrot.lane.b32.xlu0 %v1525, 32
        %v1531 = vpop.permute.xlu0 %1530
        %1532 = vrot.lane.b32.xlu0 %v1526, 32
        %v1533 = vpop.permute.xlu0 %1532
        %1534 = vrot.lane.b32.xlu0 %v1527, 32
        %v1535 = vpop.permute.xlu0 %1534
        %v1536 = vunpack.c.l.b16 %v1460
        %v1537 = vunpack.c.l.b16 %v1464
        %v1538 = vunpack.c.l.b16 %v1468
        %v1539 = vunpack.c.l.b16 %v1472
        %v1540 = vunpack.c.l.b16 %v1476
        %v1541 = vunpack.c.l.b16 %v1480
        %v1542 = vunpack.c.l.b16 %v1484
        %v1543 = vunpack.c.l.b16 %v1488
        %v1544 = vpack.c.b16 %v1537, %v1536
        %v1545 = vpack.c.b16 %v1539, %v1538
        %v1546 = vpack.c.b16 %v1541, %v1540
        %v1547 = vpack.c.b16 %v1543, %v1542
        %1548 = vrot.lane.b32.xlu0 %v1544, 64
        %v1549 = vpop.permute.xlu0 %1548
        %1550 = vrot.lane.b32.xlu0 %v1545, 64
        %v1551 = vpop.permute.xlu0 %1550
        %1552 = vrot.lane.b32.xlu0 %v1546, 64
        %v1553 = vpop.permute.xlu0 %1552
        %1554 = vrot.lane.b32.xlu0 %v1547, 64
        %v1555 = vpop.permute.xlu0 %1554
        %v1556 = vpack.c.b16 %v1311, %v1309
        %v1557 = vpack.c.b16 %v1315, %v1313
        %v1558 = vpack.c.b16 %v1319, %v1317
        %v1559 = vpack.c.b16 %v1490, %v1321
        %1560 = vrot.lane.b32.xlu0 %v1556, 96
        %v1561 = vpop.permute.xlu0 %1560
        %1562 = vrot.lane.b32.xlu0 %v1557, 96
        %v1563 = vpop.permute.xlu0 %1562
        %1564 = vrot.lane.b32.xlu0 %v1558, 96
        %v1565 = vpop.permute.xlu0 %1564
        %1566 = vrot.lane.b32.xlu0 %v1559, 96
        %v1567 = vpop.permute.xlu0 %1566
        %v1568 = vunpack.c.l.b16 %v1507
        %v1569 = vpack.c.b16 %v1518, %v1517
        %v1570 = vpack.c.b16 %v1520, %v1519
        %v1571 = vpack.c.b16 %v1522, %v1521
        %v1572 = vpack.c.b16 %v1568, %v1523
        %v1573 = vunpack.c.l.b16 %v1511
        %v1574 = vpack.c.b16 %v1538, %v1537
        %v1575 = vpack.c.b16 %v1540, %v1539
        %v1576 = vpack.c.b16 %v1542, %v1541
        %v1577 = vpack.c.b16 %v1573, %v1543
        %1578 = vrot.lane.b32.xlu0 %v1574, 32
        %v1579 = vpop.permute.xlu0 %1578
        %1580 = vrot.lane.b32.xlu0 %v1575, 32
        %v1581 = vpop.permute.xlu0 %1580
        %1582 = vrot.lane.b32.xlu0 %v1576, 32
        %v1583 = vpop.permute.xlu0 %1582
        %1584 = vrot.lane.b32.xlu0 %v1577, 32
        %v1585 = vpop.permute.xlu0 %1584
        %v1586 = vpack.c.b16 %v1307, %v1490
        %1587 = vrot.lane.b32.xlu0 %v1513, 64
        %v1588 = vpop.permute.xlu0 %1587
        %1589 = vrot.lane.b32.xlu0 %v1514, 64
        %v1590 = vpop.permute.xlu0 %1589
        %1591 = vrot.lane.b32.xlu0 %v1515, 64
        %v1592 = vpop.permute.xlu0 %1591
        %1593 = vrot.lane.b32.xlu0 %v1586, 64
        %v1594 = vpop.permute.xlu0 %1593
        %v1595 = vpack.c.b16 %v1516, %v1568
        %1596 = vrot.lane.b32.xlu0 %v1525, 96
        %v1597 = vpop.permute.xlu0 %1596
        %1598 = vrot.lane.b32.xlu0 %v1526, 96
        %v1599 = vpop.permute.xlu0 %1598
        %1600 = vrot.lane.b32.xlu0 %v1527, 96
        %v1601 = vpop.permute.xlu0 %1600
        %1602 = vrot.lane.b32.xlu0 %v1595, 96
        %v1603 = vpop.permute.xlu0 %1602
        %v1604 = vpack.c.b16 %v1536, %v1573
        %v1607 = vsel %vm708, %v1512, %v1529
        %v1610 = vsel %vm708, %v1513, %v1531
        %v1613 = vsel %vm708, %v1514, %v1533
        %v1616 = vsel %vm708, %v1515, %v1535
        %v1618 = vsel %vm634, %v1607, %v1549
        %v1620 = vsel %vm634, %v1610, %v1551
        %v1622 = vsel %vm634, %v1613, %v1553
        %v1624 = vsel %vm634, %v1616, %v1555
        %vm1625 = vcmask 785408
        %v1627 = vsel %vm1625, %v1618, %v1561
        %v1630 = vsel %vm1625, %v1620, %v1563
        %v1633 = vsel %vm1625, %v1622, %v1565
        %v1636 = vsel %vm1625, %v1624, %v1567
        %v1640 = vsel %vm708, %v1569, %v1579
        %v1643 = vsel %vm708, %v1570, %v1581
        %v1646 = vsel %vm708, %v1571, %v1583
        %v1649 = vsel %vm708, %v1572, %v1585
        %v1651 = vsel %vm634, %v1640, %v1588
        %v1653 = vsel %vm634, %v1643, %v1590
        %v1655 = vsel %vm634, %v1646, %v1592
        %v1657 = vsel %vm634, %v1649, %v1594
        %v1659 = vsel %vm1625, %v1651, %v1597
        %v1662 = vsel %vm1625, %v1653, %v1599
        %v1665 = vsel %vm1625, %v1655, %v1601
        %v1668 = vsel %vm1625, %v1657, %v1603
        %v1671 = vlaneseq
        %v1672 = vshrl.u32 %v1671, 7
        %v1673 = vsub.s32 0, %v1672
        %v1674 = vrot.slane %v1202, %v1673
        %v1712 = vunpack.c.l.b16 %v1166
        %v1713 = vunpack.c.l.b16 %v1167
        %v1714 = vunpack.c.l.b16 %v1168
        %v1715 = vunpack.c.l.b16 %v1169
        %v1716 = vunpack.c.l.b16 %v1170
        %v1717 = vunpack.c.l.b16 %v1171
        %v1718 = vunpack.c.l.b16 %v1172
        %v1719 = vunpack.c.l.b16 %v1173
        %v1720 = vunpack.c.l.b16 %v1174
        %v1721 = vunpack.c.l.b16 %v1175
        %v1722 = vunpack.c.l.b16 %v1176
        %v1723 = vunpack.c.l.b16 %v1177
        %v1724 = vunpack.c.l.b16 %v1178
        %v1725 = vunpack.c.l.b16 %v1179
        %v1726 = vunpack.c.l.b16 %v1180
        %v1727 = vunpack.c.l.b16 %v1181
        %v1728 = vunpack.c.l.b16 %v1182
        %v1729 = vunpack.c.l.b16 %v1183
        %v1730 = vunpack.c.l.b16 %v1184
        %v1731 = vunpack.c.l.b16 %v1185
        %v1732 = vunpack.c.l.b16 %v1186
        %v1733 = vunpack.c.l.b16 %v1187
        %v1734 = vunpack.c.l.b16 %v1188
        %v1735 = vunpack.c.l.b16 %v1189
        %v1736 = vunpack.c.l.b16 %v1190
        %v1737 = vunpack.c.l.b16 %v1191
        %v1738 = vunpack.c.l.b16 %v1192
        %v1739 = vunpack.c.l.b16 %v1193
        %v1740 = vunpack.c.l.b16 %v1194
        %v1741 = vunpack.c.l.b16 %v1195
        %v1742 = vunpack.c.l.b16 %v1196
        %v1743 = vunpack.c.l.b16 %v1197
        %v1744 = vunpack.c.l.b16 %v1198
        %v1745 = vunpack.c.l.b16 %v1199
        %v1746 = vunpack.c.l.b16 %v1200
        %v1747 = vunpack.c.l.b16 %v1201
        %v1748 = vpack.c.b16 %v1713, %v1712
        %v1749 = vpack.c.b16 %v1715, %v1714
        %v1750 = vpack.c.b16 %v1717, %v1716
        %v1751 = vpack.c.b16 %v1719, %v1718
        %v1752 = vpack.c.b16 %v1721, %v1720
        %v1753 = vpack.c.b16 %v1723, %v1722
        %v1754 = vpack.c.b16 %v1725, %v1724
        %v1755 = vpack.c.b16 %v1727, %v1726
        %v1756 = vpack.c.b16 %v1729, %v1728
        %v1757 = vpack.c.b16 %v1731, %v1730
        %v1758 = vpack.c.b16 %v1733, %v1732
        %v1759 = vpack.c.b16 %v1735, %v1734
        %v1760 = vpack.c.b16 %v1737, %v1736
        %v1761 = vpack.c.b16 %v1739, %v1738
        %v1762 = vpack.c.b16 %v1741, %v1740
        %v1763 = vpack.c.b16 %v1743, %v1742
        %v1764 = vpack.c.b16 %v1745, %v1744
        %v1765 = vpack.c.b16 %v1747, %v1746
        %v1785 = vsel %vm708, %v1545, 0
        %v1788 = vsel %vm708, %v1546, 0
        %v1791 = vsel %vm708, %v1547, 0
        %v1794 = vsel %vm708, %v1604, 0
        %1796 = vmatprep.subr.bf16.mxu0 0
        %1797 = vmatpush1.bf16.msra.mxu0 %v1748
        %1798 = vmatprep.subr.bf16.mxu0 0
        %1799 = vmatpush1.bf16.msra.mxu0 %v1749
        %1800 = vmatprep.subr.bf16.mxu0 0
        %1801 = vmatpush1.bf16.msra.mxu0 %v1750
        %1802 = vmatprep.subr.bf16.mxu0 0
        %1803 = vmatpush1.bf16.msra.mxu0 %v1751
        %1804 = vmatprep.subr.bf16.mxu0 0
        %1805 = vmatpush1.bf16.msra.mxu0 %v1752
        %1806 = vmatprep.subr.bf16.mxu0 0
        %1807 = vmatpush1.bf16.msra.mxu0 %v1753
        %1808 = vmatprep.subr.bf16.mxu0 0
        %1809 = vmatpush1.bf16.msra.mxu0 %v1754
        %1810 = vmatprep.subr.bf16.mxu0 0
        %1811 = vmatpush1.bf16.msra.mxu0 %v1755
        %1812 = vmatprep.subr.bf16.mxu0 0
        %1813 = vmatpush1.bf16.msra.mxu0 %v1756
        %1814 = vmatprep.subr.bf16.mxu0 0
        %1815 = vmatpush1.bf16.msra.mxu0 %v1757
        %1816 = vmatprep.subr.bf16.mxu0 0
        %1817 = vmatpush1.bf16.msra.mxu0 %v1758
        %1818 = vmatprep.subr.bf16.mxu0 0
        %1819 = vmatpush1.bf16.msra.mxu0 %v1759
        %1820 = vmatprep.subr.bf16.mxu0 0
        %1821 = vmatpush1.bf16.msra.mxu0 %v1760
        %1822 = vmatprep.subr.bf16.mxu0 0
        %1823 = vmatpush1.bf16.msra.mxu0 %v1761
        %1824 = vmatprep.subr.bf16.mxu0 0
        %1825 = vmatpush1.bf16.msra.mxu0 %v1762
        %1826 = vmatprep.subr.bf16.mxu0 0
        %1827 = vmatpush1.bf16.msra.mxu0 %v1763
        %1828 = vmatprep.mubr.bf16.mxu0 %v1659
        %1829 = vmatmul.mubr.bf16.gmra.mrb[0].mxu0 %v1627
        %v1830 = vpop.f32.mrb[0].mxu0
        %v1831 = vadd.f32 %v1674, %v1830
        %v1832 = vpop.f32.mrb[0].mxu0
        %v1833 = vpop.f32.mrb[0].mxu0
        %v1834 = vadd.f32 %v1674, %v1833
        %v1835 = vpop.f32.mrb[0].mxu0
        %1836 = vmatprep.mubr.bf16.mxu0 %v1662
        %1837 = vmatmul.mubr.bf16.gmra.mrb[0].mxu0 %v1630
        %v1838 = vpop.f32.mrb[0].mxu0
        %v1839 = vadd.f32 %v1674, %v1838
        %v1840 = vpop.f32.mrb[0].mxu0
        %v1841 = vpop.f32.mrb[0].mxu0
        %v1842 = vadd.f32 %v1674, %v1841
        %v1843 = vpop.f32.mrb[0].mxu0
        %1844 = vmatprep.mubr.bf16.mxu0 %v1665
        %1845 = vmatmul.mubr.bf16.gmra.mrb[0].mxu0 %v1633
        %v1846 = vpop.f32.mrb[0].mxu0
        %v1847 = vadd.f32 %v1674, %v1846
        %v1848 = vpop.f32.mrb[0].mxu0
        %v1849 = vpop.f32.mrb[0].mxu0
        %v1850 = vadd.f32 %v1674, %v1849
        %v1851 = vpop.f32.mrb[0].mxu0
        %1852 = vmatprep.mubr.bf16.mxu0 %v1668
        %1853 = vmatmul.mubr.bf16.gmra.mrb[0].mxu0 %v1636
        %v1854 = vpop.f32.mrb[0].mxu0
        %v1855 = vadd.f32 %v1674, %v1854
        %v1856 = vpop.f32.mrb[0].mxu0
        %v1857 = vpop.f32.mrb[0].mxu0
        %v1858 = vadd.f32 %v1674, %v1857
        %v1859 = vpop.f32.mrb[0].mxu0
        %1860 = vdwg.mxu0
        %1861 = vmatprep.subr.bf16.mxu0 0
        %1862 = vmatpush1.bf16.msra.mxu0 %v1764
        %1863 = vmatprep.subr.bf16.mxu0 0
        %1864 = vmatpush1.bf16.msra.mxu0 %v1765
        %1865 = vmatprep.subr.bf16.mxu0 0
        %1866 = vmatpush1.bf16.msra.mxu0 0
        %1867 = vmatprep.subr.bf16.mxu0 0
        %1868 = vmatpush1.bf16.msra.mxu0 0
        %1869 = vmatprep.subr.bf16.mxu0 0
        %1870 = vmatpush1.bf16.msra.mxu0 0
        %1871 = vmatprep.subr.bf16.mxu0 0
        %1872 = vmatpush1.bf16.msra.mxu0 0
        %1873 = vmatprep.subr.bf16.mxu0 0
        %1874 = vmatpush1.bf16.msra.mxu0 0
        %1875 = vmatprep.subr.bf16.mxu0 0
        %1876 = vmatpush1.bf16.msra.mxu0 0
        %1877 = vmatprep.subr.bf16.mxu0 0
        %1878 = vmatpush1.bf16.msra.mxu0 0
        %1879 = vmatprep.subr.bf16.mxu0 0
        %1880 = vmatpush1.bf16.msra.mxu0 0
        %1881 = vmatprep.subr.bf16.mxu0 0
        %1882 = vmatpush1.bf16.msra.mxu0 0
        %1883 = vmatprep.subr.bf16.mxu0 0
        %1884 = vmatpush1.bf16.msra.mxu0 0
        %1885 = vmatprep.subr.bf16.mxu0 0
        %1886 = vmatpush1.bf16.msra.mxu0 0
        %1887 = vmatprep.subr.bf16.mxu0 0
        %1888 = vmatpush1.bf16.msra.mxu0 0
        %1889 = vmatprep.subr.bf16.mxu0 0
        %1890 = vmatpush1.bf16.msra.mxu0 0
        %1891 = vmatprep.subr.bf16.mxu0 0
        %1892 = vmatpush1.bf16.msra.mxu0 0
        %1893 = vmatprep.mubr.bf16.mxu0 0
        %1894 = vmatmul.mubr.bf16.gmra.mrb[0].mxu0 %v1785
        %v1895 = vpop.f32.mrb[0].mxu0
        %v1896 = vadd.f32 %v1831, %v1895
        %v1897 = vpop.f32.mrb[0].mxu0
        %v1898 = vpop.f32.mrb[0].mxu0
        %v1899 = vadd.f32 %v1834, %v1898
        %v1900 = vpop.f32.mrb[0].mxu0
        %1901 = vmatprep.mubr.bf16.mxu0 0
        %1902 = vmatmul.mubr.bf16.gmra.mrb[0].mxu0 %v1788
        %v1903 = vpop.f32.mrb[0].mxu0
        %v1904 = vadd.f32 %v1839, %v1903
        %v1905 = vpop.f32.mrb[0].mxu0
        %v1906 = vpop.f32.mrb[0].mxu0
        %v1907 = vadd.f32 %v1842, %v1906
        %v1908 = vpop.f32.mrb[0].mxu0
        %1909 = vmatprep.mubr.bf16.mxu0 0
        %1910 = vmatmul.mubr.bf16.gmra.mrb[0].mxu0 %v1791
        %v1911 = vpop.f32.mrb[0].mxu0
        %v1912 = vadd.f32 %v1847, %v1911
        %v1913 = vpop.f32.mrb[0].mxu0
        %v1914 = vpop.f32.mrb[0].mxu0
        %v1915 = vadd.f32 %v1850, %v1914
        %v1916 = vpop.f32.mrb[0].mxu0
        %1917 = vmatprep.mubr.bf16.mxu0 0
        %1918 = vmatmul.mubr.bf16.gmra.mrb[0].mxu0 %v1794
        %v1919 = vpop.f32.mrb[0].mxu0
        %v1920 = vadd.f32 %v1855, %v1919
        %v1921 = vpop.f32.mrb[0].mxu0
        %v1922 = vpop.f32.mrb[0].mxu0
        %v1923 = vadd.f32 %v1858, %v1922
        %v1924 = vpop.f32.mrb[0].mxu0
        %1925 = vdwg.mxu0
        %v1926 = vld [vmem:[#allocation13] sm:$0x1]
        %v1927 = vld [vmem:[#allocation14] sm:$0x1]
        %v1928 = vld [vmem:[#allocation16] sm:$0xff]
        %v1929 = vld [vmem:[#allocation16 + $0x8] sm:$0xff]
        %v1930 = vld [vmem:[#allocation16 + $0x10] sm:$0xff]
        %v1931 = vld [vmem:[#allocation16 + $0x18] sm:$0xff]
        %v1932 = vld [vmem:[#allocation16 + $0x20] sm:$0xff]
        %v1933 = vld [vmem:[#allocation16 + $0x28] sm:$0xff]
        %v1934 = vld [vmem:[#allocation16 + $0x30] sm:$0xff]
        %v1935 = vld [vmem:[#allocation16 + $0x38] sm:$0xff]
        %1936 = vmatprep.subr.mxu0 0.0
        %1937 = vmatpush1.msra.mxu0 %v1896
        %1938 = vmatprep.subr.mxu0 0.0
        %1939 = vmatpush1.msra.mxu0 %v1899
        %1940 = vmatprep.subr.mxu0 0.0
        %1941 = vmatpush1.msra.mxu0 %v1904
        %1942 = vmatprep.subr.mxu0 0.0
        %1943 = vmatpush1.msra.mxu0 %v1907
        %1944 = vmatprep.subr.mxu0 0.0
        %1945 = vmatpush1.msra.mxu0 %v1912
        %1946 = vmatprep.subr.mxu0 0.0
        %1947 = vmatpush1.msra.mxu0 %v1915
        %1948 = vmatprep.subr.mxu0 0.0
        %1949 = vmatpush1.msra.mxu0 %v1920
        %1950 = vmatprep.subr.mxu0 0.0
        %1951 = vmatpush1.msra.mxu0 %v1923
        %1952 = vmatprep.subr.mxu0 0.0
        %1953 = vmatpush1.msra.mxu0 0.0
        %1954 = vmatprep.subr.mxu0 0.0
        %1955 = vmatpush1.msra.mxu0 0.0
        %1956 = vmatprep.subr.mxu0 0.0
        %1957 = vmatpush1.msra.mxu0 0.0
        %1958 = vmatprep.subr.mxu0 0.0
        %1959 = vmatpush1.msra.mxu0 0.0
        %1960 = vmatprep.subr.mxu0 0.0
        %1961 = vmatpush1.msra.mxu0 0.0
        %1962 = vmatprep.subr.mxu0 0.0
        %1963 = vmatpush1.msra.mxu0 0.0
        %1964 = vmatprep.subr.mxu0 0.0
        %1965 = vmatpush1.msra.mxu0 0.0
        %1966 = vmatprep.subr.mxu0 0.0
        %1967 = vmatpush1.msra.mxu0 0.0
        %1968 = vmatprep.subr.mxu0 0.0
        %1969 = vmatpush1.msra.mxu0 0.0
        %1970 = vmatprep.subr.mxu0 0.0
        %1971 = vmatpush1.msra.mxu0 0.0
        %1972 = vmatprep.subr.mxu0 0.0
        %1973 = vmatpush1.msra.mxu0 0.0
        %1974 = vmatprep.subr.mxu0 0.0
        %1975 = vmatpush1.msra.mxu0 0.0
        %1976 = vmatprep.subr.mxu0 0.0
        %1977 = vmatpush1.msra.mxu0 0.0
        %1978 = vmatprep.subr.mxu0 0.0
        %1979 = vmatpush1.msra.mxu0 0.0
        %1980 = vmatprep.subr.mxu0 0.0
        %1981 = vmatpush1.msra.mxu0 0.0
        %1982 = vmatprep.subr.mxu0 0.0
        %1983 = vmatpush1.msra.mxu0 0.0
        %1984 = vmatprep.subr.mxu0 0.0
        %1985 = vmatpush1.msra.mxu0 0.0
        %1986 = vmatprep.subr.mxu0 0.0
        %1987 = vmatpush1.msra.mxu0 0.0
        %1988 = vmatprep.subr.mxu0 0.0
        %1989 = vmatpush1.msra.mxu0 0.0
        %1990 = vmatprep.subr.mxu0 0.0
        %1991 = vmatpush1.msra.mxu0 0.0
        %1992 = vmatprep.subr.mxu0 0.0
        %1993 = vmatpush1.msra.mxu0 0.0
        %1994 = vmatprep.subr.mxu0 0.0
        %1995 = vmatpush1.msra.mxu0 0.0
        %1996 = vmatprep.subr.mxu0 0.0
        %1997 = vmatpush1.msra.mxu0 0.0
        %1998 = vmatprep.subr.mxu0 0.0
        %1999 = vmatpush1.msra.mxu0 0.0
        %2000 = vmatprep.mubr.f32.mxu0 0.0
        %2001 = vmatmul.mubr.f32.gmra.mrb[0].mxu0 %v636
        %v2002 = vpop.f32.mrb[0].mxu0
        %v2003 = vadd.f32 0.0, %v2002
        %v2004 = vpop.f32.mrb[0].mxu0
        %2005 = vdwg.mxu0
        %v2007 = vsel %vm634, %v2003, 0
        %2009 = vmatprep.subr.mxu0 0.0
        %2010 = vmatpush1.msra.mxu0 %v1928
        %2011 = vmatprep.subr.mxu0 0.0
        %2012 = vmatpush1.msra.mxu0 %v1929
        %2013 = vmatprep.subr.mxu0 0.0
        %2014 = vmatpush1.msra.mxu0 %v1930
        %2015 = vmatprep.subr.mxu0 0.0
        %2016 = vmatpush1.msra.mxu0 %v1931
        %2017 = vmatprep.subr.mxu0 0.0
        %2018 = vmatpush1.msra.mxu0 %v1932
        %2019 = vmatprep.subr.mxu0 0.0
        %2020 = vmatpush1.msra.mxu0 %v1933
        %2021 = vmatprep.subr.mxu0 0.0
        %2022 = vmatpush1.msra.mxu0 %v1934
        %2023 = vmatprep.subr.mxu0 0.0
        %2024 = vmatpush1.msra.mxu0 %v1935
        %2025 = vmatprep.subr.mxu0 0.0
        %2026 = vmatpush1.msra.mxu0 0.0
        %2027 = vmatprep.subr.mxu0 0.0
        %2028 = vmatpush1.msra.mxu0 0.0
        %2029 = vmatprep.subr.mxu0 0.0
        %2030 = vmatpush1.msra.mxu0 0.0
        %2031 = vmatprep.subr.mxu0 0.0
        %2032 = vmatpush1.msra.mxu0 0.0
        %2033 = vmatprep.subr.mxu0 0.0
        %2034 = vmatpush1.msra.mxu0 0.0
        %2035 = vmatprep.subr.mxu0 0.0
        %2036 = vmatpush1.msra.mxu0 0.0
        %2037 = vmatprep.subr.mxu0 0.0
        %2038 = vmatpush1.msra.mxu0 0.0
        %2039 = vmatprep.subr.mxu0 0.0
        %2040 = vmatpush1.msra.mxu0 0.0
        %2041 = vmatprep.subr.mxu0 0.0
        %2042 = vmatpush1.msra.mxu0 0.0
        %2043 = vmatprep.subr.mxu0 0.0
        %2044 = vmatpush1.msra.mxu0 0.0
        %2045 = vmatprep.subr.mxu0 0.0
        %2046 = vmatpush1.msra.mxu0 0.0
        %2047 = vmatprep.subr.mxu0 0.0
        %2048 = vmatpush1.msra.mxu0 0.0
        %2049 = vmatprep.subr.mxu0 0.0
        %2050 = vmatpush1.msra.mxu0 0.0
        %2051 = vmatprep.subr.mxu0 0.0
        %2052 = vmatpush1.msra.mxu0 0.0
        %2053 = vmatprep.subr.mxu0 0.0
        %2054 = vmatpush1.msra.mxu0 0.0
        %2055 = vmatprep.subr.mxu0 0.0
        %2056 = vmatpush1.msra.mxu0 0.0
        %2057 = vmatprep.subr.mxu0 0.0
        %2058 = vmatpush1.msra.mxu0 0.0
        %2059 = vmatprep.subr.mxu0 0.0
        %2060 = vmatpush1.msra.mxu0 0.0
        %2061 = vmatprep.subr.mxu0 0.0
        %2062 = vmatpush1.msra.mxu0 0.0
        %2063 = vmatprep.subr.mxu0 0.0
        %2064 = vmatpush1.msra.mxu0 0.0
        %2065 = vmatprep.subr.mxu0 0.0
        %2066 = vmatpush1.msra.mxu0 0.0
        %2067 = vmatprep.subr.mxu0 0.0
        %2068 = vmatpush1.msra.mxu0 0.0
        %2069 = vmatprep.subr.mxu0 0.0
        %2070 = vmatpush1.msra.mxu0 0.0
        %2071 = vmatprep.subr.mxu0 0.0
        %2072 = vmatpush1.msra.mxu0 0.0
        %2073 = vmatprep.mubr.f32.mxu0 0.0
        %2074 = vmatmul.mubr.f32.gmra.mrb[0].mxu0 %v2007
        %v2075 = vpop.f32.mrb[0].mxu0
        %v2076 = vadd.f32 0.0, %v2075
        %v2077 = vpop.f32.mrb[0].mxu0
        %2078 = vdwg.mxu0
        %v2079 = vlaneseq
        %v2080 = vshrl.u32 %v2079, 7
        %v2081 = vsub.s32 0, %v2080
        %v2082 = vrot.slane %v2076, %v2081
        %v2083 = vsub.f32 %v1896, %v2082
        %v2084 = vsub.f32 %v1899, %v2082
        %v2085 = vsub.f32 %v1904, %v2082
        %v2086 = vsub.f32 %v1907, %v2082
        %v2087 = vsub.f32 %v1912, %v2082
        %v2088 = vsub.f32 %v1915, %v2082
        %v2089 = vsub.f32 %v1920, %v2082
        %v2090 = vsub.f32 %v1923, %v2082
        %v2091 = vmul.f32 %v2083, %v2083
        %v2092 = vmul.f32 %v2084, %v2084
        %v2093 = vmul.f32 %v2085, %v2085
        %v2094 = vmul.f32 %v2086, %v2086
        %v2095 = vmul.f32 %v2087, %v2087
        %v2096 = vmul.f32 %v2088, %v2088
        %v2097 = vmul.f32 %v2089, %v2089
        %v2098 = vmul.f32 %v2090, %v2090
        %2099 = vmatprep.subr.mxu0 0.0
        %2100 = vmatpush1.msra.mxu0 %v2091
        %2101 = vmatprep.subr.mxu0 0.0
        %2102 = vmatpush1.msra.mxu0 %v2092
        %2103 = vmatprep.subr.mxu0 0.0
        %2104 = vmatpush1.msra.mxu0 %v2093
        %2105 = vmatprep.subr.mxu0 0.0
        %2106 = vmatpush1.msra.mxu0 %v2094
        %2107 = vmatprep.subr.mxu0 0.0
        %2108 = vmatpush1.msra.mxu0 %v2095
        %2109 = vmatprep.subr.mxu0 0.0
        %2110 = vmatpush1.msra.mxu0 %v2096
        %2111 = vmatprep.subr.mxu0 0.0
        %2112 = vmatpush1.msra.mxu0 %v2097
        %2113 = vmatprep.subr.mxu0 0.0
        %2114 = vmatpush1.msra.mxu0 %v2098
        %2115 = vmatprep.subr.mxu0 0.0
        %2116 = vmatpush1.msra.mxu0 0.0
        %2117 = vmatprep.subr.mxu0 0.0
        %2118 = vmatpush1.msra.mxu0 0.0
        %2119 = vmatprep.subr.mxu0 0.0
        %2120 = vmatpush1.msra.mxu0 0.0
        %2121 = vmatprep.subr.mxu0 0.0
        %2122 = vmatpush1.msra.mxu0 0.0
        %2123 = vmatprep.subr.mxu0 0.0
        %2124 = vmatpush1.msra.mxu0 0.0
        %2125 = vmatprep.subr.mxu0 0.0
        %2126 = vmatpush1.msra.mxu0 0.0
        %2127 = vmatprep.subr.mxu0 0.0
        %2128 = vmatpush1.msra.mxu0 0.0
        %2129 = vmatprep.subr.mxu0 0.0
        %2130 = vmatpush1.msra.mxu0 0.0
        %2131 = vmatprep.subr.mxu0 0.0
        %2132 = vmatpush1.msra.mxu0 0.0
        %2133 = vmatprep.subr.mxu0 0.0
        %2134 = vmatpush1.msra.mxu0 0.0
        %2135 = vmatprep.subr.mxu0 0.0
        %2136 = vmatpush1.msra.mxu0 0.0
        %2137 = vmatprep.subr.mxu0 0.0
        %2138 = vmatpush1.msra.mxu0 0.0
        %2139 = vmatprep.subr.mxu0 0.0
        %2140 = vmatpush1.msra.mxu0 0.0
        %2141 = vmatprep.subr.mxu0 0.0
        %2142 = vmatpush1.msra.mxu0 0.0
        %2143 = vmatprep.subr.mxu0 0.0
        %2144 = vmatpush1.msra.mxu0 0.0
        %2145 = vmatprep.subr.mxu0 0.0
        %2146 = vmatpush1.msra.mxu0 0.0
        %2147 = vmatprep.subr.mxu0 0.0
        %2148 = vmatpush1.msra.mxu0 0.0
        %2149 = vmatprep.subr.mxu0 0.0
        %2150 = vmatpush1.msra.mxu0 0.0
        %2151 = vmatprep.subr.mxu0 0.0
        %2152 = vmatpush1.msra.mxu0 0.0
        %2153 = vmatprep.subr.mxu0 0.0
        %2154 = vmatpush1.msra.mxu0 0.0
        %2155 = vmatprep.subr.mxu0 0.0
        %2156 = vmatpush1.msra.mxu0 0.0
        %2157 = vmatprep.subr.mxu0 0.0
        %2158 = vmatpush1.msra.mxu0 0.0
        %2159 = vmatprep.subr.mxu0 0.0
        %2160 = vmatpush1.msra.mxu0 0.0
        %2161 = vmatprep.subr.mxu0 0.0
        %2162 = vmatpush1.msra.mxu0 0.0
        %2163 = vmatprep.mubr.f32.mxu0 0.0
        %2164 = vmatmul.mubr.f32.gmra.mrb[0].mxu0 %v636
        %v2165 = vpop.f32.mrb[0].mxu0
        %v2166 = vadd.f32 0.0, %v2165
        %v2167 = vpop.f32.mrb[0].mxu0
        %2168 = vdwg.mxu0
        %v2170 = vsel %vm634, %v2166, 0
        %2172 = vmatprep.subr.mxu0 0.0
        %2173 = vmatpush1.msra.mxu0 %v1928
        %2174 = vmatprep.subr.mxu0 0.0
        %2175 = vmatpush1.msra.mxu0 %v1929
        %2176 = vmatprep.subr.mxu0 0.0
        %2177 = vmatpush1.msra.mxu0 %v1930
        %2178 = vmatprep.subr.mxu0 0.0
        %2179 = vmatpush1.msra.mxu0 %v1931
        %2180 = vmatprep.subr.mxu0 0.0
        %2181 = vmatpush1.msra.mxu0 %v1932
        %2182 = vmatprep.subr.mxu0 0.0
        %2183 = vmatpush1.msra.mxu0 %v1933
        %2184 = vmatprep.subr.mxu0 0.0
        %2185 = vmatpush1.msra.mxu0 %v1934
        %2186 = vmatprep.subr.mxu0 0.0
        %2187 = vmatpush1.msra.mxu0 %v1935
        %2188 = vmatprep.subr.mxu0 0.0
        %2189 = vmatpush1.msra.mxu0 0.0
        %2190 = vmatprep.subr.mxu0 0.0
        %2191 = vmatpush1.msra.mxu0 0.0
        %2192 = vmatprep.subr.mxu0 0.0
        %2193 = vmatpush1.msra.mxu0 0.0
        %2194 = vmatprep.subr.mxu0 0.0
        %2195 = vmatpush1.msra.mxu0 0.0
        %2196 = vmatprep.subr.mxu0 0.0
        %2197 = vmatpush1.msra.mxu0 0.0
        %2198 = vmatprep.subr.mxu0 0.0
        %2199 = vmatpush1.msra.mxu0 0.0
        %2200 = vmatprep.subr.mxu0 0.0
        %2201 = vmatpush1.msra.mxu0 0.0
        %2202 = vmatprep.subr.mxu0 0.0
        %2203 = vmatpush1.msra.mxu0 0.0
        %2204 = vmatprep.subr.mxu0 0.0
        %2205 = vmatpush1.msra.mxu0 0.0
        %2206 = vmatprep.subr.mxu0 0.0
        %2207 = vmatpush1.msra.mxu0 0.0
        %2208 = vmatprep.subr.mxu0 0.0
        %2209 = vmatpush1.msra.mxu0 0.0
        %2210 = vmatprep.subr.mxu0 0.0
        %2211 = vmatpush1.msra.mxu0 0.0
        %2212 = vmatprep.subr.mxu0 0.0
        %2213 = vmatpush1.msra.mxu0 0.0
        %2214 = vmatprep.subr.mxu0 0.0
        %2215 = vmatpush1.msra.mxu0 0.0
        %2216 = vmatprep.subr.mxu0 0.0
        %2217 = vmatpush1.msra.mxu0 0.0
        %2218 = vmatprep.subr.mxu0 0.0
        %2219 = vmatpush1.msra.mxu0 0.0
        %2220 = vmatprep.subr.mxu0 0.0
        %2221 = vmatpush1.msra.mxu0 0.0
        %2222 = vmatprep.subr.mxu0 0.0
        %2223 = vmatpush1.msra.mxu0 0.0
        %2224 = vmatprep.subr.mxu0 0.0
        %2225 = vmatpush1.msra.mxu0 0.0
        %2226 = vmatprep.subr.mxu0 0.0
        %2227 = vmatpush1.msra.mxu0 0.0
        %2228 = vmatprep.subr.mxu0 0.0
        %2229 = vmatpush1.msra.mxu0 0.0
        %2230 = vmatprep.subr.mxu0 0.0
        %2231 = vmatpush1.msra.mxu0 0.0
        %2232 = vmatprep.subr.mxu0 0.0
        %2233 = vmatpush1.msra.mxu0 0.0
        %2234 = vmatprep.subr.mxu0 0.0
        %2235 = vmatpush1.msra.mxu0 0.0
        %2236 = vmatprep.mubr.f32.mxu0 0.0
        %2237 = vmatmul.mubr.f32.gmra.mrb[0].mxu0 %v2170
        %v2238 = vpop.f32.mrb[0].mxu0
        %v2239 = vadd.f32 0.0, %v2238
        %v2240 = vpop.f32.mrb[0].mxu0
        %2241 = vdwg.mxu0
        %v2242 = vadd.f32 %v2239, 1e-06
        %v2243 = vrsqrt.pop %v2242
        %v2244 = vmul.f32 %v2243, %v1926
        %v2245 = vlaneseq
        %v2246 = vshrl.u32 %v2245, 7
        %v2247 = vsub.s32 0, %v2246
        %v2248 = vrot.slane %v2244, %v2247
        %v2249 = vmul.f32 %v2083, %v2248
        %v2250 = vmul.f32 %v2084, %v2248
        %v2251 = vmul.f32 %v2085, %v2248
        %v2252 = vmul.f32 %v2086, %v2248
        %v2253 = vmul.f32 %v2087, %v2248
        %v2254 = vmul.f32 %v2088, %v2248
        %v2255 = vmul.f32 %v2089, %v2248
        %v2256 = vmul.f32 %v2090, %v2248
        %v2258 = vlaneseq
        %v2259 = vshrl.u32 %v2258, 7
        %v2260 = vsub.s32 0, %v2259
        %v2261 = vrot.slane %v1927, %v2260
        %v2263 = vadd.f32 %v2249, %v2261
        %v2264 = vadd.f32 %v2250, %v2261
        %v2265 = vadd.f32 %v2251, %v2261
        %v2266 = vadd.f32 %v2252, %v2261
        %v2267 = vadd.f32 %v2253, %v2261
        %v2268 = vadd.f32 %v2254, %v2261
        %v2269 = vadd.f32 %v2255, %v2261
        %v2270 = vadd.f32 %v2256, %v2261
        %v2271 = vxor.u32 %v2263, 2147483648
        %v2272 = vxor.u32 %v2264, 2147483648
        %v2273 = vxor.u32 %v2265, 2147483648
        %v2274 = vxor.u32 %v2266, 2147483648
        %v2275 = vxor.u32 %v2267, 2147483648
        %v2276 = vxor.u32 %v2268, 2147483648
        %v2277 = vxor.u32 %v2269, 2147483648
        %v2278 = vxor.u32 %v2270, 2147483648
        %v2279 = vmul.f32 %v2271, 1.442695
        %v2280 = vpow.pop %v2279
        %v2281 = vmul.f32 %v2272, 1.442695
        %v2282 = vpow.pop %v2281
        %v2283 = vmul.f32 %v2273, 1.442695
        %v2284 = vpow.pop %v2283
        %v2285 = vmul.f32 %v2274, 1.442695
        %v2286 = vpow.pop %v2285
        %v2287 = vmul.f32 %v2275, 1.442695
        %v2288 = vpow.pop %v2287
        %v2289 = vmul.f32 %v2276, 1.442695
        %v2290 = vpow.pop %v2289
        %v2291 = vmul.f32 %v2277, 1.442695
        %v2292 = vpow.pop %v2291
        %v2293 = vmul.f32 %v2278, 1.442695
        %v2294 = vpow.pop %v2293
        %v2295 = vadd.f32 %v2280, 1.0
        %v2296 = vadd.f32 %v2282, 1.0
        %v2297 = vadd.f32 %v2284, 1.0
        %v2298 = vadd.f32 %v2286, 1.0
        %v2299 = vadd.f32 %v2288, 1.0
        %v2300 = vadd.f32 %v2290, 1.0
        %v2301 = vadd.f32 %v2292, 1.0
        %v2302 = vadd.f32 %v2294, 1.0
        %v2303 = vrcp.pop %v2295
        %v2304 = vmul.f32 1.0, %v2303
        %v2305 = vrcp.pop %v2296
        %v2306 = vmul.f32 1.0, %v2305
        %v2307 = vrcp.pop %v2297
        %v2308 = vmul.f32 1.0, %v2307
        %v2309 = vrcp.pop %v2298
        %v2310 = vmul.f32 1.0, %v2309
        %v2311 = vrcp.pop %v2299
        %v2312 = vmul.f32 1.0, %v2311
        %v2313 = vrcp.pop %v2300
        %v2314 = vmul.f32 1.0, %v2313
        %v2315 = vrcp.pop %v2301
        %v2316 = vmul.f32 1.0, %v2315
        %v2317 = vrcp.pop %v2302
        %v2318 = vmul.f32 1.0, %v2317
        %v2319 = vmul.f32 %v2263, %v2304
        %v2320 = vmul.f32 %v2264, %v2306
        %v2321 = vmul.f32 %v2265, %v2308
        %v2322 = vmul.f32 %v2266, %v2310
        %v2323 = vmul.f32 %v2267, %v2312
        %v2324 = vmul.f32 %v2268, %v2314
        %v2325 = vmul.f32 %v2269, %v2316
        %v2326 = vmul.f32 %v2270, %v2318
        %v2327 = vpack.c.bf16 %v2320, %v2319
        %v2328 = vpack.c.bf16 %v2322, %v2321
        %v2329 = vpack.c.bf16 %v2324, %v2323
        %v2330 = vpack.c.bf16 %v2326, %v2325
        %v2335 = vunpack.c.l.b16 %v2327
        %v2336 = vunpack.c.h.b16 %v2327
        %v2337 = vunpack.c.l.b16 %v2328
        %v2338 = vunpack.c.h.b16 %v2328
        %v2339 = vunpack.c.l.b16 %v2329
        %v2340 = vunpack.c.h.b16 %v2329
        %v2341 = vunpack.c.l.b16 %v2330
        %v2342 = vunpack.c.h.b16 %v2330
        %v2343 = vpack.c.b16 %v2335, %v2335
        %v2344 = vpack.c.b16 %v2336, %v2336
        %v2345 = vpack.c.b16 %v2337, %v2337
        %v2346 = vpack.c.b16 %v2338, %v2338
        %v2347 = vpack.c.b16 %v2339, %v2339
        %v2348 = vpack.c.b16 %v2340, %v2340
        %v2349 = vpack.c.b16 %v2341, %v2341
        %v2350 = vpack.c.b16 %v2342, %v2342
        %v2351 = vld [vmem:[#allocation17] sm:$0xf]
        %v2352 = vld [vmem:[#allocation17 + $0x4] sm:$0xf]
        %v2353 = vld [vmem:[#allocation17 + $0x8] sm:$0xf]
        %v2354 = vld [vmem:[#allocation17 + $0xc] sm:$0xf]
        %v2355 = vld [vmem:[#allocation17 + $0x10] sm:$0xf]
        %v2356 = vld [vmem:[#allocation17 + $0x14] sm:$0xf]
        %v2357 = vld [vmem:[#allocation17 + $0x18] sm:$0xf]
        %v2358 = vld [vmem:[#allocation17 + $0x1c] sm:$0xf]
        %v2359 = vld [vmem:[#allocation17 + $0x20] sm:$0xf]
        %v2360 = vld [vmem:[#allocation17 + $0x24] sm:$0xf]
        %v2361 = vld [vmem:[#allocation17 + $0x28] sm:$0xf]
        %v2362 = vld [vmem:[#allocation17 + $0x2c] sm:$0xf]
        %v2363 = vld [vmem:[#allocation17 + $0x30] sm:$0xf]
        %v2364 = vld [vmem:[#allocation17 + $0x34] sm:$0xf]
        %v2365 = vld [vmem:[#allocation17 + $0x38] sm:$0xf]
        %v2366 = vld [vmem:[#allocation17 + $0x3c] sm:$0xf]
        %v2367 = vld [vmem:[#allocation17 + $0x40] sm:$0xf]
        %v2368 = vld [vmem:[#allocation17 + $0x44] sm:$0xf]
        %v2369 = vld [vmem:[#allocation17 + $0x48] sm:$0xf]
        %v2370 = vld [vmem:[#allocation17 + $0x4c] sm:$0xf]
        %v2371 = vld [vmem:[#allocation17 + $0x50] sm:$0xf]
        %v2372 = vld [vmem:[#allocation17 + $0x54] sm:$0xf]
        %v2373 = vld [vmem:[#allocation17 + $0x58] sm:$0xf]
        %v2374 = vld [vmem:[#allocation17 + $0x5c] sm:$0xf]
        %v2375 = vld [vmem:[#allocation17 + $0x60] sm:$0xf]
        %v2376 = vld [vmem:[#allocation17 + $0x64] sm:$0xf]
        %v2377 = vld [vmem:[#allocation17 + $0x68] sm:$0xf]
        %v2378 = vld [vmem:[#allocation17 + $0x6c] sm:$0xf]
        %v2379 = vld [vmem:[#allocation17 + $0x70] sm:$0xf]
        %v2380 = vld [vmem:[#allocation17 + $0x74] sm:$0xf]
        %v2381 = vld [vmem:[#allocation17 + $0x78] sm:$0xf]
        %v2382 = vld [vmem:[#allocation17 + $0x7c] sm:$0xf]
        %v2383 = vld [vmem:[#allocation17 + $0x80] sm:$0xf]
        %v2384 = vld [vmem:[#allocation17 + $0x84] sm:$0xf]
        %v2385 = vld [vmem:[#allocation17 + $0x88] sm:$0xf]
        %v2386 = vld [vmem:[#allocation17 + $0x8c] sm:$0xf]
        %v2387 = vld [vmem:[#allocation17 + $0x90] sm:$0xf]
        %v2388 = vld [vmem:[#allocation17 + $0x94] sm:$0xf]
        %v2389 = vld [vmem:[#allocation17 + $0x98] sm:$0xf]
        %v2390 = vld [vmem:[#allocation17 + $0x9c] sm:$0xf]
        %v2391 = vld [vmem:[#allocation17 + $0xa0] sm:$0xf]
        %v2392 = vld [vmem:[#allocation17 + $0xa4] sm:$0xf]
        %v2393 = vld [vmem:[#allocation17 + $0xa8] sm:$0xf]
        %v2394 = vld [vmem:[#allocation17 + $0xac] sm:$0xf]
        %v2395 = vld [vmem:[#allocation17 + $0xb0] sm:$0xf]
        %v2396 = vld [vmem:[#allocation17 + $0xb4] sm:$0xf]
        %v2397 = vld [vmem:[#allocation17 + $0xb8] sm:$0xf]
        %v2398 = vld [vmem:[#allocation17 + $0xbc] sm:$0xf]
        %v2399 = vld [vmem:[#allocation17 + $0xc0] sm:$0xf]
        %v2400 = vld [vmem:[#allocation17 + $0xc4] sm:$0xf]
        %v2401 = vld [vmem:[#allocation17 + $0xc8] sm:$0xf]
        %v2402 = vld [vmem:[#allocation17 + $0xcc] sm:$0xf]
        %v2403 = vld [vmem:[#allocation17 + $0xd0] sm:$0xf]
        %v2404 = vld [vmem:[#allocation17 + $0xd4] sm:$0xf]
        %v2405 = vld [vmem:[#allocation17 + $0xd8] sm:$0xf]
        %v2406 = vld [vmem:[#allocation17 + $0xdc] sm:$0xf]
        %v2407 = vld [vmem:[#allocation17 + $0xe0] sm:$0xf]
        %v2408 = vld [vmem:[#allocation17 + $0xe4] sm:$0xf]
        %v2409 = vld [vmem:[#allocation17 + $0xe8] sm:$0xf]
        %v2410 = vld [vmem:[#allocation17 + $0xec] sm:$0xf]
        %v2411 = vld [vmem:[#allocation17 + $0xf0] sm:$0xf]
        %v2412 = vld [vmem:[#allocation17 + $0xf4] sm:$0xf]
        %v2413 = vld [vmem:[#allocation17 + $0xf8] sm:$0xf]
        %v2414 = vld [vmem:[#allocation17 + $0xfc] sm:$0xf]
        %v2415 = vld [vmem:[#allocation17 + $0x100] sm:$0xf]
        %v2416 = vld [vmem:[#allocation17 + $0x104] sm:$0xf]
        %v2417 = vld [vmem:[#allocation17 + $0x108] sm:$0xf]
        %v2418 = vld [vmem:[#allocation17 + $0x10c] sm:$0xf]
        %v2419 = vld [vmem:[#allocation17 + $0x110] sm:$0xf]
        %v2420 = vld [vmem:[#allocation17 + $0x114] sm:$0xf]
        %v2421 = vld [vmem:[#allocation17 + $0x118] sm:$0xf]
        %v2422 = vld [vmem:[#allocation17 + $0x11c] sm:$0xf]
        %v2423 = vld [vmem:[#allocation19] sm:$0x1]
        %v2425 = vshrl.u32 %v2343, 16
        %v2427 = vrot.slane %v2425, 7
        %v2428 = vshll.u32 %v2343, 16
        %v2430 = vor.u32 %v2427, %v2428
        %v2432 = vshrl.u32 %v2344, 16
        %v2434 = vrot.slane %v2432, 7
        %v2435 = vshll.u32 %v2344, 16
        %v2437 = vor.u32 %v2434, %v2435
        %v2439 = vshrl.u32 %v2345, 16
        %v2441 = vrot.slane %v2439, 7
        %v2442 = vshll.u32 %v2345, 16
        %v2444 = vor.u32 %v2441, %v2442
        %v2446 = vshrl.u32 %v2346, 16
        %v2448 = vrot.slane %v2446, 7
        %v2449 = vshll.u32 %v2346, 16
        %v2451 = vor.u32 %v2448, %v2449
        %v2453 = vshrl.u32 %v2347, 16
        %v2455 = vrot.slane %v2453, 7
        %v2456 = vshll.u32 %v2347, 16
        %v2458 = vor.u32 %v2455, %v2456
        %v2460 = vshrl.u32 %v2348, 16
        %v2462 = vrot.slane %v2460, 7
        %v2463 = vshll.u32 %v2348, 16
        %v2465 = vor.u32 %v2462, %v2463
        %v2467 = vshrl.u32 %v2349, 16
        %v2469 = vrot.slane %v2467, 7
        %v2470 = vshll.u32 %v2349, 16
        %v2472 = vor.u32 %v2469, %v2470
        %v2474 = vshrl.u32 %v2350, 16
        %v2476 = vrot.slane %v2474, 7
        %v2477 = vshll.u32 %v2350, 16
        %v2479 = vor.u32 %v2476, %v2477
        %v2488 = vsel %vm1277, 0, %v2430
        %v2489 = vsel %vm1277, 0, %v2437
        %v2490 = vsel %vm1277, 0, %v2444
        %v2491 = vsel %vm1277, 0, %v2451
        %v2492 = vsel %vm1277, 0, %v2458
        %v2493 = vsel %vm1277, 0, %v2465
        %v2494 = vsel %vm1277, 0, %v2472
        %v2495 = vsel %vm1277, 0, %v2479
        %v2496 = vsel %vm1289, %v2488, 0
        %v2497 = vsel %vm1289, %v2489, 0
        %v2498 = vsel %vm1289, %v2490, 0
        %v2499 = vsel %vm1289, %v2491, 0
        %v2500 = vsel %vm1289, %v2492, 0
        %v2501 = vsel %vm1289, %v2493, 0
        %v2502 = vsel %vm1289, %v2494, 0
        %v2503 = vsel %vm1289, %v2495, 0
        %v2511 = vunpack.c.l.b16 %v2496
        %v2512 = vunpack.c.h.b16 %v2496
        %v2513 = vunpack.c.l.b16 %v2497
        %v2514 = vunpack.c.h.b16 %v2497
        %v2515 = vunpack.c.l.b16 %v2498
        %v2516 = vunpack.c.h.b16 %v2498
        %v2517 = vunpack.c.l.b16 %v2499
        %v2518 = vunpack.c.h.b16 %v2499
        %v2519 = vunpack.c.l.b16 %v2500
        %v2520 = vunpack.c.h.b16 %v2500
        %v2521 = vunpack.c.l.b16 %v2501
        %v2522 = vunpack.c.h.b16 %v2501
        %v2523 = vunpack.c.l.b16 %v2502
        %v2524 = vunpack.c.h.b16 %v2502
        %v2525 = vpack.c.b16 %v2511, %v2511
        %v2526 = vpack.c.b16 %v2512, %v2512
        %v2527 = vpack.c.b16 %v2513, %v2513
        %v2528 = vpack.c.b16 %v2514, %v2514
        %v2529 = vpack.c.b16 %v2515, %v2515
        %v2530 = vpack.c.b16 %v2516, %v2516
        %v2531 = vpack.c.b16 %v2517, %v2517
        %v2532 = vpack.c.b16 %v2518, %v2518
        %v2533 = vpack.c.b16 %v2519, %v2519
        %v2534 = vpack.c.b16 %v2520, %v2520
        %v2535 = vpack.c.b16 %v2521, %v2521
        %v2536 = vpack.c.b16 %v2522, %v2522
        %v2537 = vpack.c.b16 %v2523, %v2523
        %v2538 = vpack.c.b16 %v2524, %v2524
        %v2540 = vshrl.u32 %v2525, 16
        %v2542 = vrot.slane %v2540, 4
        %v2543 = vshll.u32 %v2525, 16
        %v2545 = vrot.slane %v2543, 5
        %v2546 = vor.u32 %v2542, %v2545
        %v2547 = vrot.slane %v2546, 4
        %v2549 = vshll.u32 %v2526, 16
        %v2551 = vrot.slane %v2549, 5
        %v2552 = vsel %vm1341, %v2547, %v2551
        %v2554 = vshrl.u32 %v2527, 16
        %v2556 = vrot.slane %v2554, 4
        %v2557 = vshll.u32 %v2527, 16
        %v2559 = vrot.slane %v2557, 5
        %v2560 = vor.u32 %v2556, %v2559
        %v2561 = vrot.slane %v2560, 4
        %v2563 = vshll.u32 %v2528, 16
        %v2565 = vrot.slane %v2563, 5
        %v2566 = vsel %vm1341, %v2561, %v2565
        %v2568 = vshrl.u32 %v2529, 16
        %v2570 = vrot.slane %v2568, 4
        %v2571 = vshll.u32 %v2529, 16
        %v2573 = vrot.slane %v2571, 5
        %v2574 = vor.u32 %v2570, %v2573
        %v2575 = vrot.slane %v2574, 4
        %v2577 = vshll.u32 %v2530, 16
        %v2579 = vrot.slane %v2577, 5
        %v2580 = vsel %vm1341, %v2575, %v2579
        %v2582 = vshrl.u32 %v2531, 16
        %v2584 = vrot.slane %v2582, 4
        %v2585 = vshll.u32 %v2531, 16
        %v2587 = vrot.slane %v2585, 5
        %v2588 = vor.u32 %v2584, %v2587
        %v2589 = vrot.slane %v2588, 4
        %v2591 = vshll.u32 %v2532, 16
        %v2593 = vrot.slane %v2591, 5
        %v2594 = vsel %vm1341, %v2589, %v2593
        %v2596 = vshrl.u32 %v2533, 16
        %v2598 = vrot.slane %v2596, 4
        %v2599 = vshll.u32 %v2533, 16
        %v2601 = vrot.slane %v2599, 5
        %v2602 = vor.u32 %v2598, %v2601
        %v2603 = vrot.slane %v2602, 4
        %v2605 = vshll.u32 %v2534, 16
        %v2607 = vrot.slane %v2605, 5
        %v2608 = vsel %vm1341, %v2603, %v2607
        %v2610 = vshrl.u32 %v2535, 16
        %v2612 = vrot.slane %v2610, 4
        %v2613 = vshll.u32 %v2535, 16
        %v2615 = vrot.slane %v2613, 5
        %v2616 = vor.u32 %v2612, %v2615
        %v2617 = vrot.slane %v2616, 4
        %v2619 = vshll.u32 %v2536, 16
        %v2621 = vrot.slane %v2619, 5
        %v2622 = vsel %vm1341, %v2617, %v2621
        %v2624 = vshrl.u32 %v2537, 16
        %v2626 = vrot.slane %v2624, 4
        %v2627 = vshll.u32 %v2537, 16
        %v2629 = vrot.slane %v2627, 5
        %v2630 = vor.u32 %v2626, %v2629
        %v2631 = vrot.slane %v2630, 4
        %v2633 = vshll.u32 %v2538, 16
        %v2635 = vrot.slane %v2633, 5
        %v2636 = vsel %vm1341, %v2631, %v2635
        %v2637 = vrot.slane %v2525, 5
        %v2638 = vrot.slane %v2637, 4
        %v2639 = vrot.slane %v2526, 5
        %v2640 = vsel %vm1456, %v2638, %v2639
        %v2641 = vrot.slane %v2527, 5
        %v2642 = vrot.slane %v2641, 4
        %v2643 = vrot.slane %v2528, 5
        %v2644 = vsel %vm1456, %v2642, %v2643
        %v2645 = vrot.slane %v2529, 5
        %v2646 = vrot.slane %v2645, 4
        %v2647 = vrot.slane %v2530, 5
        %v2648 = vsel %vm1456, %v2646, %v2647
        %v2649 = vrot.slane %v2531, 5
        %v2650 = vrot.slane %v2649, 4
        %v2651 = vrot.slane %v2532, 5
        %v2652 = vsel %vm1456, %v2650, %v2651
        %v2653 = vrot.slane %v2533, 5
        %v2654 = vrot.slane %v2653, 4
        %v2655 = vrot.slane %v2534, 5
        %v2656 = vsel %vm1456, %v2654, %v2655
        %v2657 = vrot.slane %v2535, 5
        %v2658 = vrot.slane %v2657, 4
        %v2659 = vrot.slane %v2536, 5
        %v2660 = vsel %vm1456, %v2658, %v2659
        %v2661 = vrot.slane %v2537, 5
        %v2662 = vrot.slane %v2661, 4
        %v2663 = vrot.slane %v2538, 5
        %v2664 = vsel %vm1456, %v2662, %v2663
        %v2666 = vunpack.c.l.b16 %v2503
        %v2667 = vunpack.c.h.b16 %v2503
        %v2668 = vpack.c.b16 %v2666, %v2666
        %v2669 = vpack.c.b16 %v2667, %v2667
        %v2671 = vshrl.u32 %v2668, 16
        %v2673 = vrot.slane %v2671, 4
        %v2674 = vshll.u32 %v2668, 16
        %v2676 = vrot.slane %v2674, 5
        %v2677 = vor.u32 %v2673, %v2676
        %v2678 = vrot.slane %v2677, 4
        %v2680 = vshll.u32 %v2669, 16
        %v2682 = vrot.slane %v2680, 5
        %v2683 = vsel %vm1341, %v2678, %v2682
        %v2684 = vrot.slane %v2668, 5
        %v2685 = vrot.slane %v2684, 4
        %v2686 = vrot.slane %v2669, 5
        %v2687 = vsel %vm1456, %v2685, %v2686
        %v2688 = vpack.c.b16 %v2511, %v1307
        %v2689 = vpack.c.b16 %v2515, %v2513
        %v2690 = vpack.c.b16 %v2519, %v2517
        %v2691 = vpack.c.b16 %v2523, %v2521
        %v2692 = vunpack.c.l.b16 %v2552
        %v2693 = vunpack.c.l.b16 %v2566
        %v2694 = vunpack.c.l.b16 %v2580
        %v2695 = vunpack.c.l.b16 %v2594
        %v2696 = vunpack.c.l.b16 %v2608
        %v2697 = vunpack.c.l.b16 %v2622
        %v2698 = vunpack.c.l.b16 %v2636
        %v2699 = vpack.c.b16 %v2692, %v1516
        %v2700 = vpack.c.b16 %v2694, %v2693
        %v2701 = vpack.c.b16 %v2696, %v2695
        %v2702 = vpack.c.b16 %v2698, %v2697
        %2703 = vrot.lane.b32.xlu0 %v2699, 64
        %v2704 = vpop.permute.xlu0 %2703
        %2705 = vrot.lane.b32.xlu0 %v2700, 64
        %v2706 = vpop.permute.xlu0 %2705
        %2707 = vrot.lane.b32.xlu0 %v2701, 64
        %v2708 = vpop.permute.xlu0 %2707
        %2709 = vrot.lane.b32.xlu0 %v2702, 64
        %v2710 = vpop.permute.xlu0 %2709
        %v2711 = vunpack.c.l.b16 %v2640
        %v2712 = vunpack.c.l.b16 %v2644
        %v2713 = vunpack.c.l.b16 %v2648
        %v2714 = vunpack.c.l.b16 %v2652
        %v2715 = vunpack.c.l.b16 %v2656
        %v2716 = vunpack.c.l.b16 %v2660
        %v2717 = vunpack.c.l.b16 %v2664
        %v2718 = vpack.c.b16 %v2711, %v1536
        %v2719 = vpack.c.b16 %v2713, %v2712
        %v2720 = vpack.c.b16 %v2715, %v2714
        %v2721 = vpack.c.b16 %v2717, %v2716
        %v2722 = vpack.c.b16 %v2513, %v2511
        %v2723 = vpack.c.b16 %v2517, %v2515
        %v2724 = vpack.c.b16 %v2521, %v2519
        %v2725 = vpack.c.b16 %v2666, %v2523
        %2726 = vrot.lane.b32.xlu0 %v2722, 64
        %v2727 = vpop.permute.xlu0 %2726
        %2728 = vrot.lane.b32.xlu0 %v2723, 64
        %v2729 = vpop.permute.xlu0 %2728
        %2730 = vrot.lane.b32.xlu0 %v2724, 64
        %v2731 = vpop.permute.xlu0 %2730
        %2732 = vrot.lane.b32.xlu0 %v2725, 64
        %v2733 = vpop.permute.xlu0 %2732
        %v2734 = vunpack.c.l.b16 %v2683
        %v2735 = vpack.c.b16 %v2693, %v2692
        %v2736 = vpack.c.b16 %v2695, %v2694
        %v2737 = vpack.c.b16 %v2697, %v2696
        %v2738 = vpack.c.b16 %v2734, %v2698
        %v2739 = vunpack.c.l.b16 %v2687
        %v2740 = vpack.c.b16 %v2712, %v2711
        %v2741 = vpack.c.b16 %v2714, %v2713
        %v2742 = vpack.c.b16 %v2716, %v2715
        %v2743 = vpack.c.b16 %v2739, %v2717
        %2744 = vrot.lane.b32.xlu0 %v2740, 64
        %v2745 = vpop.permute.xlu0 %2744
        %2746 = vrot.lane.b32.xlu0 %v2741, 64
        %v2747 = vpop.permute.xlu0 %2746
        %2748 = vrot.lane.b32.xlu0 %v2742, 64
        %v2749 = vpop.permute.xlu0 %2748
        %2750 = vrot.lane.b32.xlu0 %v2743, 64
        %v2751 = vpop.permute.xlu0 %2750
        %v2752 = vpack.c.b16 %v1307, %v2666
        %v2753 = vpack.c.b16 %v1516, %v2734
        %2754 = vrot.lane.b32.xlu0 %v2753, 64
        %v2755 = vpop.permute.xlu0 %2754
        %v2756 = vpack.c.b16 %v1536, %v2739
        %v2759 = vsel %vm634, %v2688, %v2704
        %v2763 = vsel %vm634, %v2689, %v2706
        %v2767 = vsel %vm634, %v2690, %v2708
        %v2771 = vsel %vm634, %v2691, %v2710
        %v2775 = vsel %vm634, %v2718, %v2727
        %v2779 = vsel %vm634, %v2719, %v2729
        %v2783 = vsel %vm634, %v2720, %v2731
        %v2787 = vsel %vm634, %v2721, %v2733
        %v2791 = vsel %vm634, %v2735, %v2745
        %v2795 = vsel %vm634, %v2736, %v2747
        %v2799 = vsel %vm634, %v2737, %v2749
        %v2803 = vsel %vm634, %v2738, %v2751
        %v2807 = vsel %vm634, %v2752, %v2755
        %v2810 = vlaneseq
        %v2811 = vshrl.u32 %v2810, 7
        %v2812 = vsub.s32 0, %v2811
        %v2813 = vrot.slane %v2423, %v2812
        %v2887 = vunpack.c.l.b16 %v2351
        %v2888 = vunpack.c.l.b16 %v2352
        %v2889 = vunpack.c.l.b16 %v2353
        %v2890 = vunpack.c.l.b16 %v2354
        %v2891 = vunpack.c.l.b16 %v2355
        %v2892 = vunpack.c.l.b16 %v2356
        %v2893 = vunpack.c.l.b16 %v2357
        %v2894 = vunpack.c.l.b16 %v2358
        %v2895 = vunpack.c.l.b16 %v2359
        %v2896 = vunpack.c.l.b16 %v2360
        %v2897 = vunpack.c.l.b16 %v2361
        %v2898 = vunpack.c.l.b16 %v2362
        %v2899 = vunpack.c.l.b16 %v2363
        %v2900 = vunpack.c.l.b16 %v2364
        %v2901 = vunpack.c.l.b16 %v2365
        %v2902 = vunpack.c.l.b16 %v2366
        %v2903 = vunpack.c.l.b16 %v2367
        %v2904 = vunpack.c.l.b16 %v2368
        %v2905 = vunpack.c.l.b16 %v2369
        %v2906 = vunpack.c.l.b16 %v2370
        %v2907 = vunpack.c.l.b16 %v2371
        %v2908 = vunpack.c.l.b16 %v2372
        %v2909 = vunpack.c.l.b16 %v2373
        %v2910 = vunpack.c.l.b16 %v2374
        %v2911 = vunpack.c.l.b16 %v2375
        %v2912 = vunpack.c.l.b16 %v2376
        %v2913 = vunpack.c.l.b16 %v2377
        %v2914 = vunpack.c.l.b16 %v2378
        %v2915 = vunpack.c.l.b16 %v2379
        %v2916 = vunpack.c.l.b16 %v2380
        %v2917 = vunpack.c.l.b16 %v2381
        %v2918 = vunpack.c.l.b16 %v2382
        %v2919 = vunpack.c.l.b16 %v2383
        %v2920 = vunpack.c.l.b16 %v2384
        %v2921 = vunpack.c.l.b16 %v2385
        %v2922 = vunpack.c.l.b16 %v2386
        %v2923 = vunpack.c.l.b16 %v2387
        %v2924 = vunpack.c.l.b16 %v2388
        %v2925 = vunpack.c.l.b16 %v2389
        %v2926 = vunpack.c.l.b16 %v2390
        %v2927 = vunpack.c.l.b16 %v2391
        %v2928 = vunpack.c.l.b16 %v2392
        %v2929 = vunpack.c.l.b16 %v2393
        %v2930 = vunpack.c.l.b16 %v2394
        %v2931 = vunpack.c.l.b16 %v2395
        %v2932 = vunpack.c.l.b16 %v2396
        %v2933 = vunpack.c.l.b16 %v2397
        %v2934 = vunpack.c.l.b16 %v2398
        %v2935 = vunpack.c.l.b16 %v2399
        %v2936 = vunpack.c.l.b16 %v2400
        %v2937 = vunpack.c.l.b16 %v2401
        %v2938 = vunpack.c.l.b16 %v2402
        %v2939 = vunpack.c.l.b16 %v2403
        %v2940 = vunpack.c.l.b16 %v2404
        %v2941 = vunpack.c.l.b16 %v2405
        %v2942 = vunpack.c.l.b16 %v2406
        %v2943 = vunpack.c.l.b16 %v2407
        %v2944 = vunpack.c.l.b16 %v2408
        %v2945 = vunpack.c.l.b16 %v2409
        %v2946 = vunpack.c.l.b16 %v2410
        %v2947 = vunpack.c.l.b16 %v2411
        %v2948 = vunpack.c.l.b16 %v2412
        %v2949 = vunpack.c.l.b16 %v2413
        %v2950 = vunpack.c.l.b16 %v2414
        %v2951 = vunpack.c.l.b16 %v2415
        %v2952 = vunpack.c.l.b16 %v2416
        %v2953 = vunpack.c.l.b16 %v2417
        %v2954 = vunpack.c.l.b16 %v2418
        %v2955 = vunpack.c.l.b16 %v2419
        %v2956 = vunpack.c.l.b16 %v2420
        %v2957 = vunpack.c.l.b16 %v2421
        %v2958 = vunpack.c.l.b16 %v2422
        %v2959 = vpack.c.b16 %v2888, %v2887
        %v2960 = vpack.c.b16 %v2890, %v2889
        %v2961 = vpack.c.b16 %v2892, %v2891
        %v2962 = vpack.c.b16 %v2894, %v2893
        %v2963 = vpack.c.b16 %v2896, %v2895
        %v2964 = vpack.c.b16 %v2898, %v2897
        %v2965 = vpack.c.b16 %v2900, %v2899
        %v2966 = vpack.c.b16 %v2902, %v2901
        %v2967 = vpack.c.b16 %v2904, %v2903
        %v2968 = vpack.c.b16 %v2906, %v2905
        %v2969 = vpack.c.b16 %v2908, %v2907
        %v2970 = vpack.c.b16 %v2910, %v2909
        %v2971 = vpack.c.b16 %v2912, %v2911
        %v2972 = vpack.c.b16 %v2914, %v2913
        %v2973 = vpack.c.b16 %v2916, %v2915
        %v2974 = vpack.c.b16 %v2918, %v2917
        %v2975 = vpack.c.b16 %v2920, %v2919
        %v2976 = vpack.c.b16 %v2922, %v2921
        %v2977 = vpack.c.b16 %v2924, %v2923
        %v2978 = vpack.c.b16 %v2926, %v2925
        %v2979 = vpack.c.b16 %v2928, %v2927
        %v2980 = vpack.c.b16 %v2930, %v2929
        %v2981 = vpack.c.b16 %v2932, %v2931
        %v2982 = vpack.c.b16 %v2934, %v2933
        %v2983 = vpack.c.b16 %v2936, %v2935
        %v2984 = vpack.c.b16 %v2938, %v2937
        %v2985 = vpack.c.b16 %v2940, %v2939
        %v2986 = vpack.c.b16 %v2942, %v2941
        %v2987 = vpack.c.b16 %v2944, %v2943
        %v2988 = vpack.c.b16 %v2946, %v2945
        %v2989 = vpack.c.b16 %v2948, %v2947
        %v2990 = vpack.c.b16 %v2950, %v2949
        %v2991 = vpack.c.b16 %v2952, %v2951
        %v2992 = vpack.c.b16 %v2954, %v2953
        %v2993 = vpack.c.b16 %v2956, %v2955
        %v2994 = vpack.c.b16 %v2958, %v2957
        %v3031 = vsel %vm634, %v2719, 0
        %v3033 = vsel %vm634, %v2720, 0
        %v3035 = vsel %vm634, %v2721, 0
        %v3038 = vsel %vm634, %v2756, 0
        %3040 = vmatprep.subr.bf16.mxu0 0
        %3041 = vmatpush1.bf16.msra.mxu0 %v2959
        %3042 = vmatprep.subr.bf16.mxu0 0
        %3043 = vmatpush1.bf16.msra.mxu0 %v2960
        %3044 = vmatprep.subr.bf16.mxu0 0
        %3045 = vmatpush1.bf16.msra.mxu0 %v2961
        %3046 = vmatprep.subr.bf16.mxu0 0
        %3047 = vmatpush1.bf16.msra.mxu0 %v2962
        %3048 = vmatprep.subr.bf16.mxu0 0
        %3049 = vmatpush1.bf16.msra.mxu0 %v2963
        %3050 = vmatprep.subr.bf16.mxu0 0
        %3051 = vmatpush1.bf16.msra.mxu0 %v2964
        %3052 = vmatprep.subr.bf16.mxu0 0
        %3053 = vmatpush1.bf16.msra.mxu0 %v2965
        %3054 = vmatprep.subr.bf16.mxu0 0
        %3055 = vmatpush1.bf16.msra.mxu0 %v2966
        %3056 = vmatprep.subr.bf16.mxu0 0
        %3057 = vmatpush1.bf16.msra.mxu0 %v2967
        %3058 = vmatprep.subr.bf16.mxu0 0
        %3059 = vmatpush1.bf16.msra.mxu0 %v2968
        %3060 = vmatprep.subr.bf16.mxu0 0
        %3061 = vmatpush1.bf16.msra.mxu0 %v2969
        %3062 = vmatprep.subr.bf16.mxu0 0
        %3063 = vmatpush1.bf16.msra.mxu0 %v2970
        %3064 = vmatprep.subr.bf16.mxu0 0
        %3065 = vmatpush1.bf16.msra.mxu0 %v2971
        %3066 = vmatprep.subr.bf16.mxu0 0
        %3067 = vmatpush1.bf16.msra.mxu0 %v2972
        %3068 = vmatprep.subr.bf16.mxu0 0
        %3069 = vmatpush1.bf16.msra.mxu0 %v2973
        %3070 = vmatprep.subr.bf16.mxu0 0
        %3071 = vmatpush1.bf16.msra.mxu0 %v2974
        %3072 = vmatprep.mubr.bf16.mxu0 %v2775
        %3073 = vmatmul.mubr.bf16.gmra.mrb[0].mxu0 %v2759
        %v3074 = vpop.f32.mrb[0].mxu0
        %v3075 = vadd.f32 %v2813, %v3074
        %v3076 = vpop.f32.mrb[0].mxu0
        %v3077 = vpop.f32.mrb[0].mxu0
        %v3078 = vadd.f32 %v2813, %v3077
        %v3079 = vpop.f32.mrb[0].mxu0
        %3080 = vmatprep.mubr.bf16.mxu0 %v2779
        %3081 = vmatmul.mubr.bf16.gmra.mrb[0].mxu0 %v2763
        %v3082 = vpop.f32.mrb[0].mxu0
        %v3083 = vadd.f32 %v2813, %v3082
        %v3084 = vpop.f32.mrb[0].mxu0
        %v3085 = vpop.f32.mrb[0].mxu0
        %v3086 = vadd.f32 %v2813, %v3085
        %v3087 = vpop.f32.mrb[0].mxu0
        %3088 = vmatprep.mubr.bf16.mxu0 %v2783
        %3089 = vmatmul.mubr.bf16.gmra.mrb[0].mxu0 %v2767
        %v3090 = vpop.f32.mrb[0].mxu0
        %v3091 = vadd.f32 %v2813, %v3090
        %v3092 = vpop.f32.mrb[0].mxu0
        %v3093 = vpop.f32.mrb[0].mxu0
        %v3094 = vadd.f32 %v2813, %v3093
        %v3095 = vpop.f32.mrb[0].mxu0
        %3096 = vmatprep.mubr.bf16.mxu0 %v2787
        %3097 = vmatmul.mubr.bf16.gmra.mrb[0].mxu0 %v2771
        %v3098 = vpop.f32.mrb[0].mxu0
        %v3099 = vadd.f32 %v2813, %v3098
        %v3100 = vpop.f32.mrb[0].mxu0
        %v3101 = vpop.f32.mrb[0].mxu0
        %v3102 = vadd.f32 %v2813, %v3101
        %v3103 = vpop.f32.mrb[0].mxu0
        %3104 = vdwg.mxu0
        %3105 = vmatprep.subr.bf16.mxu0 0
        %3106 = vmatpush1.bf16.msra.mxu0 %v2975
        %3107 = vmatprep.subr.bf16.mxu0 0
        %3108 = vmatpush1.bf16.msra.mxu0 %v2976
        %3109 = vmatprep.subr.bf16.mxu0 0
        %3110 = vmatpush1.bf16.msra.mxu0 %v2977
        %3111 = vmatprep.subr.bf16.mxu0 0
        %3112 = vmatpush1.bf16.msra.mxu0 %v2978
        %3113 = vmatprep.subr.bf16.mxu0 0
        %3114 = vmatpush1.bf16.msra.mxu0 %v2979
        %3115 = vmatprep.subr.bf16.mxu0 0
        %3116 = vmatpush1.bf16.msra.mxu0 %v2980
        %3117 = vmatprep.subr.bf16.mxu0 0
        %3118 = vmatpush1.bf16.msra.mxu0 %v2981
        %3119 = vmatprep.subr.bf16.mxu0 0
        %3120 = vmatpush1.bf16.msra.mxu0 %v2982
        %3121 = vmatprep.subr.bf16.mxu0 0
        %3122 = vmatpush1.bf16.msra.mxu0 %v2983
        %3123 = vmatprep.subr.bf16.mxu0 0
        %3124 = vmatpush1.bf16.msra.mxu0 %v2984
        %3125 = vmatprep.subr.bf16.mxu0 0
        %3126 = vmatpush1.bf16.msra.mxu0 %v2985
        %3127 = vmatprep.subr.bf16.mxu0 0
        %3128 = vmatpush1.bf16.msra.mxu0 %v2986
        %3129 = vmatprep.subr.bf16.mxu0 0
        %3130 = vmatpush1.bf16.msra.mxu0 %v2987
        %3131 = vmatprep.subr.bf16.mxu0 0
        %3132 = vmatpush1.bf16.msra.mxu0 %v2988
        %3133 = vmatprep.subr.bf16.mxu0 0
        %3134 = vmatpush1.bf16.msra.mxu0 %v2989
        %3135 = vmatprep.subr.bf16.mxu0 0
        %3136 = vmatpush1.bf16.msra.mxu0 %v2990
        %3137 = vmatprep.mubr.bf16.mxu0 %v2763
        %3138 = vmatmul.mubr.bf16.gmra.mrb[0].mxu0 %v2791
        %v3139 = vpop.f32.mrb[0].mxu0
        %v3140 = vadd.f32 %v3075, %v3139
        %v3141 = vpop.f32.mrb[0].mxu0
        %v3142 = vpop.f32.mrb[0].mxu0
        %v3143 = vadd.f32 %v3078, %v3142
        %v3144 = vpop.f32.mrb[0].mxu0
        %3145 = vmatprep.mubr.bf16.mxu0 %v2767
        %3146 = vmatmul.mubr.bf16.gmra.mrb[0].mxu0 %v2795
        %v3147 = vpop.f32.mrb[0].mxu0
        %v3148 = vadd.f32 %v3083, %v3147
        %v3149 = vpop.f32.mrb[0].mxu0
        %v3150 = vpop.f32.mrb[0].mxu0
        %v3151 = vadd.f32 %v3086, %v3150
        %v3152 = vpop.f32.mrb[0].mxu0
        %3153 = vmatprep.mubr.bf16.mxu0 %v2771
        %3154 = vmatmul.mubr.bf16.gmra.mrb[0].mxu0 %v2799
        %v3155 = vpop.f32.mrb[0].mxu0
        %v3156 = vadd.f32 %v3091, %v3155
        %v3157 = vpop.f32.mrb[0].mxu0
        %v3158 = vpop.f32.mrb[0].mxu0
        %v3159 = vadd.f32 %v3094, %v3158
        %v3160 = vpop.f32.mrb[0].mxu0
        %3161 = vmatprep.mubr.bf16.mxu0 %v2807
        %3162 = vmatmul.mubr.bf16.gmra.mrb[0].mxu0 %v2803
        %v3163 = vpop.f32.mrb[0].mxu0
        %v3164 = vadd.f32 %v3099, %v3163
        %v3165 = vpop.f32.mrb[0].mxu0
        %v3166 = vpop.f32.mrb[0].mxu0
        %v3167 = vadd.f32 %v3102, %v3166
        %v3168 = vpop.f32.mrb[0].mxu0
        %3169 = vdwg.mxu0
        %3170 = vmatprep.subr.bf16.mxu0 0
        %3171 = vmatpush1.bf16.msra.mxu0 %v2991
        %3172 = vmatprep.subr.bf16.mxu0 0
        %3173 = vmatpush1.bf16.msra.mxu0 %v2992
        %3174 = vmatprep.subr.bf16.mxu0 0
        %3175 = vmatpush1.bf16.msra.mxu0 %v2993
        %3176 = vmatprep.subr.bf16.mxu0 0
        %3177 = vmatpush1.bf16.msra.mxu0 %v2994
        %3178 = vmatprep.subr.bf16.mxu0 0
        %3179 = vmatpush1.bf16.msra.mxu0 0
        %3180 = vmatprep.subr.bf16.mxu0 0
        %3181 = vmatpush1.bf16.msra.mxu0 0
        %3182 = vmatprep.subr.bf16.mxu0 0
        %3183 = vmatpush1.bf16.msra.mxu0 0
        %3184 = vmatprep.subr.bf16.mxu0 0
        %3185 = vmatpush1.bf16.msra.mxu0 0
        %3186 = vmatprep.subr.bf16.mxu0 0
        %3187 = vmatpush1.bf16.msra.mxu0 0
        %3188 = vmatprep.subr.bf16.mxu0 0
        %3189 = vmatpush1.bf16.msra.mxu0 0
        %3190 = vmatprep.subr.bf16.mxu0 0
        %3191 = vmatpush1.bf16.msra.mxu0 0
        %3192 = vmatprep.subr.bf16.mxu0 0
        %3193 = vmatpush1.bf16.msra.mxu0 0
        %3194 = vmatprep.subr.bf16.mxu0 0
        %3195 = vmatpush1.bf16.msra.mxu0 0
        %3196 = vmatprep.subr.bf16.mxu0 0
        %3197 = vmatpush1.bf16.msra.mxu0 0
        %3198 = vmatprep.subr.bf16.mxu0 0
        %3199 = vmatpush1.bf16.msra.mxu0 0
        %3200 = vmatprep.subr.bf16.mxu0 0
        %3201 = vmatpush1.bf16.msra.mxu0 0
        %3202 = vmatprep.mubr.bf16.mxu0 0
        %3203 = vmatmul.mubr.bf16.gmra.mrb[0].mxu0 %v3031
        %v3204 = vpop.f32.mrb[0].mxu0
        %v3205 = vadd.f32 %v3140, %v3204
        %v3206 = vpop.f32.mrb[0].mxu0
        %v3207 = vpop.f32.mrb[0].mxu0
        %v3208 = vadd.f32 %v3143, %v3207
        %v3209 = vpop.f32.mrb[0].mxu0
        %3210 = vmatprep.mubr.bf16.mxu0 0
        %3211 = vmatmul.mubr.bf16.gmra.mrb[0].mxu0 %v3033
        %v3212 = vpop.f32.mrb[0].mxu0
        %v3213 = vadd.f32 %v3148, %v3212
        %v3214 = vpop.f32.mrb[0].mxu0
        %v3215 = vpop.f32.mrb[0].mxu0
        %v3216 = vadd.f32 %v3151, %v3215
        %v3217 = vpop.f32.mrb[0].mxu0
        %3218 = vmatprep.mubr.bf16.mxu0 0
        %3219 = vmatmul.mubr.bf16.gmra.mrb[0].mxu0 %v3035
        %v3220 = vpop.f32.mrb[0].mxu0
        %v3221 = vadd.f32 %v3156, %v3220
        %v3222 = vpop.f32.mrb[0].mxu0
        %v3223 = vpop.f32.mrb[0].mxu0
        %v3224 = vadd.f32 %v3159, %v3223
        %v3225 = vpop.f32.mrb[0].mxu0
        %3226 = vmatprep.mubr.bf16.mxu0 0
        %3227 = vmatmul.mubr.bf16.gmra.mrb[0].mxu0 %v3038
        %v3228 = vpop.f32.mrb[0].mxu0
        %v3229 = vadd.f32 %v3164, %v3228
        %v3230 = vpop.f32.mrb[0].mxu0
        %v3231 = vpop.f32.mrb[0].mxu0
        %v3232 = vadd.f32 %v3167, %v3231
        %v3233 = vpop.f32.mrb[0].mxu0
        %3234 = vdwg.mxu0
        %v3235 = vld [vmem:[%s618] sm:$0xff]
        %v3236 = vld [vmem:[%s618 + $0x8] sm:$0xff]
        %v3237 = vld [vmem:[%s618 + $0x10] sm:$0xff]
        %v3238 = vld [vmem:[%s618 + $0x18] sm:$0xff]
        %v3239 = vld [vmem:[%s618 + $0x20] sm:$0xff]
        %v3240 = vld [vmem:[%s618 + $0x28] sm:$0xff]
        %v3241 = vld [vmem:[%s618 + $0x30] sm:$0xff]
        %v3242 = vld [vmem:[%s618 + $0x38] sm:$0xff]
        %v3243 = vadd.f32 %v3235, %v3205
        %v3244 = vadd.f32 %v3236, %v3208
        %v3245 = vadd.f32 %v3237, %v3213
        %v3246 = vadd.f32 %v3238, %v3216
        %v3247 = vadd.f32 %v3239, %v3221
        %v3248 = vadd.f32 %v3240, %v3224
        %v3249 = vadd.f32 %v3241, %v3229
        %v3250 = vadd.f32 %v3242, %v3232
        %3251 = vst.msk [vmem:[%s618] sm:$0xff] %vm634, %v3243
        %3252 = vst.msk [vmem:[%s618 + $0x8] sm:$0xff] %vm634, %v3244
        %3253 = vst.msk [vmem:[%s618 + $0x10] sm:$0xff] %vm634, %v3245
        %3254 = vst.msk [vmem:[%s618 + $0x18] sm:$0xff] %vm634, %v3246
        %3255 = vst.msk [vmem:[%s618 + $0x20] sm:$0xff] %vm634, %v3247
        %3256 = vst.msk [vmem:[%s618 + $0x28] sm:$0xff] %vm634, %v3248
        %3257 = vst.msk [vmem:[%s618 + $0x30] sm:$0xff] %vm634, %v3249
        %3258 = vst.msk [vmem:[%s618 + $0x38] sm:$0xff] %vm634, %v3250
        %s3259 = sand.u32 %s322, 1
        %s3260 = scalar_lea.sflag [#allocation4], %s3259
        %s3261 = sand.u32 %s322, 1
        %s3262 = smul.addr %s3261, 64
        %s3263 = scalar_lea.vmem [#allocation23], %s3262
        // Predicated region
        $region125: #{resnet_block.1} parent=71 // pred_check
          %p3264 = pneg %p332
        $region126: #{resnet_block.1} parent=71 // pred_check_branch
          %3266 = sbr.rel (%p3264) target = $region128
        $region127: #{resnet_block.1} parent=71 // pred_region
          %s3268 = ssub.s32 1024, 1024
          %3269 = vsyncadd %s3260, %s3268
          %s3270 = smul.addr %s36, 8
          %s3271 = smul.addr %s3270, 128
          %s3272 = scalar_lea.hbm %s13, %s3271
          %s3273 = sshll.u32 %s3263, 4
          %s3274 = int_to_ptr.vmem [resolvable:$true] %s3273
          %3279 = dma.vmem_to_hbm [thread:$0]  %s3274, 1024, %s3272, %s3260, 128, 128, 8
        $region128: #{resnet_block.1} parent=71 // pred_fallthru
          _
      $region72: #{resnet_block.1} parent=5 // pred_fallthru
        _
      %p3280 = scmp.le.s32.totalorder 2, %s31
      // Predicated region
      $region129: #{resnet_block.1} parent=5 // pred_check
        %p3281 = pneg %p3280
      $region130: #{resnet_block.1} parent=5 // pred_check_branch
        %3283 = sbr.rel (%p3281) target = $region132
      $region131: #{resnet_block.1} parent=5 // pred_region
        %s3284 = ssub.s32 %s31, 2
        // Predicated region
        $region133: #{resnet_block.1} parent=131 // pred_check
          %p3285 = pneg %p338
        $region134: #{resnet_block.1} parent=131 // pred_check_branch
          %3287 = sbr.rel (%p3285) target = $region136
        $region135: #{resnet_block.1} parent=131 // pred_region
          %s3288 = sand.u32 %s323, 1
          %s3289 = scalar_lea.sflag [#allocation4], %s3288
          %s3290 = sand.u32 %s323, 1
          %s3291 = smul.addr %s3290, 64
          %s3292 = scalar_lea.vmem [#allocation23], %s3291
          %3293 = dma.done %s3289, 1024
        $region136: #{resnet_block.1} parent=131 // pred_fallthru
          _
      $region132: #{resnet_block.1} parent=5 // pred_fallthru
        _
    $region6: #{resnet_block.1} parent=1 // loop_footer
      %s35 = sadd.s32 1, %s31
    $region7: #{resnet_block.1} parent=1 // loop_footer_branch
      %30 = sbr.rel target = $region3
    $region8: #{resnet_block.1} parent=1 // loop_exit
      _
    %3294 = vsyncpa [#allocation3], 1
    %s3295 = scalar_lea.sflag [#allocation3], 1
    %3296 = vsyncpa %s3295, 1
    %3297 = vsyncpa [#allocation6], 1
    %3298 = vsyncpa [#allocation9], 1
    %3299 = vsyncpa [#allocation12], 1
    %3300 = vsyncpa [#allocation15], 1
    %3301 = vsyncpa [#allocation18], 1
    %3302 = vsyncpa [#allocation21], 1
    %3303 = vsyncpa [#allocation4], 1
    %s3304 = scalar_lea.sflag [#allocation4], 1
    %3305 = vsyncpa %s3304, 1

</llo_original>
